<compile_context>
chip_gen: v7x
topology: tpu7x:2x2x1
jax: 0.10.0
libtpu: 0.0.40
codegen_flags: <defaults>
</compile_context>

<pallas_src>
import functools

import jax
import jax.numpy as jnp
from jax import lax
from jax.experimental import pallas as pl
from jax.experimental.pallas import tpu as pltpu


# ----------------------------- in-kernel helpers -----------------------------

def _fast_recip(x):
    # EUP approximate reciprocal (separate VLIW slot) + one Newton-Raphson
    # step: removes the VALU divide but stays ~float32-exact, so the kernel
    # can be validated with a tight tolerance.
    r = pl.reciprocal(x, approx=True)
    return r * (2.0 - x * r)


def _layernorm(x, gamma, beta, eps=1e-5):
    # PyTorch nn.LayerNorm semantics: biased variance, eps=1e-5, affine.
    mean = jnp.mean(x, axis=-1, keepdims=True)
    var = jnp.mean((x - mean) ** 2, axis=-1, keepdims=True)
    return (x - mean) * lax.rsqrt(var + eps) * gamma + beta


def _erf(x):
    # Abramowitz & Stegun 7.1.26 rational approximation (|err| ~ 1.5e-7):
    # float32-exact for GELU purposes; lowers cleanly in Mosaic.
    p = 0.3275911
    a1, a2, a3, a4, a5 = (0.254829592, -0.284496736, 1.421413741,
                          -1.453152027, 1.061405429)
    s = jnp.where(x >= 0.0, 1.0, -1.0)
    ax = jnp.abs(x)
    t = _fast_recip(1.0 + p * ax)          # divide moved off the VALU
    poly = t * (a1 + t * (a2 + t * (a3 + t * (a4 + t * a5))))
    return s * (1.0 - poly * jnp.exp(-ax * ax))


def _gelu_exact(x):
    # nn.GELU() default = exact (erf-based) GELU.
    return 0.5 * x * (1.0 + _erf(x * 0.7071067811865476))


# --------------------------------- kernel ------------------------------------

def resampler_kernel(src_ref, pos_ref, lat_ref,
                     gs_ref, bs_ref, gl_ref, bl_ref,
                     wqkv_ref, wout_ref,
                     gf_ref, bf_ref, w1_ref, w2_ref,
                     ng_ref, nb_ref,
                     out_ref,
                     src_hat_ref, ltn_ref,
                     *, num_heads, dim_head):
    """One (PerceiverAttention + FeedForward) layer for one batch element.

    Grid = (batch, layer).  The latent stream lives in `ltn_ref` (VMEM
    scratch) across the layer axis; `src_hat_ref` caches the layer-invariant
    normalized src (pos-emb already added, pre-affine).
    """
    _, m, n_src, d = src_ref.shape            # src block: (1, time, seq, dim)
    n_ltn = lat_ref.shape[0]
    n_ctx = n_src + n_ltn
    E = num_heads * dim_head
    scale = dim_head ** -0.5
    layer = pl.program_id(1)

    # -------- once per batch element: pos-emb add, src norm stats, latents --
    @pl.when(layer == 0)
    def _init():
        src = src_ref[0].astype(jnp.float32) + \
            pos_ref[...].astype(jnp.float32)[:, None, :]          # (m, n_src, d)
        mu = jnp.mean(src, axis=-1, keepdims=True)
        var = jnp.mean((src - mu) ** 2, axis=-1, keepdims=True)
        src_hat_ref[...] = (src - mu) * lax.rsqrt(var + 1e-5)     # pre-affine
        lat = lat_ref[...].astype(jnp.float32)                    # (n_ltn, d)
        ltn_ref[...] = jnp.concatenate([lat] * m, axis=0)         # (m*n_ltn, d)

    # ---------------- PerceiverAttention (+ residual) ----------------
    # src LayerNorm: stats hoisted out of the layer loop; affine only here.
    src_n = src_hat_ref[...] * gs_ref[0] + bs_ref[0]              # (m, n_src, d)
    ltn = ltn_ref[...]                                            # (m*n_ltn, d)
    ltn_n = _layernorm(ltn, gl_ref[0], bl_ref[0])                 # (m*n_ltn, d)

    # [src ; latent] context concat along tokens, then ONE fused [Wq|Wkv]
    # projection matmul over all m*(n_src+n_ltn) rows.
    ctx = jnp.concatenate([src_n, ltn_n.reshape(m, n_ltn, d)], axis=1)
    qkv = jnp.dot(ctx.reshape(m * n_ctx, d), wqkv_ref[0],
                  preferred_element_type=jnp.float32)             # (m*n_ctx, 3E)
    qkv = qkv.reshape(m, n_ctx, 3 * E)
    q = qkv[:, n_src:, 0:E] * scale                               # (m, n_ltn, E)
    k = qkv[:, :, E:2 * E]                                        # (m, n_ctx, E)
    v = qkv[:, :, 2 * E:]                                         # (m, n_ctx, E)

    # Per-head joint softmax over the full context; heads concatenated and
    # projected with a single K=E matmul against W_out.
    heads = []
    for h in range(num_heads):                 # static unroll (small H)
        lo, hi = h * dim_head, (h + 1) * dim_head
        s = jnp.einsum('bqd,bkd->bqk', q[:, :, lo:hi], k[:, :, lo:hi],
                       preferred_element_type=jnp.float32)        # (m, n_ltn, n_ctx)
        p = jnp.exp(s - jnp.max(s, axis=-1, keepdims=True))
        p = p * _fast_recip(jnp.sum(p, axis=-1, keepdims=True))
        heads.append(jnp.einsum('bqk,bkd->bqd', p, v[:, :, lo:hi],
                                preferred_element_type=jnp.float32))
    o = jnp.concatenate(heads, axis=-1).reshape(m * n_ltn, E)
    ltn = ltn + jnp.dot(o, wout_ref[0], preferred_element_type=jnp.float32)

    # ---------------- FeedForward (+ residual) ----------------
    xn = _layernorm(ltn, gf_ref[0], bf_ref[0])
    h1 = _gelu_exact(jnp.dot(xn, w1_ref[0], preferred_element_type=jnp.float32))
    ltn = ltn + jnp.dot(h1, w2_ref[0], preferred_element_type=jnp.float32)
    ltn_ref[...] = ltn                                            # carry to next layer

    # -------- last layer: final LayerNorm + ONE contiguous store --------
    @pl.when(layer == pl.num_programs(1) - 1)
    def _finalize():
        out_ref[0] = _layernorm(ltn, ng_ref[...], nb_ref[...]).astype(out_ref.dtype)


# ------------------------------ pallas wrapper --------------------------------

@functools.partial(jax.jit, static_argnames=("num_heads", "dim_head"))
def perceiver_resampler_forward(src, params, *, num_heads, dim_head):
    if src.ndim == 3:                         # 'b n d -> b 1 n d'
        src = src[:, None, :, :]
    b, m, n_src, d = src.shape
    num_emb = params["pos_emb"].shape[0]
    assert m <= num_emb, "time dimension exceeds positional-embedding table"
    n_ltn = params["latents"].shape[0]
    n_ctx = n_src + n_ltn
    L = params["wq"].shape[0]
    E = num_heads * dim_head
    d_ffw = params["w1"].shape[2]

    pos = params["pos_emb"][:m, 0, :]                        # (m, d) — tiny slice
    # fuse q and kv projection weights once (columns: [q | k | v])
    w_qkv = jnp.concatenate([params["wq"], params["wkv"]], axis=-1)   # (L, d, 3E)

    def layer_spec(*tail):       # per-layer weight block, streamed along grid axis 1
        return pl.BlockSpec((1,) + tail, lambda i, l, _t=len(tail): (l,) + (0,) * _t)

    def const_spec(shape):       # fetched once, never re-DMA'd
        return pl.BlockSpec(shape, lambda i, l, _n=len(shape): (0,) * _n)

    kern = functools.partial(resampler_kernel,
                             num_heads=num_heads, dim_head=dim_head)

    # advisory cost estimate so XLA can schedule neighbors around the call
    flops_bt_l = (2 * n_ctx * d * 3 * E          # fused qkv projection
                  + 4 * n_ltn * n_ctx * E        # scores + PV (all heads)
                  + 2 * n_ltn * E * d            # output projection
                  + 4 * n_ltn * d * d_ffw)       # feed-forward
    transc = b * m * L * (num_heads * n_ltn * n_ctx + n_ltn * d_ffw)
    wbytes = 4 * (w_qkv.size + params["wout"].size +
                  params["w1"].size + params["w2"].size)
    cost = pl.CostEstimate(flops=int(b * m * L * flops_bt_l),
                           transcendentals=int(transc),
                           bytes_accessed=int(4 * src.size + 4 * b * m * n_ltn * d
                                              + b * wbytes))

    out = pl.pallas_call(
        kern,
        out_shape=jax.ShapeDtypeStruct((b, m * n_ltn, d), src.dtype),
        grid_spec=pltpu.PrefetchScalarGridSpec(
            num_scalar_prefetch=0,
            grid=(b, L),                       # batch parallel, layers streamed
            in_specs=[
                pl.BlockSpec((1, m, n_src, d), lambda i, l: (i, 0, 0, 0)),  # src
                const_spec((m, d)),                                         # pos_emb
                const_spec((n_ltn, d)),                                     # latents
                layer_spec(1, d), layer_spec(1, d),                         # g_src, b_src
                layer_spec(1, d), layer_spec(1, d),                         # g_ltn, b_ltn
                layer_spec(d, 3 * E),                                       # [wq|wkv]
                layer_spec(E, d),                                           # wout
                layer_spec(1, d), layer_spec(1, d),                         # g_ffw, b_ffw
                layer_spec(d, d_ffw),                                       # w1
                layer_spec(d_ffw, d),                                       # w2
                const_spec((1, d)), const_spec((1, d)),                     # final norm
            ],
            out_specs=pl.BlockSpec((1, m * n_ltn, d), lambda i, l: (i, 0, 0)),
            scratch_shapes=[
                pltpu.VMEM((m, n_src, d), jnp.float32),      # cached normalized src
                pltpu.VMEM((m * n_ltn, d), jnp.float32),     # latent stream carry
            ]),
        compiler_params=pltpu.CompilerParams(
            dimension_semantics=("parallel", "arbitrary"),
            vmem_limit_bytes=32 * 1024 * 1024),
        cost_estimate=cost,
    )(src, pos, params["latents"],
      params["g_src"], params["b_src"], params["g_ltn"], params["b_ltn"],
      w_qkv, params["wout"],
      params["g_ffw"], params["b_ffw"], params["w1"], params["w2"],
      params["norm_g"], params["norm_b"])

    return out.reshape(b, m, n_ltn, d)        # free metadata reshape


# --------------------------- params & reference -------------------------------

def init_params(key, *, dim_ltn, dim_head, num_heads, num_ltn, num_emb,
                num_layers, ffw_mul):
    E = dim_head * num_heads
    d_ffw = dim_ltn * ffw_mul
    ki = iter(jax.random.split(key, 2 + num_layers * 5))

    def w(shape):
        return 0.05 * jax.random.normal(next(ki), shape, jnp.float32)

    ones = jnp.ones((num_layers, 1, dim_ltn), jnp.float32)
    zeros = jnp.zeros((num_layers, 1, dim_ltn), jnp.float32)
    return {
        "latents": jax.random.normal(next(ki), (num_ltn, dim_ltn), jnp.float32),
        "pos_emb": jax.random.normal(next(ki), (num_emb, 1, dim_ltn), jnp.float32),
        "g_src": ones, "b_src": zeros,
        "g_ltn": ones, "b_ltn": zeros,
        "g_ffw": ones, "b_ffw": zeros,
        "norm_g": jnp.ones((1, dim_ltn), jnp.float32),
        "norm_b": jnp.zeros((1, dim_ltn), jnp.float32),
        # weights stored as (in, out): y = x @ W  (== PyTorch x @ W.T)
        "wq":   jnp.stack([w((dim_ltn, E)) for _ in range(num_layers)]),
        "wkv":  jnp.stack([w((dim_ltn, 2 * E)) for _ in range(num_layers)]),
        "wout": jnp.stack([w((E, dim_ltn)) for _ in range(num_layers)]),
        "w1":   jnp.stack([w((dim_ltn, d_ffw)) for _ in range(num_layers)]),
        "w2":   jnp.stack([w((d_ffw, dim_ltn)) for _ in range(num_layers)]),
    }


def _reference_forward(src, params, *, num_heads, dim_head):
    """Plain-JAX reference mirroring the PyTorch module (validation only)."""
    if src.ndim == 3:
        src = src[:, None, :, :]
    b, m, n_src, d = src.shape
    E = num_heads * dim_head
    n_ltn = params["latents"].shape[0]

    def ln(x, g, bb):
        mu = jnp.mean(x, axis=-1, keepdims=True)
        var = jnp.mean((x - mu) ** 2, axis=-1, keepdims=True)
        return (x - mu) / jnp.sqrt(var + 1e-5) * g.reshape(-1) + bb.reshape(-1)

    def split_heads(t):  # (b, m, n, E) -> (b, m, H, n, dh)
        return t.reshape(*t.shape[:3], num_heads, dim_head).transpose(0, 1, 3, 2, 4)

    srcp = src + params["pos_emb"][:m][None]
    ltn = jnp.broadcast_to(params["latents"][None, None], (b, m, n_ltn, d))

    for l in range(params["wq"].shape[0]):
        s = ln(srcp, params["g_src"][l], params["b_src"][l])
        x = ln(ltn, params["g_ltn"][l], params["b_ltn"][l])
        q = x @ params["wq"][l]
        ctx = jnp.concatenate([s, x], axis=-2)
        kv = ctx @ params["wkv"][l]
        k, v = kv[..., :E], kv[..., E:]
        qh, kh, vh = split_heads(q), split_heads(k), split_heads(v)
        att = jnp.einsum('bmhid,bmhjd->bmhij', qh, kh) * (dim_head ** -0.5)
        att = jax.nn.softmax(att - att.max(axis=-1, keepdims=True), axis=-1)
        o = jnp.einsum('bmhij,bmhjd->bmhid', att, vh)
        o = o.transpose(0, 1, 3, 2, 4).reshape(b, m, n_ltn, E)
        ltn = o @ params["wout"][l] + ltn
        xf = ln(ltn, params["g_ffw"][l], params["b_ffw"][l])
        ltn = jax.nn.gelu(xf @ params["w1"][l], approximate=False) @ params["w2"][l] + ltn
    return ln(ltn, params["norm_g"], params["norm_b"])


# ------------------------------------ main ------------------------------------

if __name__ == "__main__":
    dim_ltn, dim_head, num_heads = 32, 8, 4
    num_ltn, num_emb, num_layers, ffw_mul = 8, 4, 2, 4

    key = jax.random.PRNGKey(0)
    kp, kx = jax.random.split(key)
    params = init_params(kp, dim_ltn=dim_ltn, dim_head=dim_head,
                         num_heads=num_heads, num_ltn=num_ltn,
                         num_emb=num_emb, num_layers=num_layers,
                         ffw_mul=ffw_mul)

    # src: [batch=2, time=2, seq=16, dim=32]
    src = jax.random.normal(kx, (2, 2, 16, dim_ltn), jnp.float32)

    out = perceiver_resampler_forward(src, params,
                                      num_heads=num_heads, dim_head=dim_head)
    jax.block_until_ready(out)

    assert out.shape == (2, 2, num_ltn, dim_ltn)
    assert bool(jnp.all(jnp.isfinite(out)))

    # validate against a plain-JAX reference.  Tolerance tightened vs the
    # previous revision: NR-refined EUP reciprocals and the A&S erf keep the
    # kernel ~float32-exact (observed error ~1e-5).
    ref = _reference_forward(src, params, num_heads=num_heads, dim_head=dim_head)
    err = float(jnp.max(jnp.abs(out - ref)))
    assert err < 2e-3, f"kernel mismatch vs reference: max abs err = {err}"

    print("KERNEL_OK")
</pallas_src>

<mosaic_0001>
module attributes {stable_mosaic.version = 11 : i64} {
  func.func @resampler_kernel(%arg0: i32, %arg1: i32, %arg2: memref<1x2x16x32xf32, #tpu.memory_space<vmem>>, %arg3: memref<2x32xf32, #tpu.memory_space<vmem>>, %arg4: memref<8x32xf32, #tpu.memory_space<vmem>>, %arg5: memref<1x1x32xf32, #tpu.memory_space<vmem>>, %arg6: memref<1x1x32xf32, #tpu.memory_space<vmem>>, %arg7: memref<1x1x32xf32, #tpu.memory_space<vmem>>, %arg8: memref<1x1x32xf32, #tpu.memory_space<vmem>>, %arg9: memref<1x32x96xf32, #tpu.memory_space<vmem>>, %arg10: memref<1x32x32xf32, #tpu.memory_space<vmem>>, %arg11: memref<1x1x32xf32, #tpu.memory_space<vmem>>, %arg12: memref<1x1x32xf32, #tpu.memory_space<vmem>>, %arg13: memref<1x32x128xf32, #tpu.memory_space<vmem>>, %arg14: memref<1x128x32xf32, #tpu.memory_space<vmem>>, %arg15: memref<1x32xf32, #tpu.memory_space<vmem>>, %arg16: memref<1x32xf32, #tpu.memory_space<vmem>>, %arg17: memref<1x16x32xf32, #tpu.memory_space<vmem>>, %arg18: memref<2x16x32xf32, #tpu.memory_space<vmem>>, %arg19: memref<16x32xf32, #tpu.memory_space<vmem>>) attributes {dimension_semantics = [#tpu.dimension_semantics<parallel>, #tpu.dimension_semantics<arbitrary>], iteration_bounds = array<i64: 2, 2>, scalar_prefetch = 0 : i64, scratch_operands = 2 : i64, tpu.core_type = #tpu.core_type<tc>, window_params = [{transform_indices = @transform_0, window_bounds = array<i64: 1, 2, 16, 32>}, {pipeline_mode = #tpu.pipeline_mode<synchronous>, transform_indices = @transform_1, window_bounds = array<i64: 2, 32>}, {pipeline_mode = #tpu.pipeline_mode<synchronous>, transform_indices = @transform_2, window_bounds = array<i64: 8, 32>}, {transform_indices = @transform_3, window_bounds = array<i64: 1, 1, 32>}, {transform_indices = @transform_4, window_bounds = array<i64: 1, 1, 32>}, {transform_indices = @transform_5, window_bounds = array<i64: 1, 1, 32>}, {transform_indices = @transform_6, window_bounds = array<i64: 1, 1, 32>}, {transform_indices = @transform_7, window_bounds = array<i64: 1, 32, 96>}, {transform_indices = @transform_8, window_bounds = array<i64: 1, 32, 32>}, {transform_indices = @transform_9, window_bounds = array<i64: 1, 1, 32>}, {transform_indices = @transform_10, window_bounds = array<i64: 1, 1, 32>}, {transform_indices = @transform_11, window_bounds = array<i64: 1, 32, 128>}, {transform_indices = @transform_12, window_bounds = array<i64: 1, 128, 32>}, {pipeline_mode = #tpu.pipeline_mode<synchronous>, transform_indices = @transform_13, window_bounds = array<i64: 1, 32>}, {pipeline_mode = #tpu.pipeline_mode<synchronous>, transform_indices = @transform_14, window_bounds = array<i64: 1, 32>}, {transform_indices = @transform_15, window_bounds = array<i64: 1, 16, 32>}]} {
    %c0_i32 = arith.constant 0 : i32
    %0 = arith.cmpi eq, %arg1, %c0_i32 : i32
    %1 = arith.extui %0 : i1 to i32
    %c0_i32_0 = arith.constant 0 : i32
    %2 = arith.cmpi ne, %1, %c0_i32_0 : i32
    scf.if %2 {
      %c0_88 = arith.constant 0 : index
      %c0_89 = arith.constant 0 : index
      %c0_90 = arith.constant 0 : index
      %c0_91 = arith.constant 0 : index
      %216 = vector.load %arg2[%c0_88, %c0_89, %c0_90, %c0_91] : memref<1x2x16x32xf32, #tpu.memory_space<vmem>>, vector<1x2x16x32xf32>
      %217 = vector.shape_cast %216 : vector<1x2x16x32xf32> to vector<2x16x32xf32>
      %c0_92 = arith.constant 0 : index
      %c0_93 = arith.constant 0 : index
      %218 = vector.load %arg3[%c0_92, %c0_93] : memref<2x32xf32, #tpu.memory_space<vmem>>, vector<2x32xf32>
      %219 = vector.shape_cast %218 : vector<2x32xf32> to vector<2x1x32xf32>
      %220 = vector.broadcast %219 : vector<2x1x32xf32> to vector<2x16x32xf32>
      %221 = arith.addf %217, %220 : vector<2x16x32xf32>
      %cst_94 = arith.constant dense<0.000000e+00> : vector<2x16xf32>
      %222 = vector.multi_reduction <add>, %221, %cst_94 [2] : vector<2x16x32xf32> to vector<2x16xf32>
      %223 = vector.shape_cast %222 : vector<2x16xf32> to vector<2x16x1xf32>
      %cst_95 = arith.constant 3.200000e+01 : f32
      %224 = vector.broadcast %cst_95 : f32 to vector<2x16x1xf32>
      %225 = arith.divf %223, %224 : vector<2x16x1xf32>
      %226 = vector.broadcast %225 : vector<2x16x1xf32> to vector<2x16x32xf32>
      %227 = arith.subf %221, %226 : vector<2x16x32xf32>
      %228 = arith.mulf %227, %227 : vector<2x16x32xf32>
      %cst_96 = arith.constant dense<0.000000e+00> : vector<2x16xf32>
      %229 = vector.multi_reduction <add>, %228, %cst_96 [2] : vector<2x16x32xf32> to vector<2x16xf32>
      %230 = vector.shape_cast %229 : vector<2x16xf32> to vector<2x16x1xf32>
      %cst_97 = arith.constant 3.200000e+01 : f32
      %231 = vector.broadcast %cst_97 : f32 to vector<2x16x1xf32>
      %232 = arith.divf %230, %231 : vector<2x16x1xf32>
      %233 = vector.broadcast %225 : vector<2x16x1xf32> to vector<2x16x32xf32>
      %234 = arith.subf %221, %233 : vector<2x16x32xf32>
      %cst_98 = arith.constant 9.99999974E-6 : f32
      %235 = vector.broadcast %cst_98 : f32 to vector<2x16x1xf32>
      %236 = arith.addf %232, %235 : vector<2x16x1xf32>
      %237 = math.rsqrt %236 : vector<2x16x1xf32>
      %238 = vector.broadcast %237 : vector<2x16x1xf32> to vector<2x16x32xf32>
      %239 = arith.mulf %234, %238 : vector<2x16x32xf32>
      %c0_99 = arith.constant 0 : index
      %c0_100 = arith.constant 0 : index
      %c0_101 = arith.constant 0 : index
      %240 = vector.load %arg18[%c0_99, %c0_100, %c0_101] : memref<2x16x32xf32, #tpu.memory_space<vmem>>, vector<2x16x32xf32>
      tpu.vector_store %arg18[%c0_99, %c0_100, %c0_101], %239 {strides = array<i32>} : memref<2x16x32xf32, #tpu.memory_space<vmem>>, vector<2x16x32xf32>,
      %c0_102 = arith.constant 0 : index
      %c0_103 = arith.constant 0 : index
      %241 = vector.load %arg4[%c0_102, %c0_103] : memref<8x32xf32, #tpu.memory_space<vmem>>, vector<8x32xf32>
      %242 = tpu.concatenate %241, %241 in 0 : vector<8x32xf32>, vector<8x32xf32> -> vector<16x32xf32>
      %c0_104 = arith.constant 0 : index
      %c0_105 = arith.constant 0 : index
      %243 = vector.load %arg19[%c0_104, %c0_105] : memref<16x32xf32, #tpu.memory_space<vmem>>, vector<16x32xf32>
      tpu.vector_store %arg19[%c0_104, %c0_105], %242 {strides = array<i32>} : memref<16x32xf32, #tpu.memory_space<vmem>>, vector<16x32xf32>,
    } else {
    }
    %c0 = arith.constant 0 : index
    %c0_1 = arith.constant 0 : index
    %c0_2 = arith.constant 0 : index
    %3 = vector.load %arg18[%c0, %c0_1, %c0_2] : memref<2x16x32xf32, #tpu.memory_space<vmem>>, vector<2x16x32xf32>
    %c0_3 = arith.constant 0 : index
    %c0_4 = arith.constant 0 : index
    %c0_5 = arith.constant 0 : index
    %4 = vector.load %arg5[%c0_3, %c0_4, %c0_5] : memref<1x1x32xf32, #tpu.memory_space<vmem>>, vector<1x1x32xf32>
    %5 = vector.shape_cast %4 : vector<1x1x32xf32> to vector<1x32xf32>
    %6 = vector.shape_cast %5 : vector<1x32xf32> to vector<1x1x32xf32>
    %7 = vector.broadcast %6 : vector<1x1x32xf32> to vector<2x16x32xf32>
    %8 = arith.mulf %3, %7 : vector<2x16x32xf32>
    %c0_6 = arith.constant 0 : index
    %c0_7 = arith.constant 0 : index
    %c0_8 = arith.constant 0 : index
    %9 = vector.load %arg6[%c0_6, %c0_7, %c0_8] : memref<1x1x32xf32, #tpu.memory_space<vmem>>, vector<1x1x32xf32>
    %10 = vector.shape_cast %9 : vector<1x1x32xf32> to vector<1x32xf32>
    %11 = vector.shape_cast %10 : vector<1x32xf32> to vector<1x1x32xf32>
    %12 = vector.broadcast %11 : vector<1x1x32xf32> to vector<2x16x32xf32>
    %13 = arith.addf %8, %12 : vector<2x16x32xf32>
    %c0_9 = arith.constant 0 : index
    %c0_10 = arith.constant 0 : index
    %14 = vector.load %arg19[%c0_9, %c0_10] : memref<16x32xf32, #tpu.memory_space<vmem>>, vector<16x32xf32>
    %c0_11 = arith.constant 0 : index
    %c0_12 = arith.constant 0 : index
    %c0_13 = arith.constant 0 : index
    %15 = vector.load %arg7[%c0_11, %c0_12, %c0_13] : memref<1x1x32xf32, #tpu.memory_space<vmem>>, vector<1x1x32xf32>
    %16 = vector.shape_cast %15 : vector<1x1x32xf32> to vector<1x32xf32>
    %c0_14 = arith.constant 0 : index
    %c0_15 = arith.constant 0 : index
    %c0_16 = arith.constant 0 : index
    %17 = vector.load %arg8[%c0_14, %c0_15, %c0_16] : memref<1x1x32xf32, #tpu.memory_space<vmem>>, vector<1x1x32xf32>
    %18 = vector.shape_cast %17 : vector<1x1x32xf32> to vector<1x32xf32>
    %cst = arith.constant dense<0.000000e+00> : vector<16xf32>
    %19 = vector.multi_reduction <add>, %14, %cst [1] : vector<16x32xf32> to vector<16xf32>
    %20 = vector.shape_cast %19 : vector<16xf32> to vector<16x1xf32>
    %cst_17 = arith.constant 3.200000e+01 : f32
    %21 = vector.broadcast %cst_17 : f32 to vector<16x1xf32>
    %22 = arith.divf %20, %21 : vector<16x1xf32>
    %23 = vector.broadcast %22 : vector<16x1xf32> to vector<16x32xf32>
    %24 = arith.subf %14, %23 : vector<16x32xf32>
    %25 = arith.mulf %24, %24 : vector<16x32xf32>
    %cst_18 = arith.constant dense<0.000000e+00> : vector<16xf32>
    %26 = vector.multi_reduction <add>, %25, %cst_18 [1] : vector<16x32xf32> to vector<16xf32>
    %27 = vector.shape_cast %26 : vector<16xf32> to vector<16x1xf32>
    %cst_19 = arith.constant 3.200000e+01 : f32
    %28 = vector.broadcast %cst_19 : f32 to vector<16x1xf32>
    %29 = arith.divf %27, %28 : vector<16x1xf32>
    %30 = vector.broadcast %22 : vector<16x1xf32> to vector<16x32xf32>
    %31 = arith.subf %14, %30 : vector<16x32xf32>
    %cst_20 = arith.constant 9.99999974E-6 : f32
    %32 = vector.broadcast %cst_20 : f32 to vector<16x1xf32>
    %33 = arith.addf %29, %32 : vector<16x1xf32>
    %34 = math.rsqrt %33 : vector<16x1xf32>
    %35 = vector.broadcast %34 : vector<16x1xf32> to vector<16x32xf32>
    %36 = arith.mulf %31, %35 : vector<16x32xf32>
    %37 = vector.broadcast %16 : vector<1x32xf32> to vector<16x32xf32>
    %38 = arith.mulf %36, %37 : vector<16x32xf32>
    %39 = vector.broadcast %18 : vector<1x32xf32> to vector<16x32xf32>
    %40 = arith.addf %38, %39 : vector<16x32xf32>
    %41 = vector.shape_cast %40 : vector<16x32xf32> to vector<2x8x32xf32>
    %42 = tpu.concatenate %13, %41 in 1 : vector<2x16x32xf32>, vector<2x8x32xf32> -> vector<2x24x32xf32>
    %43 = vector.shape_cast %42 : vector<2x24x32xf32> to vector<48x32xf32>
    %c0_21 = arith.constant 0 : index
    %c0_22 = arith.constant 0 : index
    %c0_23 = arith.constant 0 : index
    %44 = vector.load %arg9[%c0_21, %c0_22, %c0_23] : memref<1x32x96xf32, #tpu.memory_space<vmem>>, vector<1x32x96xf32>
    %45 = vector.shape_cast %44 : vector<1x32x96xf32> to vector<32x96xf32>
    %cst_24 = arith.constant dense<0.000000e+00> : vector<48x96xf32>
    %46 = tpu.matmul %43, %45, %cst_24 {dimension_numbers = #tpu.dot_dimension_numbers<[1], [0], [0], [1], [0, 0, 1, 1], [], []>} : vector<48x32xf32>, vector<32x96xf32>, vector<48x96xf32> -> vector<48x96xf32>
    %47 = vector.shape_cast %46 : vector<48x96xf32> to vector<2x24x96xf32>
    %48 = vector.extract_strided_slice %47 {offsets = [0, 16, 0], sizes = [2, 8, 32], strides = [1, 1, 1]} : vector<2x24x96xf32> to vector<2x8x32xf32>
    %cst_25 = arith.constant 0.353553385 : f32
    %49 = vector.broadcast %cst_25 : f32 to vector<2x8x32xf32>
    %50 = arith.mulf %48, %49 : vector<2x8x32xf32>
    %51 = vector.extract_strided_slice %47 {offsets = [0, 0, 32], sizes = [2, 24, 32], strides = [1, 1, 1]} : vector<2x24x96xf32> to vector<2x24x32xf32>
    %52 = vector.extract_strided_slice %47 {offsets = [0, 0, 64], sizes = [2, 24, 32], strides = [1, 1, 1]} : vector<2x24x96xf32> to vector<2x24x32xf32>
    %53 = vector.extract_strided_slice %50 {offsets = [0, 0, 0], sizes = [2, 8, 8], strides = [1, 1, 1]} : vector<2x8x32xf32> to vector<2x8x8xf32>
    %54 = vector.extract_strided_slice %51 {offsets = [0, 0, 0], sizes = [2, 24, 8], strides = [1, 1, 1]} : vector<2x24x32xf32> to vector<2x24x8xf32>
    "tpu.trace_start"() <{level = 10 : i32, message = "bqd,bkd->bqk"}> : () -> ()
    %cst_26 = arith.constant dense<0.000000e+00> : vector<2x8x24xf32>
    %55 = tpu.matmul %53, %54, %cst_26 {dimension_numbers = #tpu.dot_dimension_numbers<[2], [2], [1], [1], [0, 0, 0, 1, 1, 1], [0], [0]>} : vector<2x8x8xf32>, vector<2x24x8xf32>, vector<2x8x24xf32> -> vector<2x8x24xf32>
    "tpu.trace_stop"() : () -> ()
    %cst_27 = arith.constant dense<0xFF800000> : vector<2x8xf32>
    %56 = vector.multi_reduction <maximumf>, %55, %cst_27 [2] : vector<2x8x24xf32> to vector<2x8xf32>
    %57 = vector.shape_cast %56 : vector<2x8xf32> to vector<2x8x1xf32>
    %58 = vector.broadcast %57 : vector<2x8x1xf32> to vector<2x8x24xf32>
    %59 = arith.subf %55, %58 : vector<2x8x24xf32>
    %60 = math.exp %59 : vector<2x8x24xf32>
    %cst_28 = arith.constant dense<0.000000e+00> : vector<2x8xf32>
    %61 = vector.multi_reduction <add>, %60, %cst_28 [2] : vector<2x8x24xf32> to vector<2x8xf32>
    %62 = vector.shape_cast %61 : vector<2x8xf32> to vector<2x8x1xf32>
    %63 = tpu.reciprocal %62 {approx = true} : vector<2x8x1xf32> -> vector<2x8x1xf32>
    %64 = arith.mulf %62, %63 : vector<2x8x1xf32>
    %cst_29 = arith.constant 2.000000e+00 : f32
    %65 = vector.broadcast %cst_29 : f32 to vector<2x8x1xf32>
    %66 = arith.subf %65, %64 : vector<2x8x1xf32>
    %67 = arith.mulf %63, %66 : vector<2x8x1xf32>
    %68 = vector.broadcast %67 : vector<2x8x1xf32> to vector<2x8x24xf32>
    %69 = arith.mulf %60, %68 : vector<2x8x24xf32>
    %70 = vector.extract_strided_slice %52 {offsets = [0, 0, 0], sizes = [2, 24, 8], strides = [1, 1, 1]} : vector<2x24x32xf32> to vector<2x24x8xf32>
    "tpu.trace_start"() <{level = 10 : i32, message = "bqk,bkd->bqd"}> : () -> ()
    %cst_30 = arith.constant dense<0.000000e+00> : vector<2x8x8xf32>
    %71 = tpu.matmul %69, %70, %cst_30 {dimension_numbers = #tpu.dot_dimension_numbers<[2], [1], [1], [2], [0, 0, 0, 1, 1, 2], [0], [0]>} : vector<2x8x24xf32>, vector<2x24x8xf32>, vector<2x8x8xf32> -> vector<2x8x8xf32>
    "tpu.trace_stop"() : () -> ()
    %72 = vector.extract_strided_slice %50 {offsets = [0, 0, 8], sizes = [2, 8, 8], strides = [1, 1, 1]} : vector<2x8x32xf32> to vector<2x8x8xf32>
    %73 = vector.extract_strided_slice %51 {offsets = [0, 0, 8], sizes = [2, 24, 8], strides = [1, 1, 1]} : vector<2x24x32xf32> to vector<2x24x8xf32>
    "tpu.trace_start"() <{level = 10 : i32, message = "bqd,bkd->bqk"}> : () -> ()
    %cst_31 = arith.constant dense<0.000000e+00> : vector<2x8x24xf32>
    %74 = tpu.matmul %72, %73, %cst_31 {dimension_numbers = #tpu.dot_dimension_numbers<[2], [2], [1], [1], [0, 0, 0, 1, 1, 1], [0], [0]>} : vector<2x8x8xf32>, vector<2x24x8xf32>, vector<2x8x24xf32> -> vector<2x8x24xf32>
    "tpu.trace_stop"() : () -> ()
    %cst_32 = arith.constant dense<0xFF800000> : vector<2x8xf32>
    %75 = vector.multi_reduction <maximumf>, %74, %cst_32 [2] : vector<2x8x24xf32> to vector<2x8xf32>
    %76 = vector.shape_cast %75 : vector<2x8xf32> to vector<2x8x1xf32>
    %77 = vector.broadcast %76 : vector<2x8x1xf32> to vector<2x8x24xf32>
    %78 = arith.subf %74, %77 : vector<2x8x24xf32>
    %79 = math.exp %78 : vector<2x8x24xf32>
    %cst_33 = arith.constant dense<0.000000e+00> : vector<2x8xf32>
    %80 = vector.multi_reduction <add>, %79, %cst_33 [2] : vector<2x8x24xf32> to vector<2x8xf32>
    %81 = vector.shape_cast %80 : vector<2x8xf32> to vector<2x8x1xf32>
    %82 = tpu.reciprocal %81 {approx = true} : vector<2x8x1xf32> -> vector<2x8x1xf32>
    %83 = arith.mulf %81, %82 : vector<2x8x1xf32>
    %cst_34 = arith.constant 2.000000e+00 : f32
    %84 = vector.broadcast %cst_34 : f32 to vector<2x8x1xf32>
    %85 = arith.subf %84, %83 : vector<2x8x1xf32>
    %86 = arith.mulf %82, %85 : vector<2x8x1xf32>
    %87 = vector.broadcast %86 : vector<2x8x1xf32> to vector<2x8x24xf32>
    %88 = arith.mulf %79, %87 : vector<2x8x24xf32>
    %89 = vector.extract_strided_slice %52 {offsets = [0, 0, 8], sizes = [2, 24, 8], strides = [1, 1, 1]} : vector<2x24x32xf32> to vector<2x24x8xf32>
    "tpu.trace_start"() <{level = 10 : i32, message = "bqk,bkd->bqd"}> : () -> ()
    %cst_35 = arith.constant dense<0.000000e+00> : vector<2x8x8xf32>
    %90 = tpu.matmul %88, %89, %cst_35 {dimension_numbers = #tpu.dot_dimension_numbers<[2], [1], [1], [2], [0, 0, 0, 1, 1, 2], [0], [0]>} : vector<2x8x24xf32>, vector<2x24x8xf32>, vector<2x8x8xf32> -> vector<2x8x8xf32>
    "tpu.trace_stop"() : () -> ()
    %91 = vector.extract_strided_slice %50 {offsets = [0, 0, 16], sizes = [2, 8, 8], strides = [1, 1, 1]} : vector<2x8x32xf32> to vector<2x8x8xf32>
    %92 = vector.extract_strided_slice %51 {offsets = [0, 0, 16], sizes = [2, 24, 8], strides = [1, 1, 1]} : vector<2x24x32xf32> to vector<2x24x8xf32>
    "tpu.trace_start"() <{level = 10 : i32, message = "bqd,bkd->bqk"}> : () -> ()
    %cst_36 = arith.constant dense<0.000000e+00> : vector<2x8x24xf32>
    %93 = tpu.matmul %91, %92, %cst_36 {dimension_numbers = #tpu.dot_dimension_numbers<[2], [2], [1], [1], [0, 0, 0, 1, 1, 1], [0], [0]>} : vector<2x8x8xf32>, vector<2x24x8xf32>, vector<2x8x24xf32> -> vector<2x8x24xf32>
    "tpu.trace_stop"() : () -> ()
    %cst_37 = arith.constant dense<0xFF800000> : vector<2x8xf32>
    %94 = vector.multi_reduction <maximumf>, %93, %cst_37 [2] : vector<2x8x24xf32> to vector<2x8xf32>
    %95 = vector.shape_cast %94 : vector<2x8xf32> to vector<2x8x1xf32>
    %96 = vector.broadcast %95 : vector<2x8x1xf32> to vector<2x8x24xf32>
    %97 = arith.subf %93, %96 : vector<2x8x24xf32>
    %98 = math.exp %97 : vector<2x8x24xf32>
    %cst_38 = arith.constant dense<0.000000e+00> : vector<2x8xf32>
    %99 = vector.multi_reduction <add>, %98, %cst_38 [2] : vector<2x8x24xf32> to vector<2x8xf32>
    %100 = vector.shape_cast %99 : vector<2x8xf32> to vector<2x8x1xf32>
    %101 = tpu.reciprocal %100 {approx = true} : vector<2x8x1xf32> -> vector<2x8x1xf32>
    %102 = arith.mulf %100, %101 : vector<2x8x1xf32>
    %cst_39 = arith.constant 2.000000e+00 : f32
    %103 = vector.broadcast %cst_39 : f32 to vector<2x8x1xf32>
    %104 = arith.subf %103, %102 : vector<2x8x1xf32>
    %105 = arith.mulf %101, %104 : vector<2x8x1xf32>
    %106 = vector.broadcast %105 : vector<2x8x1xf32> to vector<2x8x24xf32>
    %107 = arith.mulf %98, %106 : vector<2x8x24xf32>
    %108 = vector.extract_strided_slice %52 {offsets = [0, 0, 16], sizes = [2, 24, 8], strides = [1, 1, 1]} : vector<2x24x32xf32> to vector<2x24x8xf32>
    "tpu.trace_start"() <{level = 10 : i32, message = "bqk,bkd->bqd"}> : () -> ()
    %cst_40 = arith.constant dense<0.000000e+00> : vector<2x8x8xf32>
    %109 = tpu.matmul %107, %108, %cst_40 {dimension_numbers = #tpu.dot_dimension_numbers<[2], [1], [1], [2], [0, 0, 0, 1, 1, 2], [0], [0]>} : vector<2x8x24xf32>, vector<2x24x8xf32>, vector<2x8x8xf32> -> vector<2x8x8xf32>
    "tpu.trace_stop"() : () -> ()
    %110 = vector.extract_strided_slice %50 {offsets = [0, 0, 24], sizes = [2, 8, 8], strides = [1, 1, 1]} : vector<2x8x32xf32> to vector<2x8x8xf32>
    %111 = vector.extract_strided_slice %51 {offsets = [0, 0, 24], sizes = [2, 24, 8], strides = [1, 1, 1]} : vector<2x24x32xf32> to vector<2x24x8xf32>
    "tpu.trace_start"() <{level = 10 : i32, message = "bqd,bkd->bqk"}> : () -> ()
    %cst_41 = arith.constant dense<0.000000e+00> : vector<2x8x24xf32>
    %112 = tpu.matmul %110, %111, %cst_41 {dimension_numbers = #tpu.dot_dimension_numbers<[2], [2], [1], [1], [0, 0, 0, 1, 1, 1], [0], [0]>} : vector<2x8x8xf32>, vector<2x24x8xf32>, vector<2x8x24xf32> -> vector<2x8x24xf32>
    "tpu.trace_stop"() : () -> ()
    %cst_42 = arith.constant dense<0xFF800000> : vector<2x8xf32>
    %113 = vector.multi_reduction <maximumf>, %112, %cst_42 [2] : vector<2x8x24xf32> to vector<2x8xf32>
    %114 = vector.shape_cast %113 : vector<2x8xf32> to vector<2x8x1xf32>
    %115 = vector.broadcast %114 : vector<2x8x1xf32> to vector<2x8x24xf32>
    %116 = arith.subf %112, %115 : vector<2x8x24xf32>
    %117 = math.exp %116 : vector<2x8x24xf32>
    %cst_43 = arith.constant dense<0.000000e+00> : vector<2x8xf32>
    %118 = vector.multi_reduction <add>, %117, %cst_43 [2] : vector<2x8x24xf32> to vector<2x8xf32>
    %119 = vector.shape_cast %118 : vector<2x8xf32> to vector<2x8x1xf32>
    %120 = tpu.reciprocal %119 {approx = true} : vector<2x8x1xf32> -> vector<2x8x1xf32>
    %121 = arith.mulf %119, %120 : vector<2x8x1xf32>
    %cst_44 = arith.constant 2.000000e+00 : f32
    %122 = vector.broadcast %cst_44 : f32 to vector<2x8x1xf32>
    %123 = arith.subf %122, %121 : vector<2x8x1xf32>
    %124 = arith.mulf %120, %123 : vector<2x8x1xf32>
    %125 = vector.broadcast %124 : vector<2x8x1xf32> to vector<2x8x24xf32>
    %126 = arith.mulf %117, %125 : vector<2x8x24xf32>
    %127 = vector.extract_strided_slice %52 {offsets = [0, 0, 24], sizes = [2, 24, 8], strides = [1, 1, 1]} : vector<2x24x32xf32> to vector<2x24x8xf32>
    "tpu.trace_start"() <{level = 10 : i32, message = "bqk,bkd->bqd"}> : () -> ()
    %cst_45 = arith.constant dense<0.000000e+00> : vector<2x8x8xf32>
    %128 = tpu.matmul %126, %127, %cst_45 {dimension_numbers = #tpu.dot_dimension_numbers<[2], [1], [1], [2], [0, 0, 0, 1, 1, 2], [0], [0]>} : vector<2x8x24xf32>, vector<2x24x8xf32>, vector<2x8x8xf32> -> vector<2x8x8xf32>
    "tpu.trace_stop"() : () -> ()
    %129 = tpu.concatenate %71, %90, %109, %128 in 2 : vector<2x8x8xf32>, vector<2x8x8xf32>, vector<2x8x8xf32>, vector<2x8x8xf32> -> vector<2x8x32xf32>
    %130 = vector.shape_cast %129 : vector<2x8x32xf32> to vector<16x32xf32>
    %c0_46 = arith.constant 0 : index
    %c0_47 = arith.constant 0 : index
    %c0_48 = arith.constant 0 : index
    %131 = vector.load %arg10[%c0_46, %c0_47, %c0_48] : memref<1x32x32xf32, #tpu.memory_space<vmem>>, vector<1x32x32xf32>
    %132 = vector.shape_cast %131 : vector<1x32x32xf32> to vector<32x32xf32>
    %cst_49 = arith.constant dense<0.000000e+00> : vector<16x32xf32>
    %133 = tpu.matmul %130, %132, %cst_49 {dimension_numbers = #tpu.dot_dimension_numbers<[1], [0], [0], [1], [0, 0, 1, 1], [], []>} : vector<16x32xf32>, vector<32x32xf32>, vector<16x32xf32> -> vector<16x32xf32>
    %134 = arith.addf %14, %133 : vector<16x32xf32>
    %c0_50 = arith.constant 0 : index
    %c0_51 = arith.constant 0 : index
    %c0_52 = arith.constant 0 : index
    %135 = vector.load %arg11[%c0_50, %c0_51, %c0_52] : memref<1x1x32xf32, #tpu.memory_space<vmem>>, vector<1x1x32xf32>
    %136 = vector.shape_cast %135 : vector<1x1x32xf32> to vector<1x32xf32>
    %c0_53 = arith.constant 0 : index
    %c0_54 = arith.constant 0 : index
    %c0_55 = arith.constant 0 : index
    %137 = vector.load %arg12[%c0_53, %c0_54, %c0_55] : memref<1x1x32xf32, #tpu.memory_space<vmem>>, vector<1x1x32xf32>
    %138 = vector.shape_cast %137 : vector<1x1x32xf32> to vector<1x32xf32>
    %cst_56 = arith.constant dense<0.000000e+00> : vector<16xf32>
    %139 = vector.multi_reduction <add>, %134, %cst_56 [1] : vector<16x32xf32> to vector<16xf32>
    %140 = vector.shape_cast %139 : vector<16xf32> to vector<16x1xf32>
    %cst_57 = arith.constant 3.200000e+01 : f32
    %141 = vector.broadcast %cst_57 : f32 to vector<16x1xf32>
    %142 = arith.divf %140, %141 : vector<16x1xf32>
    %143 = vector.broadcast %142 : vector<16x1xf32> to vector<16x32xf32>
    %144 = arith.subf %134, %143 : vector<16x32xf32>
    %145 = arith.mulf %144, %144 : vector<16x32xf32>
    %cst_58 = arith.constant dense<0.000000e+00> : vector<16xf32>
    %146 = vector.multi_reduction <add>, %145, %cst_58 [1] : vector<16x32xf32> to vector<16xf32>
    %147 = vector.shape_cast %146 : vector<16xf32> to vector<16x1xf32>
    %cst_59 = arith.constant 3.200000e+01 : f32
    %148 = vector.broadcast %cst_59 : f32 to vector<16x1xf32>
    %149 = arith.divf %147, %148 : vector<16x1xf32>
    %150 = vector.broadcast %142 : vector<16x1xf32> to vector<16x32xf32>
    %151 = arith.subf %134, %150 : vector<16x32xf32>
    %cst_60 = arith.constant 9.99999974E-6 : f32
    %152 = vector.broadcast %cst_60 : f32 to vector<16x1xf32>
    %153 = arith.addf %149, %152 : vector<16x1xf32>
    %154 = math.rsqrt %153 : vector<16x1xf32>
    %155 = vector.broadcast %154 : vector<16x1xf32> to vector<16x32xf32>
    %156 = arith.mulf %151, %155 : vector<16x32xf32>
    %157 = vector.broadcast %136 : vector<1x32xf32> to vector<16x32xf32>
    %158 = arith.mulf %156, %157 : vector<16x32xf32>
    %159 = vector.broadcast %138 : vector<1x32xf32> to vector<16x32xf32>
    %160 = arith.addf %158, %159 : vector<16x32xf32>
    %c0_61 = arith.constant 0 : index
    %c0_62 = arith.constant 0 : index
    %c0_63 = arith.constant 0 : index
    %161 = vector.load %arg13[%c0_61, %c0_62, %c0_63] : memref<1x32x128xf32, #tpu.memory_space<vmem>>, vector<1x32x128xf32>
    %162 = vector.shape_cast %161 : vector<1x32x128xf32> to vector<32x128xf32>
    %cst_64 = arith.constant dense<0.000000e+00> : vector<16x128xf32>
    %163 = tpu.matmul %160, %162, %cst_64 {dimension_numbers = #tpu.dot_dimension_numbers<[1], [0], [0], [1], [0, 0, 1, 1], [], []>} : vector<16x32xf32>, vector<32x128xf32>, vector<16x128xf32> -> vector<16x128xf32>
    %cst_65 = arith.constant 5.000000e-01 : f32
    %164 = vector.broadcast %cst_65 : f32 to vector<16x128xf32>
    %165 = arith.mulf %164, %163 : vector<16x128xf32>
    %cst_66 = arith.constant 0.707106769 : f32
    %166 = vector.broadcast %cst_66 : f32 to vector<16x128xf32>
    %167 = arith.mulf %163, %166 : vector<16x128xf32>
    %cst_67 = arith.constant 0.000000e+00 : f32
    %168 = vector.broadcast %cst_67 : f32 to vector<16x128xf32>
    %169 = arith.cmpf oge, %167, %168 : vector<16x128xf32>
    %cst_68 = arith.constant 1.000000e+00 : f32
    %cst_69 = arith.constant -1.000000e+00 : f32
    %170 = vector.broadcast %cst_68 : f32 to vector<16x128xf32>
    %171 = vector.broadcast %cst_69 : f32 to vector<16x128xf32>
    %172 = arith.select %169, %170, %171 : vector<16x128xi1>, vector<16x128xf32>
    %173 = math.absf %167 : vector<16x128xf32>
    %cst_70 = arith.constant 0.327591091 : f32
    %174 = vector.broadcast %cst_70 : f32 to vector<16x128xf32>
    %175 = arith.mulf %174, %173 : vector<16x128xf32>
    %cst_71 = arith.constant 1.000000e+00 : f32
    %176 = vector.broadcast %cst_71 : f32 to vector<16x128xf32>
    %177 = arith.addf %176, %175 : vector<16x128xf32>
    %178 = tpu.reciprocal %177 {approx = true} : vector<16x128xf32> -> vector<16x128xf32>
    %179 = arith.mulf %177, %178 : vector<16x128xf32>
    %cst_72 = arith.constant 2.000000e+00 : f32
    %180 = vector.broadcast %cst_72 : f32 to vector<16x128xf32>
    %181 = arith.subf %180, %179 : vector<16x128xf32>
    %182 = arith.mulf %178, %181 : vector<16x128xf32>
    %cst_73 = arith.constant 1.06140542 : f32
    %183 = vector.broadcast %cst_73 : f32 to vector<16x128xf32>
    %184 = arith.mulf %182, %183 : vector<16x128xf32>
    %cst_74 = arith.constant -1.45315206 : f32
    %185 = vector.broadcast %cst_74 : f32 to vector<16x128xf32>
    %186 = arith.addf %185, %184 : vector<16x128xf32>
    %187 = arith.mulf %182, %186 : vector<16x128xf32>
    %cst_75 = arith.constant 1.42141378 : f32
    %188 = vector.broadcast %cst_75 : f32 to vector<16x128xf32>
    %189 = arith.addf %188, %187 : vector<16x128xf32>
    %190 = arith.mulf %182, %189 : vector<16x128xf32>
    %cst_76 = arith.constant -0.284496725 : f32
    %191 = vector.broadcast %cst_76 : f32 to vector<16x128xf32>
    %192 = arith.addf %191, %190 : vector<16x128xf32>
    %193 = arith.mulf %182, %192 : vector<16x128xf32>
    %cst_77 = arith.constant 0.254829586 : f32
    %194 = vector.broadcast %cst_77 : f32 to vector<16x128xf32>
    %195 = arith.addf %194, %193 : vector<16x128xf32>
    %196 = arith.mulf %182, %195 : vector<16x128xf32>
    %cst_78 = arith.constant 0.000000e+00 : f32
    %197 = vector.broadcast %cst_78 : f32 to vector<16x128xf32>
    %198 = arith.subf %197, %173 : vector<16x128xf32>
    %199 = arith.mulf %198, %173 : vector<16x128xf32>
    %200 = math.exp %199 : vector<16x128xf32>
    %201 = arith.mulf %196, %200 : vector<16x128xf32>
    %cst_79 = arith.constant 1.000000e+00 : f32
    %202 = vector.broadcast %cst_79 : f32 to vector<16x128xf32>
    %203 = arith.subf %202, %201 : vector<16x128xf32>
    %204 = arith.mulf %172, %203 : vector<16x128xf32>
    %cst_80 = arith.constant 1.000000e+00 : f32
    %205 = vector.broadcast %cst_80 : f32 to vector<16x128xf32>
    %206 = arith.addf %205, %204 : vector<16x128xf32>
    %207 = arith.mulf %165, %206 : vector<16x128xf32>
    %c0_81 = arith.constant 0 : index
    %c0_82 = arith.constant 0 : index
    %c0_83 = arith.constant 0 : index
    %208 = vector.load %arg14[%c0_81, %c0_82, %c0_83] : memref<1x128x32xf32, #tpu.memory_space<vmem>>, vector<1x128x32xf32>
    %209 = vector.shape_cast %208 : vector<1x128x32xf32> to vector<128x32xf32>
    %cst_84 = arith.constant dense<0.000000e+00> : vector<16x32xf32>
    %210 = tpu.matmul %207, %209, %cst_84 {dimension_numbers = #tpu.dot_dimension_numbers<[1], [0], [0], [1], [0, 0, 1, 1], [], []>} : vector<16x128xf32>, vector<128x32xf32>, vector<16x32xf32> -> vector<16x32xf32>
    %211 = arith.addf %134, %210 : vector<16x32xf32>
    %c0_85 = arith.constant 0 : index
    %c0_86 = arith.constant 0 : index
    %212 = vector.load %arg19[%c0_85, %c0_86] : memref<16x32xf32, #tpu.memory_space<vmem>>, vector<16x32xf32>
    tpu.vector_store %arg19[%c0_85, %c0_86], %211 {strides = array<i32>} : memref<16x32xf32, #tpu.memory_space<vmem>>, vector<16x32xf32>,
    %c1_i32 = arith.constant 1 : i32
    %213 = arith.cmpi eq, %arg1, %c1_i32 : i32
    %214 = arith.extui %213 : i1 to i32
    %c0_i32_87 = arith.constant 0 : i32
    %215 = arith.cmpi ne, %214, %c0_i32_87 : i32
    scf.if %215 {
      %c0_88 = arith.constant 0 : index
      %c0_89 = arith.constant 0 : index
      %216 = vector.load %arg15[%c0_88, %c0_89] : memref<1x32xf32, #tpu.memory_space<vmem>>, vector<1x32xf32>
      %c0_90 = arith.constant 0 : index
      %c0_91 = arith.constant 0 : index
      %217 = vector.load %arg16[%c0_90, %c0_91] : memref<1x32xf32, #tpu.memory_space<vmem>>, vector<1x32xf32>
      %cst_92 = arith.constant dense<0.000000e+00> : vector<16xf32>
      %218 = vector.multi_reduction <add>, %211, %cst_92 [1] : vector<16x32xf32> to vector<16xf32>
      %219 = vector.shape_cast %218 : vector<16xf32> to vector<16x1xf32>
      %cst_93 = arith.constant 3.200000e+01 : f32
      %220 = vector.broadcast %cst_93 : f32 to vector<16x1xf32>
      %221 = arith.divf %219, %220 : vector<16x1xf32>
      %222 = vector.broadcast %221 : vector<16x1xf32> to vector<16x32xf32>
      %223 = arith.subf %211, %222 : vector<16x32xf32>
      %224 = arith.mulf %223, %223 : vector<16x32xf32>
      %cst_94 = arith.constant dense<0.000000e+00> : vector<16xf32>
      %225 = vector.multi_reduction <add>, %224, %cst_94 [1] : vector<16x32xf32> to vector<16xf32>
      %226 = vector.shape_cast %225 : vector<16xf32> to vector<16x1xf32>
      %cst_95 = arith.constant 3.200000e+01 : f32
      %227 = vector.broadcast %cst_95 : f32 to vector<16x1xf32>
      %228 = arith.divf %226, %227 : vector<16x1xf32>
      %229 = vector.broadcast %221 : vector<16x1xf32> to vector<16x32xf32>
      %230 = arith.subf %211, %229 : vector<16x32xf32>
      %cst_96 = arith.constant 9.99999974E-6 : f32
      %231 = vector.broadcast %cst_96 : f32 to vector<16x1xf32>
      %232 = arith.addf %228, %231 : vector<16x1xf32>
      %233 = math.rsqrt %232 : vector<16x1xf32>
      %234 = vector.broadcast %233 : vector<16x1xf32> to vector<16x32xf32>
      %235 = arith.mulf %230, %234 : vector<16x32xf32>
      %236 = vector.broadcast %216 : vector<1x32xf32> to vector<16x32xf32>
      %237 = arith.mulf %235, %236 : vector<16x32xf32>
      %238 = vector.broadcast %217 : vector<1x32xf32> to vector<16x32xf32>
      %239 = arith.addf %237, %238 : vector<16x32xf32>
      %c0_97 = arith.constant 0 : index
      %c0_98 = arith.constant 0 : index
      %c0_99 = arith.constant 0 : index
      %240 = vector.load %arg17[%c0_97, %c0_98, %c0_99] : memref<1x16x32xf32, #tpu.memory_space<vmem>>, vector<1x16x32xf32>
      %241 = vector.shape_cast %240 : vector<1x16x32xf32> to vector<16x32xf32>
      %242 = vector.shape_cast %239 : vector<16x32xf32> to vector<1x16x32xf32>
      tpu.vector_store %arg17[%c0_97, %c0_98, %c0_99], %242 {strides = array<i32>} : memref<1x16x32xf32, #tpu.memory_space<vmem>>, vector<1x16x32xf32>,
    } else {
    }
    return
  }
  func.func @transform_0(%arg0: i32, %arg1: i32) -> (i32, i32, i32, i32) {
    %c0_i32 = arith.constant 0 : i32
    %c0_i32_0 = arith.constant 0 : i32
    %c0_i32_1 = arith.constant 0 : i32
    %c0_i32_2 = arith.constant 0 : i32
    return %arg0, %c0_i32, %c0_i32_0, %c0_i32_1 : i32, i32, i32, i32
  }
  func.func @transform_1(%arg0: i32, %arg1: i32) -> (i32, i32) {
    %c0_i32 = arith.constant 0 : i32
    %c0_i32_0 = arith.constant 0 : i32
    %c0_i32_1 = arith.constant 0 : i32
    return %c0_i32, %c0_i32_0 : i32, i32
  }
  func.func @transform_2(%arg0: i32, %arg1: i32) -> (i32, i32) {
    %c0_i32 = arith.constant 0 : i32
    %c0_i32_0 = arith.constant 0 : i32
    %c0_i32_1 = arith.constant 0 : i32
    return %c0_i32, %c0_i32_0 : i32, i32
  }
  func.func @transform_3(%arg0: i32, %arg1: i32) -> (i32, i32, i32) {
    %c0_i32 = arith.constant 0 : i32
    %c0_i32_0 = arith.constant 0 : i32
    %c0_i32_1 = arith.constant 0 : i32
    return %arg1, %c0_i32, %c0_i32_0 : i32, i32, i32
  }
  func.func @transform_4(%arg0: i32, %arg1: i32) -> (i32, i32, i32) {
    %c0_i32 = arith.constant 0 : i32
    %c0_i32_0 = arith.constant 0 : i32
    %c0_i32_1 = arith.constant 0 : i32
    return %arg1, %c0_i32, %c0_i32_0 : i32, i32, i32
  }
  func.func @transform_5(%arg0: i32, %arg1: i32) -> (i32, i32, i32) {
    %c0_i32 = arith.constant 0 : i32
    %c0_i32_0 = arith.constant 0 : i32
    %c0_i32_1 = arith.constant 0 : i32
    return %arg1, %c0_i32, %c0_i32_0 : i32, i32, i32
  }
  func.func @transform_6(%arg0: i32, %arg1: i32) -> (i32, i32, i32) {
    %c0_i32 = arith.constant 0 : i32
    %c0_i32_0 = arith.constant 0 : i32
    %c0_i32_1 = arith.constant 0 : i32
    return %arg1, %c0_i32, %c0_i32_0 : i32, i32, i32
  }
  func.func @transform_7(%arg0: i32, %arg1: i32) -> (i32, i32, i32) {
    %c0_i32 = arith.constant 0 : i32
    %c0_i32_0 = arith.constant 0 : i32
    %c0_i32_1 = arith.constant 0 : i32
    return %arg1, %c0_i32, %c0_i32_0 : i32, i32, i32
  }
  func.func @transform_8(%arg0: i32, %arg1: i32) -> (i32, i32, i32) {
    %c0_i32 = arith.constant 0 : i32
    %c0_i32_0 = arith.constant 0 : i32
    %c0_i32_1 = arith.constant 0 : i32
    return %arg1, %c0_i32, %c0_i32_0 : i32, i32, i32
  }
  func.func @transform_9(%arg0: i32, %arg1: i32) -> (i32, i32, i32) {
    %c0_i32 = arith.constant 0 : i32
    %c0_i32_0 = arith.constant 0 : i32
    %c0_i32_1 = arith.constant 0 : i32
    return %arg1, %c0_i32, %c0_i32_0 : i32, i32, i32
  }
  func.func @transform_10(%arg0: i32, %arg1: i32) -> (i32, i32, i32) {
    %c0_i32 = arith.constant 0 : i32
    %c0_i32_0 = arith.constant 0 : i32
    %c0_i32_1 = arith.constant 0 : i32
    return %arg1, %c0_i32, %c0_i32_0 : i32, i32, i32
  }
  func.func @transform_11(%arg0: i32, %arg1: i32) -> (i32, i32, i32) {
    %c0_i32 = arith.constant 0 : i32
    %c0_i32_0 = arith.constant 0 : i32
    %c0_i32_1 = arith.constant 0 : i32
    return %arg1, %c0_i32, %c0_i32_0 : i32, i32, i32
  }
  func.func @transform_12(%arg0: i32, %arg1: i32) -> (i32, i32, i32) {
    %c0_i32 = arith.constant 0 : i32
    %c0_i32_0 = arith.constant 0 : i32
    %c0_i32_1 = arith.constant 0 : i32
    return %arg1, %c0_i32, %c0_i32_0 : i32, i32, i32
  }
  func.func @transform_13(%arg0: i32, %arg1: i32) -> (i32, i32) {
    %c0_i32 = arith.constant 0 : i32
    %c0_i32_0 = arith.constant 0 : i32
    %c0_i32_1 = arith.constant 0 : i32
    return %c0_i32, %c0_i32_0 : i32, i32
  }
  func.func @transform_14(%arg0: i32, %arg1: i32) -> (i32, i32) {
    %c0_i32 = arith.constant 0 : i32
    %c0_i32_0 = arith.constant 0 : i32
    %c0_i32_1 = arith.constant 0 : i32
    return %c0_i32, %c0_i32_0 : i32, i32
  }
  func.func @transform_15(%arg0: i32, %arg1: i32) -> (i32, i32, i32) {
    %c0_i32 = arith.constant 0 : i32
    %c0_i32_0 = arith.constant 0 : i32
    %c0_i32_1 = arith.constant 0 : i32
    return %arg0, %c0_i32, %c0_i32_0 : i32, i32, i32
  }
}

</mosaic_0001>

<llo_original>
// kernel: perceiver_resampler_forward.1
$region0: #{perceiver_resampler_forward.1}
  #allocation0 [shape = 'u32[]', space=smem, size = 0x4, offset = 0x4, fixed_abs, tag = 'smem constant byte address 0x4 - core index']
  #allocation1 [shape = 'u32[144,128]{1,0:T(1,128)}', space=vmem, size = 0x12000, scoped, tag = 'internal scratch']
  #allocation2 [shape = 'f32[2,16,32]{2,1,0:T(8,128)}', space=vmem, size = 0x4000, scoped, tag = 'scratch operand']
  #allocation3 [shape = 'f32[16,32]{1,0:T(8,128)}', space=vmem, size = 0x2000, scoped, tag = 'scratch operand']
  %s0 = inlined_call_operand.vmem [shape: f32[2,2,16,32], index: 0, kind: input, shape index: {}]
  %s1 = inlined_call_operand.vmem [shape: f32[2,32], index: 1, kind: input, shape index: {}]
  %s2 = inlined_call_operand.vmem [shape: f32[8,32], index: 2, kind: input, shape index: {}]
  %s3 = inlined_call_operand.vmem [shape: f32[2,1,32], index: 3, kind: input, shape index: {}]
  %s4 = inlined_call_operand.vmem [shape: f32[2,1,32], index: 4, kind: input, shape index: {}]
  %s5 = inlined_call_operand.vmem [shape: f32[2,1,32], index: 5, kind: input, shape index: {}]
  %s6 = inlined_call_operand.vmem [shape: f32[2,1,32], index: 6, kind: input, shape index: {}]
  %s7 = inlined_call_operand.vmem [shape: f32[2,32,96], index: 7, kind: input, shape index: {}]
  %s8 = inlined_call_operand.vmem [shape: f32[2,32,32], index: 8, kind: input, shape index: {}]
  %s9 = inlined_call_operand.vmem [shape: f32[2,1,32], index: 9, kind: input, shape index: {}]
  %s10 = inlined_call_operand.vmem [shape: f32[2,1,32], index: 10, kind: input, shape index: {}]
  %s11 = inlined_call_operand.vmem [shape: f32[2,32,128], index: 11, kind: input, shape index: {}]
  %s12 = inlined_call_operand.vmem [shape: f32[2,128,32], index: 12, kind: input, shape index: {}]
  %s13 = inlined_call_operand.vmem [shape: f32[1,32], index: 13, kind: input, shape index: {}]
  %s14 = inlined_call_operand.vmem [shape: f32[1,32], index: 14, kind: input, shape index: {}]
  %s15 = inlined_call_operand.hbm [shape: f32[2,16,32], index: 15, kind: output, shape index: {}]
  %s16 = sld [smem:[#allocation0]]
  $region101: #{perceiver_resampler_forward.1} parent=0
    _
  %s18 = ssub.s32 1, %s16
  %s19 = scalar_select 0, %s18, %s16
  $region1: #{perceiver_resampler_forward.1} parent=0
    #allocation4 [shape = 'u8[16384]{0}', space=vmem, size = 0x4000, scoped, tag = 'output window, operand 0']
    #allocation5 [shape = 's32[2]{0}', space=sflag, size = 0x8, scoped, tag = 'scoped memory for perceiver_resampler_forward.1']
    %20 = vsyncpa [#allocation5], 0
    %s21 = scalar_lea.sflag [#allocation5], 1
    %22 = vsyncpa %s21, 0
    loop: start=0, step=1, limit=6
    $region2: #{perceiver_resampler_forward.1} parent=1 // loop_pre_header
      _
    $region3: #{perceiver_resampler_forward.1} parent=1 // loop_header
      %s24 = sphi 0, %s28
      %p25 = scmp.ge.s32.totalorder %s24, 6
      %s31 = sphi 0, %s43
      %s32 = sphi 0, %s39
      %s33 = sphi 0, %s31
      %s34 = sphi 0, %s32
      %s35 = sphi 0, %s33
      %s36 = sphi 0, %s34
      %s46 = sphi 0, %s48
      %s49 = sphi 0, %s46
      %s50 = sphi 0, %s49
      %s66 = sphi 0, %s50
      %s70 = sphi 0, %s70
      %s72 = sphi 0, %s70
      %s73 = sphi 0, %s72
      %s87 = sphi 0, %s73
      %s91 = sphi 0, %s91
      %s93 = sphi 0, %s91
      %s94 = sphi 0, %s93
      %s108 = sphi 0, %s94
      %s114 = sphi 0, %s116
      %s117 = sphi 0, %s114
      %s118 = sphi 0, %s117
      %s134 = sphi 0, %s118
      %s140 = sphi 0, %s142
      %s143 = sphi 0, %s140
      %s144 = sphi 0, %s143
      %s160 = sphi 0, %s144
      %s166 = sphi 0, %s168
      %s169 = sphi 0, %s166
      %s170 = sphi 0, %s169
      %s186 = sphi 0, %s170
      %s192 = sphi 0, %s194
      %s195 = sphi 0, %s192
      %s196 = sphi 0, %s195
      %s212 = sphi 0, %s196
      %s218 = sphi 0, %s220
      %s221 = sphi 0, %s218
      %s222 = sphi 0, %s221
      %s238 = sphi 0, %s222
      %s244 = sphi 0, %s246
      %s247 = sphi 0, %s244
      %s248 = sphi 0, %s247
      %s264 = sphi 0, %s248
      %s270 = sphi 0, %s272
      %s273 = sphi 0, %s270
      %s274 = sphi 0, %s273
      %s290 = sphi 0, %s274
      %s296 = sphi 0, %s298
      %s299 = sphi 0, %s296
      %s300 = sphi 0, %s299
      %s316 = sphi 0, %s300
      %s322 = sphi 0, %s324
      %s325 = sphi 0, %s322
      %s326 = sphi 0, %s325
      %s342 = sphi 0, %s326
      %s348 = sphi 0, %s350
      %s351 = sphi 0, %s348
      %s352 = sphi 0, %s351
      %s368 = sphi 0, %s352
      %s372 = sphi 0, %s372
      %s374 = sphi 0, %s372
      %s375 = sphi 0, %s374
      %s389 = sphi 0, %s375
      %s393 = sphi 0, %s393
      %s395 = sphi 0, %s393
      %s396 = sphi 0, %s395
      %s410 = sphi 0, %s396
      %s416 = sphi 0, %s418
      %s419 = sphi 0, %s416
      %s420 = sphi 0, %s419
      %s436 = sphi 0, %s420
    $region4: #{perceiver_resampler_forward.1} parent=1 // loop_header_branch
      %27 = sbr.rel (%p25) target = $region8
    $region5: #{perceiver_resampler_forward.1} parent=1 // loop_body
      %s29 = ssub.s32 %s24, 1
      %s30 = ssub.s32 %s24, 2
      %s37 = sadd.s32 1, %s32
      %p38 = scmp.ge.s32.totalorder %s37, 2
      %s39 = scalar_select %p38, 0, %s37
      %s40 = sadd.s32 1, %s31
      %s41 = scalar_select %p38, %s40, %s31
      %p42 = scmp.ge.s32.totalorder %s41, 2
      %s43 = scalar_select %p42, 0, %s41
      %s44 = ssub.s32 %s31, %s43
      %p45 = scmp.eq.s32.totalorder %s44, 0
      %s47 = sadd.s32 %s46, 1
      %s48 = scalar_select %p45, %s46, %s47
      %p51 = pneg %p45
      %p52 = scmp.eq.s32.totalorder %s24, 3
      %p53 = por %p51, %p52
      %p54 = scmp.ne.s32.totalorder %s46, %s49
      %p55 = scmp.eq.s32.totalorder %s24, 0
      %p56 = por %p54, %p55
      %p57 = scmp.ne.s32.totalorder %s46, %s49
      %p58 = scmp.eq.s32.totalorder %s29, 3
      %p59 = por %p57, %p58
      %p60 = scmp.ne.s32.totalorder %s49, %s50
      %p61 = scmp.eq.s32.totalorder %s29, 0
      %p62 = por %p60, %p61
      %p63 = scmp.ne.s32.totalorder %s49, %s50
      %p64 = scmp.eq.s32.totalorder %s30, 3
      %p65 = por %p63, %p64
      %p67 = scmp.ne.s32.totalorder %s50, %s66
      %p68 = scmp.eq.s32.totalorder %s30, 0
      %p69 = por %p67, %p68
      %s71 = sadd.s32 %s70, 1
      %p74 = scmp.eq.s32.totalorder %s24, 3
      %p75 = scmp.ne.s32.totalorder %s70, %s72
      %p76 = scmp.eq.s32.totalorder %s24, 0
      %p77 = por %p75, %p76
      %p78 = scmp.ne.s32.totalorder %s70, %s72
      %p79 = scmp.eq.s32.totalorder %s29, 3
      %p80 = por %p78, %p79
      %p81 = scmp.ne.s32.totalorder %s72, %s73
      %p82 = scmp.eq.s32.totalorder %s29, 0
      %p83 = por %p81, %p82
      %p84 = scmp.ne.s32.totalorder %s72, %s73
      %p85 = scmp.eq.s32.totalorder %s30, 3
      %p86 = por %p84, %p85
      %p88 = scmp.ne.s32.totalorder %s73, %s87
      %p89 = scmp.eq.s32.totalorder %s30, 0
      %p90 = por %p88, %p89
      %s92 = sadd.s32 %s91, 1
      %p95 = scmp.eq.s32.totalorder %s24, 3
      %p96 = scmp.ne.s32.totalorder %s91, %s93
      %p97 = scmp.eq.s32.totalorder %s24, 0
      %p98 = por %p96, %p97
      %p99 = scmp.ne.s32.totalorder %s91, %s93
      %p100 = scmp.eq.s32.totalorder %s29, 3
      %p101 = por %p99, %p100
      %p102 = scmp.ne.s32.totalorder %s93, %s94
      %p103 = scmp.eq.s32.totalorder %s29, 0
      %p104 = por %p102, %p103
      %p105 = scmp.ne.s32.totalorder %s93, %s94
      %p106 = scmp.eq.s32.totalorder %s30, 3
      %p107 = por %p105, %p106
      %p109 = scmp.ne.s32.totalorder %s94, %s108
      %p110 = scmp.eq.s32.totalorder %s30, 0
      %p111 = por %p109, %p110
      %s112 = ssub.s32 %s32, %s39
      %p113 = scmp.eq.s32.totalorder %s112, 0
      %s115 = sadd.s32 %s114, 1
      %s116 = scalar_select %p113, %s114, %s115
      %p119 = pneg %p113
      %p120 = scmp.eq.s32.totalorder %s24, 3
      %p121 = por %p119, %p120
      %p122 = scmp.ne.s32.totalorder %s114, %s117
      %p123 = scmp.eq.s32.totalorder %s24, 0
      %p124 = por %p122, %p123
      %p125 = scmp.ne.s32.totalorder %s114, %s117
      %p126 = scmp.eq.s32.totalorder %s29, 3
      %p127 = por %p125, %p126
      %p128 = scmp.ne.s32.totalorder %s117, %s118
      %p129 = scmp.eq.s32.totalorder %s29, 0
      %p130 = por %p128, %p129
      %p131 = scmp.ne.s32.totalorder %s117, %s118
      %p132 = scmp.eq.s32.totalorder %s30, 3
      %p133 = por %p131, %p132
      %p135 = scmp.ne.s32.totalorder %s118, %s134
      %p136 = scmp.eq.s32.totalorder %s30, 0
      %p137 = por %p135, %p136
      %s138 = ssub.s32 %s32, %s39
      %p139 = scmp.eq.s32.totalorder %s138, 0
      %s141 = sadd.s32 %s140, 1
      %s142 = scalar_select %p139, %s140, %s141
      %p145 = pneg %p139
      %p146 = scmp.eq.s32.totalorder %s24, 3
      %p147 = por %p145, %p146
      %p148 = scmp.ne.s32.totalorder %s140, %s143
      %p149 = scmp.eq.s32.totalorder %s24, 0
      %p150 = por %p148, %p149
      %p151 = scmp.ne.s32.totalorder %s140, %s143
      %p152 = scmp.eq.s32.totalorder %s29, 3
      %p153 = por %p151, %p152
      %p154 = scmp.ne.s32.totalorder %s143, %s144
      %p155 = scmp.eq.s32.totalorder %s29, 0
      %p156 = por %p154, %p155
      %p157 = scmp.ne.s32.totalorder %s143, %s144
      %p158 = scmp.eq.s32.totalorder %s30, 3
      %p159 = por %p157, %p158
      %p161 = scmp.ne.s32.totalorder %s144, %s160
      %p162 = scmp.eq.s32.totalorder %s30, 0
      %p163 = por %p161, %p162
      %s164 = ssub.s32 %s32, %s39
      %p165 = scmp.eq.s32.totalorder %s164, 0
      %s167 = sadd.s32 %s166, 1
      %s168 = scalar_select %p165, %s166, %s167
      %p171 = pneg %p165
      %p172 = scmp.eq.s32.totalorder %s24, 3
      %p173 = por %p171, %p172
      %p174 = scmp.ne.s32.totalorder %s166, %s169
      %p175 = scmp.eq.s32.totalorder %s24, 0
      %p176 = por %p174, %p175
      %p177 = scmp.ne.s32.totalorder %s166, %s169
      %p178 = scmp.eq.s32.totalorder %s29, 3
      %p179 = por %p177, %p178
      %p180 = scmp.ne.s32.totalorder %s169, %s170
      %p181 = scmp.eq.s32.totalorder %s29, 0
      %p182 = por %p180, %p181
      %p183 = scmp.ne.s32.totalorder %s169, %s170
      %p184 = scmp.eq.s32.totalorder %s30, 3
      %p185 = por %p183, %p184
      %p187 = scmp.ne.s32.totalorder %s170, %s186
      %p188 = scmp.eq.s32.totalorder %s30, 0
      %p189 = por %p187, %p188
      %s190 = ssub.s32 %s32, %s39
      %p191 = scmp.eq.s32.totalorder %s190, 0
      %s193 = sadd.s32 %s192, 1
      %s194 = scalar_select %p191, %s192, %s193
      %p197 = pneg %p191
      %p198 = scmp.eq.s32.totalorder %s24, 3
      %p199 = por %p197, %p198
      %p200 = scmp.ne.s32.totalorder %s192, %s195
      %p201 = scmp.eq.s32.totalorder %s24, 0
      %p202 = por %p200, %p201
      %p203 = scmp.ne.s32.totalorder %s192, %s195
      %p204 = scmp.eq.s32.totalorder %s29, 3
      %p205 = por %p203, %p204
      %p206 = scmp.ne.s32.totalorder %s195, %s196
      %p207 = scmp.eq.s32.totalorder %s29, 0
      %p208 = por %p206, %p207
      %p209 = scmp.ne.s32.totalorder %s195, %s196
      %p210 = scmp.eq.s32.totalorder %s30, 3
      %p211 = por %p209, %p210
      %p213 = scmp.ne.s32.totalorder %s196, %s212
      %p214 = scmp.eq.s32.totalorder %s30, 0
      %p215 = por %p213, %p214
      %s216 = ssub.s32 %s32, %s39
      %p217 = scmp.eq.s32.totalorder %s216, 0
      %s219 = sadd.s32 %s218, 1
      %s220 = scalar_select %p217, %s218, %s219
      %p223 = pneg %p217
      %p224 = scmp.eq.s32.totalorder %s24, 3
      %p225 = por %p223, %p224
      %p226 = scmp.ne.s32.totalorder %s218, %s221
      %p227 = scmp.eq.s32.totalorder %s24, 0
      %p228 = por %p226, %p227
      %p229 = scmp.ne.s32.totalorder %s218, %s221
      %p230 = scmp.eq.s32.totalorder %s29, 3
      %p231 = por %p229, %p230
      %p232 = scmp.ne.s32.totalorder %s221, %s222
      %p233 = scmp.eq.s32.totalorder %s29, 0
      %p234 = por %p232, %p233
      %p235 = scmp.ne.s32.totalorder %s221, %s222
      %p236 = scmp.eq.s32.totalorder %s30, 3
      %p237 = por %p235, %p236
      %p239 = scmp.ne.s32.totalorder %s222, %s238
      %p240 = scmp.eq.s32.totalorder %s30, 0
      %p241 = por %p239, %p240
      %s242 = ssub.s32 %s32, %s39
      %p243 = scmp.eq.s32.totalorder %s242, 0
      %s245 = sadd.s32 %s244, 1
      %s246 = scalar_select %p243, %s244, %s245
      %p249 = pneg %p243
      %p250 = scmp.eq.s32.totalorder %s24, 3
      %p251 = por %p249, %p250
      %p252 = scmp.ne.s32.totalorder %s244, %s247
      %p253 = scmp.eq.s32.totalorder %s24, 0
      %p254 = por %p252, %p253
      %p255 = scmp.ne.s32.totalorder %s244, %s247
      %p256 = scmp.eq.s32.totalorder %s29, 3
      %p257 = por %p255, %p256
      %p258 = scmp.ne.s32.totalorder %s247, %s248
      %p259 = scmp.eq.s32.totalorder %s29, 0
      %p260 = por %p258, %p259
      %p261 = scmp.ne.s32.totalorder %s247, %s248
      %p262 = scmp.eq.s32.totalorder %s30, 3
      %p263 = por %p261, %p262
      %p265 = scmp.ne.s32.totalorder %s248, %s264
      %p266 = scmp.eq.s32.totalorder %s30, 0
      %p267 = por %p265, %p266
      %s268 = ssub.s32 %s32, %s39
      %p269 = scmp.eq.s32.totalorder %s268, 0
      %s271 = sadd.s32 %s270, 1
      %s272 = scalar_select %p269, %s270, %s271
      %p275 = pneg %p269
      %p276 = scmp.eq.s32.totalorder %s24, 3
      %p277 = por %p275, %p276
      %p278 = scmp.ne.s32.totalorder %s270, %s273
      %p279 = scmp.eq.s32.totalorder %s24, 0
      %p280 = por %p278, %p279
      %p281 = scmp.ne.s32.totalorder %s270, %s273
      %p282 = scmp.eq.s32.totalorder %s29, 3
      %p283 = por %p281, %p282
      %p284 = scmp.ne.s32.totalorder %s273, %s274
      %p285 = scmp.eq.s32.totalorder %s29, 0
      %p286 = por %p284, %p285
      %p287 = scmp.ne.s32.totalorder %s273, %s274
      %p288 = scmp.eq.s32.totalorder %s30, 3
      %p289 = por %p287, %p288
      %p291 = scmp.ne.s32.totalorder %s274, %s290
      %p292 = scmp.eq.s32.totalorder %s30, 0
      %p293 = por %p291, %p292
      %s294 = ssub.s32 %s32, %s39
      %p295 = scmp.eq.s32.totalorder %s294, 0
      %s297 = sadd.s32 %s296, 1
      %s298 = scalar_select %p295, %s296, %s297
      %p301 = pneg %p295
      %p302 = scmp.eq.s32.totalorder %s24, 3
      %p303 = por %p301, %p302
      %p304 = scmp.ne.s32.totalorder %s296, %s299
      %p305 = scmp.eq.s32.totalorder %s24, 0
      %p306 = por %p304, %p305
      %p307 = scmp.ne.s32.totalorder %s296, %s299
      %p308 = scmp.eq.s32.totalorder %s29, 3
      %p309 = por %p307, %p308
      %p310 = scmp.ne.s32.totalorder %s299, %s300
      %p311 = scmp.eq.s32.totalorder %s29, 0
      %p312 = por %p310, %p311
      %p313 = scmp.ne.s32.totalorder %s299, %s300
      %p314 = scmp.eq.s32.totalorder %s30, 3
      %p315 = por %p313, %p314
      %p317 = scmp.ne.s32.totalorder %s300, %s316
      %p318 = scmp.eq.s32.totalorder %s30, 0
      %p319 = por %p317, %p318
      %s320 = ssub.s32 %s32, %s39
      %p321 = scmp.eq.s32.totalorder %s320, 0
      %s323 = sadd.s32 %s322, 1
      %s324 = scalar_select %p321, %s322, %s323
      %p327 = pneg %p321
      %p328 = scmp.eq.s32.totalorder %s24, 3
      %p329 = por %p327, %p328
      %p330 = scmp.ne.s32.totalorder %s322, %s325
      %p331 = scmp.eq.s32.totalorder %s24, 0
      %p332 = por %p330, %p331
      %p333 = scmp.ne.s32.totalorder %s322, %s325
      %p334 = scmp.eq.s32.totalorder %s29, 3
      %p335 = por %p333, %p334
      %p336 = scmp.ne.s32.totalorder %s325, %s326
      %p337 = scmp.eq.s32.totalorder %s29, 0
      %p338 = por %p336, %p337
      %p339 = scmp.ne.s32.totalorder %s325, %s326
      %p340 = scmp.eq.s32.totalorder %s30, 3
      %p341 = por %p339, %p340
      %p343 = scmp.ne.s32.totalorder %s326, %s342
      %p344 = scmp.eq.s32.totalorder %s30, 0
      %p345 = por %p343, %p344
      %s346 = ssub.s32 %s32, %s39
      %p347 = scmp.eq.s32.totalorder %s346, 0
      %s349 = sadd.s32 %s348, 1
      %s350 = scalar_select %p347, %s348, %s349
      %p353 = pneg %p347
      %p354 = scmp.eq.s32.totalorder %s24, 3
      %p355 = por %p353, %p354
      %p356 = scmp.ne.s32.totalorder %s348, %s351
      %p357 = scmp.eq.s32.totalorder %s24, 0
      %p358 = por %p356, %p357
      %p359 = scmp.ne.s32.totalorder %s348, %s351
      %p360 = scmp.eq.s32.totalorder %s29, 3
      %p361 = por %p359, %p360
      %p362 = scmp.ne.s32.totalorder %s351, %s352
      %p363 = scmp.eq.s32.totalorder %s29, 0
      %p364 = por %p362, %p363
      %p365 = scmp.ne.s32.totalorder %s351, %s352
      %p366 = scmp.eq.s32.totalorder %s30, 3
      %p367 = por %p365, %p366
      %p369 = scmp.ne.s32.totalorder %s352, %s368
      %p370 = scmp.eq.s32.totalorder %s30, 0
      %p371 = por %p369, %p370
      %s373 = sadd.s32 %s372, 1
      %p376 = scmp.eq.s32.totalorder %s24, 3
      %p377 = scmp.ne.s32.totalorder %s372, %s374
      %p378 = scmp.eq.s32.totalorder %s24, 0
      %p379 = por %p377, %p378
      %p380 = scmp.ne.s32.totalorder %s372, %s374
      %p381 = scmp.eq.s32.totalorder %s29, 3
      %p382 = por %p380, %p381
      %p383 = scmp.ne.s32.totalorder %s374, %s375
      %p384 = scmp.eq.s32.totalorder %s29, 0
      %p385 = por %p383, %p384
      %p386 = scmp.ne.s32.totalorder %s374, %s375
      %p387 = scmp.eq.s32.totalorder %s30, 3
      %p388 = por %p386, %p387
      %p390 = scmp.ne.s32.totalorder %s375, %s389
      %p391 = scmp.eq.s32.totalorder %s30, 0
      %p392 = por %p390, %p391
      %s394 = sadd.s32 %s393, 1
      %p397 = scmp.eq.s32.totalorder %s24, 3
      %p398 = scmp.ne.s32.totalorder %s393, %s395
      %p399 = scmp.eq.s32.totalorder %s24, 0
      %p400 = por %p398, %p399
      %p401 = scmp.ne.s32.totalorder %s393, %s395
      %p402 = scmp.eq.s32.totalorder %s29, 3
      %p403 = por %p401, %p402
      %p404 = scmp.ne.s32.totalorder %s395, %s396
      %p405 = scmp.eq.s32.totalorder %s29, 0
      %p406 = por %p404, %p405
      %p407 = scmp.ne.s32.totalorder %s395, %s396
      %p408 = scmp.eq.s32.totalorder %s30, 3
      %p409 = por %p407, %p408
      %p411 = scmp.ne.s32.totalorder %s396, %s410
      %p412 = scmp.eq.s32.totalorder %s30, 0
      %p413 = por %p411, %p412
      %s414 = ssub.s32 %s31, %s43
      %p415 = scmp.eq.s32.totalorder %s414, 0
      %s417 = sadd.s32 %s416, 1
      %s418 = scalar_select %p415, %s416, %s417
      %p421 = pneg %p415
      %p422 = scmp.eq.s32.totalorder %s24, 3
      %p423 = por %p421, %p422
      %p424 = scmp.ne.s32.totalorder %s416, %s419
      %p425 = scmp.eq.s32.totalorder %s24, 0
      %p426 = por %p424, %p425
      %p427 = scmp.ne.s32.totalorder %s416, %s419
      %p428 = scmp.eq.s32.totalorder %s29, 3
      %p429 = por %p427, %p428
      %p430 = scmp.ne.s32.totalorder %s419, %s420
      %p431 = scmp.eq.s32.totalorder %s29, 0
      %p432 = por %p430, %p431
      %p433 = scmp.ne.s32.totalorder %s419, %s420
      %p434 = scmp.eq.s32.totalorder %s30, 3
      %p435 = por %p433, %p434
      %p437 = scmp.ne.s32.totalorder %s420, %s436
      %p438 = scmp.eq.s32.totalorder %s30, 0
      %p439 = por %p437, %p438
      %p440 = scmp.le.s32.totalorder 1, %s24
      %p441 = scmp.lt.s32.totalorder %s24, 5
      %p442 = pnand %p440, %p441
      %p443 = pneg %p442
      // Predicated region
      $region9: #{perceiver_resampler_forward.1} parent=5 // pred_check
        _
      $region10: #{perceiver_resampler_forward.1} parent=5 // pred_check_branch
        %445 = sbr.rel (%p442) target = $region12
      $region11: #{perceiver_resampler_forward.1} parent=5 // pred_region
        %s446 = ssub.s32 %s24, 1
        // Predicated region
        $region13: #{perceiver_resampler_forward.1} parent=11 // pred_check
          %p447 = pneg %p83
        $region14: #{perceiver_resampler_forward.1} parent=11 // pred_check_branch
          %449 = sbr.rel (%p447) target = $region16
        $region15: #{perceiver_resampler_forward.1} parent=11 // pred_region
          _
        $region16: #{perceiver_resampler_forward.1} parent=11 // pred_fallthru
          _
        // Predicated region
        $region17: #{perceiver_resampler_forward.1} parent=11 // pred_check
          %p450 = pneg %p104
        $region18: #{perceiver_resampler_forward.1} parent=11 // pred_check_branch
          %452 = sbr.rel (%p450) target = $region20
        $region19: #{perceiver_resampler_forward.1} parent=11 // pred_region
          _
        $region20: #{perceiver_resampler_forward.1} parent=11 // pred_fallthru
          _
        // Predicated region
        $region21: #{perceiver_resampler_forward.1} parent=11 // pred_check
          %p453 = pneg %p385
        $region22: #{perceiver_resampler_forward.1} parent=11 // pred_check_branch
          %455 = sbr.rel (%p453) target = $region24
        $region23: #{perceiver_resampler_forward.1} parent=11 // pred_region
          _
        $region24: #{perceiver_resampler_forward.1} parent=11 // pred_fallthru
          _
        // Predicated region
        $region25: #{perceiver_resampler_forward.1} parent=11 // pred_check
          %p456 = pneg %p406
        $region26: #{perceiver_resampler_forward.1} parent=11 // pred_check_branch
          %458 = sbr.rel (%p456) target = $region28
        $region27: #{perceiver_resampler_forward.1} parent=11 // pred_region
          _
        $region28: #{perceiver_resampler_forward.1} parent=11 // pred_fallthru
          _
      $region12: #{perceiver_resampler_forward.1} parent=5 // pred_fallthru
        _
      %p459 = scmp.lt.s32.totalorder %s24, 4
      // Predicated region
      $region29: #{perceiver_resampler_forward.1} parent=5 // pred_check
        %p460 = pneg %p459
      $region30: #{perceiver_resampler_forward.1} parent=5 // pred_check_branch
        %462 = sbr.rel (%p460) target = $region32
      $region31: #{perceiver_resampler_forward.1} parent=5 // pred_region
        // Predicated region
        $region33: #{perceiver_resampler_forward.1} parent=31 // pred_check
          %p463 = pneg %p56
        $region34: #{perceiver_resampler_forward.1} parent=31 // pred_check_branch
          %465 = sbr.rel (%p463) target = $region36
        $region35: #{perceiver_resampler_forward.1} parent=31 // pred_region
          %p466 = scmp.lt.s32.totalorder %s31, 1
          %s467 = scalar_select %p466, %s31, 1
          %s468 = smul.addr %s467, 4
          %s469 = smul.addr %s468, 8
          %s470 = scalar_lea.vmem %s0, %s469
        $region36: #{perceiver_resampler_forward.1} parent=31 // pred_fallthru
          _
        // Predicated region
        $region37: #{perceiver_resampler_forward.1} parent=31 // pred_check
          %p471 = pneg %p124
        $region38: #{perceiver_resampler_forward.1} parent=31 // pred_check_branch
          %473 = sbr.rel (%p471) target = $region40
        $region39: #{perceiver_resampler_forward.1} parent=31 // pred_region
          %p474 = scmp.lt.s32.totalorder %s32, 1
          %s475 = scalar_select %p474, %s32, 1
          %s476 = scalar_lea.vmem %s3, %s475
        $region40: #{perceiver_resampler_forward.1} parent=31 // pred_fallthru
          _
        // Predicated region
        $region41: #{perceiver_resampler_forward.1} parent=31 // pred_check
          %p477 = pneg %p150
        $region42: #{perceiver_resampler_forward.1} parent=31 // pred_check_branch
          %479 = sbr.rel (%p477) target = $region44
        $region43: #{perceiver_resampler_forward.1} parent=31 // pred_region
          %p480 = scmp.lt.s32.totalorder %s32, 1
          %s481 = scalar_select %p480, %s32, 1
          %s482 = scalar_lea.vmem %s4, %s481
        $region44: #{perceiver_resampler_forward.1} parent=31 // pred_fallthru
          _
        // Predicated region
        $region45: #{perceiver_resampler_forward.1} parent=31 // pred_check
          %p483 = pneg %p176
        $region46: #{perceiver_resampler_forward.1} parent=31 // pred_check_branch
          %485 = sbr.rel (%p483) target = $region48
        $region47: #{perceiver_resampler_forward.1} parent=31 // pred_region
          %p486 = scmp.lt.s32.totalorder %s32, 1
          %s487 = scalar_select %p486, %s32, 1
          %s488 = scalar_lea.vmem %s5, %s487
        $region48: #{perceiver_resampler_forward.1} parent=31 // pred_fallthru
          _
        // Predicated region
        $region49: #{perceiver_resampler_forward.1} parent=31 // pred_check
          %p489 = pneg %p202
        $region50: #{perceiver_resampler_forward.1} parent=31 // pred_check_branch
          %491 = sbr.rel (%p489) target = $region52
        $region51: #{perceiver_resampler_forward.1} parent=31 // pred_region
          %p492 = scmp.lt.s32.totalorder %s32, 1
          %s493 = scalar_select %p492, %s32, 1
          %s494 = scalar_lea.vmem %s6, %s493
        $region52: #{perceiver_resampler_forward.1} parent=31 // pred_fallthru
          _
        // Predicated region
        $region53: #{perceiver_resampler_forward.1} parent=31 // pred_check
          %p495 = pneg %p228
        $region54: #{perceiver_resampler_forward.1} parent=31 // pred_check_branch
          %497 = sbr.rel (%p495) target = $region56
        $region55: #{perceiver_resampler_forward.1} parent=31 // pred_region
          %p498 = scmp.lt.s32.totalorder %s32, 1
          %s499 = scalar_select %p498, %s32, 1
          %s500 = smul.addr %s499, 4
          %s501 = smul.addr %s500, 8
          %s502 = scalar_lea.vmem %s7, %s501
        $region56: #{perceiver_resampler_forward.1} parent=31 // pred_fallthru
          _
        // Predicated region
        $region57: #{perceiver_resampler_forward.1} parent=31 // pred_check
          %p503 = pneg %p254
        $region58: #{perceiver_resampler_forward.1} parent=31 // pred_check_branch
          %505 = sbr.rel (%p503) target = $region60
        $region59: #{perceiver_resampler_forward.1} parent=31 // pred_region
          %p506 = scmp.lt.s32.totalorder %s32, 1
          %s507 = scalar_select %p506, %s32, 1
          %s508 = smul.addr %s507, 4
          %s509 = smul.addr %s508, 8
          %s510 = scalar_lea.vmem %s8, %s509
        $region60: #{perceiver_resampler_forward.1} parent=31 // pred_fallthru
          _
        // Predicated region
        $region61: #{perceiver_resampler_forward.1} parent=31 // pred_check
          %p511 = pneg %p280
        $region62: #{perceiver_resampler_forward.1} parent=31 // pred_check_branch
          %513 = sbr.rel (%p511) target = $region64
        $region63: #{perceiver_resampler_forward.1} parent=31 // pred_region
          %p514 = scmp.lt.s32.totalorder %s32, 1
          %s515 = scalar_select %p514, %s32, 1
          %s516 = scalar_lea.vmem %s9, %s515
        $region64: #{perceiver_resampler_forward.1} parent=31 // pred_fallthru
          _
        // Predicated region
        $region65: #{perceiver_resampler_forward.1} parent=31 // pred_check
          %p517 = pneg %p306
        $region66: #{perceiver_resampler_forward.1} parent=31 // pred_check_branch
          %519 = sbr.rel (%p517) target = $region68
        $region67: #{perceiver_resampler_forward.1} parent=31 // pred_region
          %p520 = scmp.lt.s32.totalorder %s32, 1
          %s521 = scalar_select %p520, %s32, 1
          %s522 = scalar_lea.vmem %s10, %s521
        $region68: #{perceiver_resampler_forward.1} parent=31 // pred_fallthru
          _
        // Predicated region
        $region69: #{perceiver_resampler_forward.1} parent=31 // pred_check
          %p523 = pneg %p332
        $region70: #{perceiver_resampler_forward.1} parent=31 // pred_check_branch
          %525 = sbr.rel (%p523) target = $region72
        $region71: #{perceiver_resampler_forward.1} parent=31 // pred_region
          %p526 = scmp.lt.s32.totalorder %s32, 1
          %s527 = scalar_select %p526, %s32, 1
          %s528 = smul.addr %s527, 4
          %s529 = smul.addr %s528, 8
          %s530 = scalar_lea.vmem %s11, %s529
        $region72: #{perceiver_resampler_forward.1} parent=31 // pred_fallthru
          _
        // Predicated region
        $region73: #{perceiver_resampler_forward.1} parent=31 // pred_check
          %p531 = pneg %p358
        $region74: #{perceiver_resampler_forward.1} parent=31 // pred_check_branch
          %533 = sbr.rel (%p531) target = $region76
        $region75: #{perceiver_resampler_forward.1} parent=31 // pred_region
          %p534 = scmp.lt.s32.totalorder %s32, 1
          %s535 = scalar_select %p534, %s32, 1
          %s536 = smul.addr %s535, 16
          %s537 = smul.addr %s536, 8
          %s538 = scalar_lea.vmem %s12, %s537
        $region76: #{perceiver_resampler_forward.1} parent=31 // pred_fallthru
          _
      $region32: #{perceiver_resampler_forward.1} parent=5 // pred_fallthru
        _
      %p539 = scmp.le.s32.totalorder 1, %s24
      %p540 = scmp.lt.s32.totalorder %s24, 5
      %p541 = pnand %p539, %p540
      %p542 = pneg %p541
      // Predicated region
      $region77: #{perceiver_resampler_forward.1} parent=5 // pred_check
        _
      $region78: #{perceiver_resampler_forward.1} parent=5 // pred_check_branch
        %544 = sbr.rel (%p541) target = $region80
      $region79: #{perceiver_resampler_forward.1} parent=5 // pred_region
        %s545 = ssub.s32 %s24, 1
        %p546 = scmp.lt.s32.totalorder %s33, 1
        %s547 = scalar_select %p546, %s33, 1
        %s548 = smul.addr %s547, 4
        %s549 = smul.addr %s548, 8
        %s550 = scalar_lea.vmem %s0, %s549
        %p551 = pneg %p62
        %p552 = pneg %p59
        %p553 = pneg %p83
        %p554 = pneg %p80
        %p555 = pneg %p104
        %p556 = pneg %p101
        %p557 = scmp.lt.s32.totalorder %s34, 1
        %s558 = scalar_select %p557, %s34, 1
        %s559 = scalar_lea.vmem %s3, %s558
        %p560 = pneg %p130
        %p561 = pneg %p127
        %p562 = scmp.lt.s32.totalorder %s34, 1
        %s563 = scalar_select %p562, %s34, 1
        %s564 = scalar_lea.vmem %s4, %s563
        %p565 = pneg %p156
        %p566 = pneg %p153
        %p567 = scmp.lt.s32.totalorder %s34, 1
        %s568 = scalar_select %p567, %s34, 1
        %s569 = scalar_lea.vmem %s5, %s568
        %p570 = pneg %p182
        %p571 = pneg %p179
        %p572 = scmp.lt.s32.totalorder %s34, 1
        %s573 = scalar_select %p572, %s34, 1
        %s574 = scalar_lea.vmem %s6, %s573
        %p575 = pneg %p208
        %p576 = pneg %p205
        %p577 = scmp.lt.s32.totalorder %s34, 1
        %s578 = scalar_select %p577, %s34, 1
        %s579 = smul.addr %s578, 4
        %s580 = smul.addr %s579, 8
        %s581 = scalar_lea.vmem %s7, %s580
        %p582 = pneg %p234
        %p583 = pneg %p231
        %p584 = scmp.lt.s32.totalorder %s34, 1
        %s585 = scalar_select %p584, %s34, 1
        %s586 = smul.addr %s585, 4
        %s587 = smul.addr %s586, 8
        %s588 = scalar_lea.vmem %s8, %s587
        %p589 = pneg %p260
        %p590 = pneg %p257
        %p591 = scmp.lt.s32.totalorder %s34, 1
        %s592 = scalar_select %p591, %s34, 1
        %s593 = scalar_lea.vmem %s9, %s592
        %p594 = pneg %p286
        %p595 = pneg %p283
        %p596 = scmp.lt.s32.totalorder %s34, 1
        %s597 = scalar_select %p596, %s34, 1
        %s598 = scalar_lea.vmem %s10, %s597
        %p599 = pneg %p312
        %p600 = pneg %p309
        %p601 = scmp.lt.s32.totalorder %s34, 1
        %s602 = scalar_select %p601, %s34, 1
        %s603 = smul.addr %s602, 4
        %s604 = smul.addr %s603, 8
        %s605 = scalar_lea.vmem %s11, %s604
        %p606 = pneg %p338
        %p607 = pneg %p335
        %p608 = scmp.lt.s32.totalorder %s34, 1
        %s609 = scalar_select %p608, %s34, 1
        %s610 = smul.addr %s609, 16
        %s611 = smul.addr %s610, 8
        %s612 = scalar_lea.vmem %s12, %s611
        %p613 = pneg %p364
        %p614 = pneg %p361
        %p615 = pneg %p385
        %p616 = pneg %p382
        %p617 = pneg %p406
        %p618 = pneg %p403
        %p619 = pneg %p432
        %p620 = pneg %p429
        %s621 = sand.u32 %s419, 1
        %s622 = scalar_lea.sflag [#allocation5], %s621
        %s623 = sand.u32 %s419, 1
        %s624 = smul.addr %s623, 16
        %s625 = scalar_lea.vmem [#allocation4], %s624
        %p626 = scmp.lt.s32.totalorder %s33, 1
        %s627 = scalar_select %p626, %s33, 1
        %s628 = smul.addr %s627, 4
        %s629 = smul.addr %s628, 8
        %s630 = scalar_lea.vmem %s0, %s629
        %p631 = scmp.lt.s32.totalorder %s34, 1
        %s632 = scalar_select %p631, %s34, 1
        %s633 = scalar_lea.vmem %s3, %s632
        %p634 = scmp.lt.s32.totalorder %s34, 1
        %s635 = scalar_select %p634, %s34, 1
        %s636 = scalar_lea.vmem %s4, %s635
        %p637 = scmp.lt.s32.totalorder %s34, 1
        %s638 = scalar_select %p637, %s34, 1
        %s639 = scalar_lea.vmem %s5, %s638
        %p640 = scmp.lt.s32.totalorder %s34, 1
        %s641 = scalar_select %p640, %s34, 1
        %s642 = scalar_lea.vmem %s6, %s641
        %p643 = scmp.lt.s32.totalorder %s34, 1
        %s644 = scalar_select %p643, %s34, 1
        %s645 = smul.addr %s644, 4
        %s646 = smul.addr %s645, 8
        %s647 = scalar_lea.vmem %s7, %s646
        %p648 = scmp.lt.s32.totalorder %s34, 1
        %s649 = scalar_select %p648, %s34, 1
        %s650 = smul.addr %s649, 4
        %s651 = smul.addr %s650, 8
        %s652 = scalar_lea.vmem %s8, %s651
        %p653 = scmp.lt.s32.totalorder %s34, 1
        %s654 = scalar_select %p653, %s34, 1
        %s655 = scalar_lea.vmem %s9, %s654
        %p656 = scmp.lt.s32.totalorder %s34, 1
        %s657 = scalar_select %p656, %s34, 1
        %s658 = scalar_lea.vmem %s10, %s657
        %p659 = scmp.lt.s32.totalorder %s34, 1
        %s660 = scalar_select %p659, %s34, 1
        %s661 = smul.addr %s660, 4
        %s662 = smul.addr %s661, 8
        %s663 = scalar_lea.vmem %s11, %s662
        %p664 = scmp.lt.s32.totalorder %s34, 1
        %s665 = scalar_select %p664, %s34, 1
        %s666 = smul.addr %s665, 16
        %s667 = smul.addr %s666, 8
        %s668 = scalar_lea.vmem %s12, %s667
        %p669 = scmp.eq.s32.totalorder %s34, 0
        // Predicated region
        $region81: #{perceiver_resampler_forward.1} parent=79 // pred_check
          %p670 = pneg %p669
        $region82: #{perceiver_resampler_forward.1} parent=79 // pred_check_branch
          %672 = sbr.rel (%p670) target = $region84
        $region83: #{perceiver_resampler_forward.1} parent=79 // pred_region
          %v673 = vld [vmem:[%s630] sm:$0xff]
          %v674 = vld [vmem:[%s630 + $0x8] sm:$0xff]
          %v675 = vld [vmem:[%s630 + $0x10] sm:$0xff]
          %v676 = vld [vmem:[%s630 + $0x18] sm:$0xff]
          %v677 = vld [vmem:[%s1] sm:$0x3]
          %v680 = vunpack.c.l.s4 1966171168
          %v681 = vunpack.c.0.s8 %v680
          %v682 = vlaneseq
          %v683 = vshrl.u32 %v682, 7
          %v684 = vsub.s32 %v681, %v683
          %v685 = vrot.slane %v677, %v684
          %v686 = vcombine.high %v685, %v685
          %v688 = vunpack.c.l.s4 1966171168
          %v689 = vunpack.c.0.s8 %v688
          %v690 = vlaneseq
          %v691 = vshrl.u32 %v690, 7
          %v692 = vsub.s32 %v689, %v691
          %v693 = vrot.slane %v685, %v692
          %v695 = vunpack.c.l.s4 1966171168
          %v696 = vunpack.c.0.s8 %v695
          %v697 = vlaneseq
          %v698 = vshrl.u32 %v697, 7
          %v699 = vsub.s32 %v696, %v698
          %v700 = vrot.slane %v686, %v699
          %v701 = vlaneseq
          %v702 = vshrl.u32 %v701, 7
          %v703 = vsub.s32 0, %v702
          %v704 = vrot.slane %v693, %v703
          %v705 = vlaneseq
          %v706 = vshrl.u32 %v705, 7
          %v707 = vsub.s32 0, %v706
          %v708 = vrot.slane %v700, %v707
          %v711 = vadd.f32 %v673, %v704
          %v712 = vadd.f32 %v674, %v704
          %v713 = vadd.f32 %v675, %v708
          %v714 = vadd.f32 %v676, %v708
          %vm715 = vcmask 261120
          %v716 = vsel %vm715, %v711, 0.0
          %717 = vadd.xlane.f32.xlu0 %v716
          %v718 = vpop.xlane.xlu0 %717
          %v719 = vsel %vm715, %v712, 0.0
          %720 = vadd.xlane.f32.xlu0 %v719
          %v721 = vpop.xlane.xlu0 %720
          %v722 = vsel %vm715, %v713, 0.0
          %723 = vadd.xlane.f32.xlu0 %v722
          %v724 = vpop.xlane.xlu0 %723
          %v725 = vsel %vm715, %v714, 0.0
          %726 = vadd.xlane.f32.xlu0 %v725
          %v727 = vpop.xlane.xlu0 %726
          %v728 = vrcp.pop 32.0
          %v729 = vmul.f32 %v718, %v728
          %v730 = vmul.f32 %v721, %v728
          %v731 = vmul.f32 %v724, %v728
          %v732 = vmul.f32 %v727, %v728
          %v733 = vsub.f32 %v711, %v729
          %v734 = vsub.f32 %v712, %v730
          %v735 = vsub.f32 %v713, %v731
          %v736 = vsub.f32 %v714, %v732
          %v737 = vmul.f32 %v733, %v733
          %v738 = vmul.f32 %v734, %v734
          %v739 = vmul.f32 %v735, %v735
          %v740 = vmul.f32 %v736, %v736
          %v741 = vsel %vm715, %v737, 0.0
          %742 = vadd.xlane.f32.xlu0 %v741
          %v743 = vpop.xlane.xlu0 %742
          %v744 = vsel %vm715, %v738, 0.0
          %745 = vadd.xlane.f32.xlu0 %v744
          %v746 = vpop.xlane.xlu0 %745
          %v747 = vsel %vm715, %v739, 0.0
          %748 = vadd.xlane.f32.xlu0 %v747
          %v749 = vpop.xlane.xlu0 %748
          %v750 = vsel %vm715, %v740, 0.0
          %751 = vadd.xlane.f32.xlu0 %v750
          %v752 = vpop.xlane.xlu0 %751
          %v753 = vmul.f32 %v743, %v728
          %v754 = vmul.f32 %v746, %v728
          %v755 = vmul.f32 %v749, %v728
          %v756 = vmul.f32 %v752, %v728
          %v757 = vadd.f32 %v753, 1e-05
          %v758 = vadd.f32 %v754, 1e-05
          %v759 = vadd.f32 %v755, 1e-05
          %v760 = vadd.f32 %v756, 1e-05
          %v761 = vrsqrt.pop %v757
          %v762 = vrsqrt.pop %v758
          %v763 = vrsqrt.pop %v759
          %v764 = vrsqrt.pop %v760
          %v765 = vmul.f32 %v733, %v761
          %v766 = vmul.f32 %v734, %v762
          %v767 = vmul.f32 %v735, %v763
          %v768 = vmul.f32 %v736, %v764
          %769 = vst.msk [vmem:[#allocation2] sm:$0xff] %vm715, %v765
          %770 = vst.msk [vmem:[#allocation2 + $0x8] sm:$0xff] %vm715, %v766
          %771 = vst.msk [vmem:[#allocation2 + $0x10] sm:$0xff] %vm715, %v767
          %772 = vst.msk [vmem:[#allocation2 + $0x18] sm:$0xff] %vm715, %v768
          %v773 = vld [vmem:[%s2] sm:$0xff]
          %774 = vst.msk [vmem:[#allocation3] sm:$0xff] %vm715, %v773
          %775 = vst.msk [vmem:[#allocation3 + $0x8] sm:$0xff] %vm715, %v773
        $region84: #{perceiver_resampler_forward.1} parent=79 // pred_fallthru
          _
        %v776 = vld [vmem:[#allocation2] sm:$0xff]
        %v777 = vld [vmem:[#allocation2 + $0x8] sm:$0xff]
        %v778 = vld [vmem:[#allocation2 + $0x10] sm:$0xff]
        %v779 = vld [vmem:[#allocation2 + $0x18] sm:$0xff]
        %v780 = vld [vmem:[%s633] sm:$0x1]
        %v782 = vlaneseq
        %v783 = vshrl.u32 %v782, 7
        %v784 = vsub.s32 0, %v783
        %v785 = vrot.slane %v780, %v784
        %v787 = vmul.f32 %v776, %v785
        %v788 = vmul.f32 %v777, %v785
        %v789 = vmul.f32 %v778, %v785
        %v790 = vmul.f32 %v779, %v785
        %v791 = vld [vmem:[%s636] sm:$0x1]
        %v793 = vlaneseq
        %v794 = vshrl.u32 %v793, 7
        %v795 = vsub.s32 0, %v794
        %v796 = vrot.slane %v791, %v795
        %v798 = vadd.f32 %v787, %v796
        %v799 = vadd.f32 %v788, %v796
        %v800 = vadd.f32 %v789, %v796
        %v801 = vadd.f32 %v790, %v796
        %v802 = vld [vmem:[#allocation3] sm:$0xff]
        %v803 = vld [vmem:[#allocation3 + $0x8] sm:$0xff]
        %v804 = vld [vmem:[%s639] sm:$0x1]
        %v805 = vld [vmem:[%s642] sm:$0x1]
        %vm806 = vcmask 261120
        %v807 = vsel %vm806, %v802, 0.0
        %808 = vadd.xlane.f32.xlu0 %v807
        %v809 = vpop.xlane.xlu0 %808
        %v810 = vsel %vm806, %v803, 0.0
        %811 = vadd.xlane.f32.xlu0 %v810
        %v812 = vpop.xlane.xlu0 %811
        %v813 = vrcp.pop 32.0
        %v814 = vmul.f32 %v809, %v813
        %v815 = vmul.f32 %v812, %v813
        %v816 = vsub.f32 %v802, %v814
        %v817 = vsub.f32 %v803, %v815
        %v818 = vmul.f32 %v816, %v816
        %v819 = vmul.f32 %v817, %v817
        %v820 = vsel %vm806, %v818, 0.0
        %821 = vadd.xlane.f32.xlu0 %v820
        %v822 = vpop.xlane.xlu0 %821
        %v823 = vsel %vm806, %v819, 0.0
        %824 = vadd.xlane.f32.xlu0 %v823
        %v825 = vpop.xlane.xlu0 %824
        %v826 = vmul.f32 %v822, %v813
        %v827 = vmul.f32 %v825, %v813
        %v828 = vadd.f32 %v826, 1e-05
        %v829 = vadd.f32 %v827, 1e-05
        %v830 = vrsqrt.pop %v828
        %v831 = vrsqrt.pop %v829
        %v832 = vmul.f32 %v816, %v830
        %v833 = vmul.f32 %v817, %v831
        %v835 = vlaneseq
        %v836 = vshrl.u32 %v835, 7
        %v837 = vsub.s32 0, %v836
        %v838 = vrot.slane %v804, %v837
        %v840 = vmul.f32 %v832, %v838
        %v841 = vmul.f32 %v833, %v838
        %v843 = vlaneseq
        %v844 = vshrl.u32 %v843, 7
        %v845 = vsub.s32 0, %v844
        %v846 = vrot.slane %v805, %v845
        %v848 = vadd.f32 %v840, %v846
        %v849 = vadd.f32 %v841, %v846
        %v850 = vld [vmem:[%s647] sm:$0xff]
        %v851 = vld [vmem:[%s647 + $0x8] sm:$0xff]
        %v852 = vld [vmem:[%s647 + $0x10] sm:$0xff]
        %v853 = vld [vmem:[%s647 + $0x18] sm:$0xff]
        %v855 = vsel %vm806, %v798, 0
        %v858 = vsel %vm806, %v799, 0
        %v861 = vsel %vm806, %v848, 0
        %v864 = vsel %vm806, %v800, 0
        %v867 = vsel %vm806, %v801, 0
        %v870 = vsel %vm806, %v849, 0
        %872 = vmatprep.subr.mxu0 0.0
        %873 = vmatpush1.msra.mxu0 %v850
        %874 = vmatprep.subr.mxu0 0.0
        %875 = vmatpush1.msra.mxu0 %v851
        %876 = vmatprep.subr.mxu0 0.0
        %877 = vmatpush1.msra.mxu0 %v852
        %878 = vmatprep.subr.mxu0 0.0
        %879 = vmatpush1.msra.mxu0 %v853
        %880 = vmatprep.subr.mxu0 0.0
        %881 = vmatpush1.msra.mxu0 0.0
        %882 = vmatprep.subr.mxu0 0.0
        %883 = vmatpush1.msra.mxu0 0.0
        %884 = vmatprep.subr.mxu0 0.0
        %885 = vmatpush1.msra.mxu0 0.0
        %886 = vmatprep.subr.mxu0 0.0
        %887 = vmatpush1.msra.mxu0 0.0
        %888 = vmatprep.subr.mxu0 0.0
        %889 = vmatpush1.msra.mxu0 0.0
        %890 = vmatprep.subr.mxu0 0.0
        %891 = vmatpush1.msra.mxu0 0.0
        %892 = vmatprep.subr.mxu0 0.0
        %893 = vmatpush1.msra.mxu0 0.0
        %894 = vmatprep.subr.mxu0 0.0
        %895 = vmatpush1.msra.mxu0 0.0
        %896 = vmatprep.subr.mxu0 0.0
        %897 = vmatpush1.msra.mxu0 0.0
        %898 = vmatprep.subr.mxu0 0.0
        %899 = vmatpush1.msra.mxu0 0.0
        %900 = vmatprep.subr.mxu0 0.0
        %901 = vmatpush1.msra.mxu0 0.0
        %902 = vmatprep.subr.mxu0 0.0
        %903 = vmatpush1.msra.mxu0 0.0
        %904 = vmatprep.subr.mxu0 0.0
        %905 = vmatpush1.msra.mxu0 0.0
        %906 = vmatprep.subr.mxu0 0.0
        %907 = vmatpush1.msra.mxu0 0.0
        %908 = vmatprep.subr.mxu0 0.0
        %909 = vmatpush1.msra.mxu0 0.0
        %910 = vmatprep.subr.mxu0 0.0
        %911 = vmatpush1.msra.mxu0 0.0
        %912 = vmatprep.subr.mxu0 0.0
        %913 = vmatpush1.msra.mxu0 0.0
        %914 = vmatprep.subr.mxu0 0.0
        %915 = vmatpush1.msra.mxu0 0.0
        %916 = vmatprep.subr.mxu0 0.0
        %917 = vmatpush1.msra.mxu0 0.0
        %918 = vmatprep.subr.mxu0 0.0
        %919 = vmatpush1.msra.mxu0 0.0
        %920 = vmatprep.subr.mxu0 0.0
        %921 = vmatpush1.msra.mxu0 0.0
        %922 = vmatprep.subr.mxu0 0.0
        %923 = vmatpush1.msra.mxu0 0.0
        %924 = vmatprep.subr.mxu0 0.0
        %925 = vmatpush1.msra.mxu0 0.0
        %926 = vmatprep.subr.mxu0 0.0
        %927 = vmatpush1.msra.mxu0 0.0
        %928 = vmatprep.subr.mxu0 0.0
        %929 = vmatpush1.msra.mxu0 0.0
        %930 = vmatprep.subr.mxu0 0.0
        %931 = vmatpush1.msra.mxu0 0.0
        %932 = vmatprep.subr.mxu0 0.0
        %933 = vmatpush1.msra.mxu0 0.0
        %934 = vmatprep.subr.mxu0 0.0
        %935 = vmatpush1.msra.mxu0 0.0
        %936 = vmatprep.mubr.f32.mxu0 0.0
        %937 = vmatmul.mubr.f32.gmra.mrb[0].mxu0 %v855
        %v938 = vpop.f32.mrb[0].mxu0
        %v939 = vadd.f32 0.0, %v938
        %v940 = vpop.f32.mrb[0].mxu0
        %941 = vmatprep.mubr.f32.mxu0 0.0
        %942 = vmatmul.mubr.f32.gmra.mrb[0].mxu0 %v858
        %v943 = vpop.f32.mrb[0].mxu0
        %v944 = vadd.f32 0.0, %v943
        %v945 = vpop.f32.mrb[0].mxu0
        %946 = vmatprep.mubr.f32.mxu0 0.0
        %947 = vmatmul.mubr.f32.gmra.mrb[0].mxu0 %v861
        %v948 = vpop.f32.mrb[0].mxu0
        %v949 = vadd.f32 0.0, %v948
        %v950 = vpop.f32.mrb[0].mxu0
        %951 = vmatprep.mubr.f32.mxu0 0.0
        %952 = vmatmul.mubr.f32.gmra.mrb[0].mxu0 %v864
        %v953 = vpop.f32.mrb[0].mxu0
        %v954 = vadd.f32 0.0, %v953
        %v955 = vpop.f32.mrb[0].mxu0
        %956 = vmatprep.mubr.f32.mxu0 0.0
        %957 = vmatmul.mubr.f32.gmra.mrb[0].mxu0 %v867
        %v958 = vpop.f32.mrb[0].mxu0
        %v959 = vadd.f32 0.0, %v958
        %v960 = vpop.f32.mrb[0].mxu0
        %961 = vmatprep.mubr.f32.mxu0 0.0
        %962 = vmatmul.mubr.f32.gmra.mrb[0].mxu0 %v870
        %v963 = vpop.f32.mrb[0].mxu0
        %v964 = vadd.f32 0.0, %v963
        %v965 = vpop.f32.mrb[0].mxu0
        %966 = vdwg.mxu0
        %v967 = vmul.f32 %v949, 0.35355338
        %v968 = vmul.f32 %v964, 0.35355338
        %972 = vrot.lane.b32.xlu0 %v939, 96
        %v973 = vpop.permute.xlu0 %972
        %974 = vrot.lane.b32.xlu0 %v944, 96
        %v975 = vpop.permute.xlu0 %974
        %976 = vrot.lane.b32.xlu0 %v949, 96
        %v977 = vpop.permute.xlu0 %976
        %vm978 = vcmask 64512
        %v980 = vsel %vm978, %v967, 0
        %v982 = vsel %vm978, %v973, 0
        %v984 = vsel %vm978, %v975, 0
        %v986 = vsel %vm978, %v977, 0
        %988 = vmatprep.subr.mxu0 0.0
        %989 = vmatpush1.xpose.msra.mxu0 %v982
        %990 = vmatprep.subr.mxu0 0.0
        %991 = vmatpush1.xpose.msra.mxu0 %v984
        %992 = vmatprep.subr.mxu0 0.0
        %993 = vmatpush1.xpose.msra.mxu0 %v986
        %994 = vmatprep.subr.mxu0 0.0
        %995 = vmatpush1.xpose.msra.mxu0 0.0
        %996 = vmatprep.subr.mxu0 0.0
        %997 = vmatpush1.xpose.msra.mxu0 0.0
        %998 = vmatprep.subr.mxu0 0.0
        %999 = vmatpush1.xpose.msra.mxu0 0.0
        %1000 = vmatprep.subr.mxu0 0.0
        %1001 = vmatpush1.xpose.msra.mxu0 0.0
        %1002 = vmatprep.subr.mxu0 0.0
        %1003 = vmatpush1.xpose.msra.mxu0 0.0
        %1004 = vmatprep.subr.mxu0 0.0
        %1005 = vmatpush1.xpose.msra.mxu0 0.0
        %1006 = vmatprep.subr.mxu0 0.0
        %1007 = vmatpush1.xpose.msra.mxu0 0.0
        %1008 = vmatprep.subr.mxu0 0.0
        %1009 = vmatpush1.xpose.msra.mxu0 0.0
        %1010 = vmatprep.subr.mxu0 0.0
        %1011 = vmatpush1.xpose.msra.mxu0 0.0
        %1012 = vmatprep.subr.mxu0 0.0
        %1013 = vmatpush1.xpose.msra.mxu0 0.0
        %1014 = vmatprep.subr.mxu0 0.0
        %1015 = vmatpush1.xpose.msra.mxu0 0.0
        %1016 = vmatprep.subr.mxu0 0.0
        %1017 = vmatpush1.xpose.msra.mxu0 0.0
        %1018 = vmatprep.subr.mxu0 0.0
        %1019 = vmatpush1.xpose.msra.mxu0 0.0
        %1020 = vmatprep.subr.mxu0 0.0
        %1021 = vmatpush1.xpose.msra.mxu0 0.0
        %1022 = vmatprep.subr.mxu0 0.0
        %1023 = vmatpush1.xpose.msra.mxu0 0.0
        %1024 = vmatprep.subr.mxu0 0.0
        %1025 = vmatpush1.xpose.msra.mxu0 0.0
        %1026 = vmatprep.subr.mxu0 0.0
        %1027 = vmatpush1.xpose.msra.mxu0 0.0
        %1028 = vmatprep.subr.mxu0 0.0
        %1029 = vmatpush1.xpose.msra.mxu0 0.0
        %1030 = vmatprep.subr.mxu0 0.0
        %1031 = vmatpush1.xpose.msra.mxu0 0.0
        %1032 = vmatprep.subr.mxu0 0.0
        %1033 = vmatpush1.xpose.msra.mxu0 0.0
        %1034 = vmatprep.subr.mxu0 0.0
        %1035 = vmatpush1.xpose.msra.mxu0 0.0
        %1036 = vmatprep.subr.mxu0 0.0
        %1037 = vmatpush1.xpose.msra.mxu0 0.0
        %1038 = vmatprep.subr.mxu0 0.0
        %1039 = vmatpush1.xpose.msra.mxu0 0.0
        %1040 = vmatprep.subr.mxu0 0.0
        %1041 = vmatpush1.xpose.msra.mxu0 0.0
        %1042 = vmatprep.subr.mxu0 0.0
        %1043 = vmatpush1.xpose.msra.mxu0 0.0
        %1044 = vmatprep.subr.mxu0 0.0
        %1045 = vmatpush1.xpose.msra.mxu0 0.0
        %1046 = vmatprep.subr.mxu0 0.0
        %1047 = vmatpush1.xpose.msra.mxu0 0.0
        %1048 = vmatprep.subr.mxu0 0.0
        %1049 = vmatpush1.xpose.msra.mxu0 0.0
        %1050 = vmatprep.subr.mxu0 0.0
        %1051 = vmatpush1.xpose.msra.mxu0 0.0
        %1052 = vmatprep.mubr.f32.mxu0 0.0
        %1053 = vmatmul.mubr.f32.gmra.mrb[0].mxu0 %v980
        %v1054 = vpop.f32.mrb[0].mxu0
        %v1055 = vadd.f32 0.0, %v1054
        %v1056 = vpop.f32.mrb[0].mxu0
        %1057 = vdwg.mxu0
        %1061 = vrot.lane.b32.xlu0 %v954, 96
        %v1062 = vpop.permute.xlu0 %1061
        %1063 = vrot.lane.b32.xlu0 %v959, 96
        %v1064 = vpop.permute.xlu0 %1063
        %1065 = vrot.lane.b32.xlu0 %v964, 96
        %v1066 = vpop.permute.xlu0 %1065
        %v1068 = vsel %vm978, %v968, 0
        %v1070 = vsel %vm978, %v1062, 0
        %v1072 = vsel %vm978, %v1064, 0
        %v1074 = vsel %vm978, %v1066, 0
        %1076 = vmatprep.subr.mxu0 0.0
        %1077 = vmatpush1.xpose.msra.mxu0 %v1070
        %1078 = vmatprep.subr.mxu0 0.0
        %1079 = vmatpush1.xpose.msra.mxu0 %v1072
        %1080 = vmatprep.subr.mxu0 0.0
        %1081 = vmatpush1.xpose.msra.mxu0 %v1074
        %1082 = vmatprep.subr.mxu0 0.0
        %1083 = vmatpush1.xpose.msra.mxu0 0.0
        %1084 = vmatprep.subr.mxu0 0.0
        %1085 = vmatpush1.xpose.msra.mxu0 0.0
        %1086 = vmatprep.subr.mxu0 0.0
        %1087 = vmatpush1.xpose.msra.mxu0 0.0
        %1088 = vmatprep.subr.mxu0 0.0
        %1089 = vmatpush1.xpose.msra.mxu0 0.0
        %1090 = vmatprep.subr.mxu0 0.0
        %1091 = vmatpush1.xpose.msra.mxu0 0.0
        %1092 = vmatprep.subr.mxu0 0.0
        %1093 = vmatpush1.xpose.msra.mxu0 0.0
        %1094 = vmatprep.subr.mxu0 0.0
        %1095 = vmatpush1.xpose.msra.mxu0 0.0
        %1096 = vmatprep.subr.mxu0 0.0
        %1097 = vmatpush1.xpose.msra.mxu0 0.0
        %1098 = vmatprep.subr.mxu0 0.0
        %1099 = vmatpush1.xpose.msra.mxu0 0.0
        %1100 = vmatprep.subr.mxu0 0.0
        %1101 = vmatpush1.xpose.msra.mxu0 0.0
        %1102 = vmatprep.subr.mxu0 0.0
        %1103 = vmatpush1.xpose.msra.mxu0 0.0
        %1104 = vmatprep.subr.mxu0 0.0
        %1105 = vmatpush1.xpose.msra.mxu0 0.0
        %1106 = vmatprep.subr.mxu0 0.0
        %1107 = vmatpush1.xpose.msra.mxu0 0.0
        %1108 = vmatprep.subr.mxu0 0.0
        %1109 = vmatpush1.xpose.msra.mxu0 0.0
        %1110 = vmatprep.subr.mxu0 0.0
        %1111 = vmatpush1.xpose.msra.mxu0 0.0
        %1112 = vmatprep.subr.mxu0 0.0
        %1113 = vmatpush1.xpose.msra.mxu0 0.0
        %1114 = vmatprep.subr.mxu0 0.0
        %1115 = vmatpush1.xpose.msra.mxu0 0.0
        %1116 = vmatprep.subr.mxu0 0.0
        %1117 = vmatpush1.xpose.msra.mxu0 0.0
        %1118 = vmatprep.subr.mxu0 0.0
        %1119 = vmatpush1.xpose.msra.mxu0 0.0
        %1120 = vmatprep.subr.mxu0 0.0
        %1121 = vmatpush1.xpose.msra.mxu0 0.0
        %1122 = vmatprep.subr.mxu0 0.0
        %1123 = vmatpush1.xpose.msra.mxu0 0.0
        %1124 = vmatprep.subr.mxu0 0.0
        %1125 = vmatpush1.xpose.msra.mxu0 0.0
        %1126 = vmatprep.subr.mxu0 0.0
        %1127 = vmatpush1.xpose.msra.mxu0 0.0
        %1128 = vmatprep.subr.mxu0 0.0
        %1129 = vmatpush1.xpose.msra.mxu0 0.0
        %1130 = vmatprep.subr.mxu0 0.0
        %1131 = vmatpush1.xpose.msra.mxu0 0.0
        %1132 = vmatprep.subr.mxu0 0.0
        %1133 = vmatpush1.xpose.msra.mxu0 0.0
        %1134 = vmatprep.subr.mxu0 0.0
        %1135 = vmatpush1.xpose.msra.mxu0 0.0
        %1136 = vmatprep.subr.mxu0 0.0
        %1137 = vmatpush1.xpose.msra.mxu0 0.0
        %1138 = vmatprep.subr.mxu0 0.0
        %1139 = vmatpush1.xpose.msra.mxu0 0.0
        %1140 = vmatprep.mubr.f32.mxu0 0.0
        %1141 = vmatmul.mubr.f32.gmra.mrb[0].mxu0 %v1068
        %v1142 = vpop.f32.mrb[0].mxu0
        %v1143 = vadd.f32 0.0, %v1142
        %v1144 = vpop.f32.mrb[0].mxu0
        %1145 = vdwg.mxu0
        %vm1146 = vcmask 195584
        %v1147 = vsel %vm1146, %v1055, -inf
        %1148 = vmax.xlane.f32.xlu0 %v1147
        %v1149 = vpop.xlane.xlu0 %1148
        %v1150 = vsel %vm1146, %v1143, -inf
        %1151 = vmax.xlane.f32.xlu0 %v1150
        %v1152 = vpop.xlane.xlu0 %1151
        %v1153 = vsub.f32 %v1055, %v1149
        %v1154 = vsub.f32 %v1143, %v1152
        %v1155 = vmul.f32 %v1153, 1.442695
        %v1156 = vpow.pop %v1155
        %v1157 = vmul.f32 %v1154, 1.442695
        %v1158 = vpow.pop %v1157
        %v1159 = vsel %vm1146, %v1156, 0.0
        %1160 = vadd.xlane.f32.xlu0 %v1159
        %v1161 = vpop.xlane.xlu0 %1160
        %v1162 = vsel %vm1146, %v1158, 0.0
        %1163 = vadd.xlane.f32.xlu0 %v1162
        %v1164 = vpop.xlane.xlu0 %1163
        %v1165 = vrcp.pop %v1161
        %v1166 = vrcp.pop %v1164
        %v1167 = vmul.f32 %v1161, %v1165
        %v1168 = vmul.f32 %v1164, %v1166
        %v1169 = vsub.f32 2.0, %v1167
        %v1170 = vsub.f32 2.0, %v1168
        %v1171 = vmul.f32 %v1165, %v1169
        %v1172 = vmul.f32 %v1166, %v1170
        %v1173 = vmul.f32 %v1156, %v1171
        %v1174 = vmul.f32 %v1158, %v1172
        %1175 = vrot.lane.b32.xlu0 %v939, 64
        %v1176 = vpop.permute.xlu0 %1175
        %1177 = vrot.lane.b32.xlu0 %v944, 64
        %v1178 = vpop.permute.xlu0 %1177
        %1179 = vrot.lane.b32.xlu0 %v949, 64
        %v1180 = vpop.permute.xlu0 %1179
        %v1185 = vsel %vm1146, %v1173, 0
        %1187 = vmatprep.subr.mxu0 0.0
        %1188 = vmatpush1.msra.mxu0 %v1176
        %1189 = vmatprep.subr.mxu0 0.0
        %1190 = vmatpush1.msra.mxu0 %v1178
        %1191 = vmatprep.subr.mxu0 0.0
        %1192 = vmatpush1.msra.mxu0 %v1180
        %1193 = vmatprep.subr.mxu0 0.0
        %1194 = vmatpush1.msra.mxu0 0.0
        %1195 = vmatprep.subr.mxu0 0.0
        %1196 = vmatpush1.msra.mxu0 0.0
        %1197 = vmatprep.subr.mxu0 0.0
        %1198 = vmatpush1.msra.mxu0 0.0
        %1199 = vmatprep.subr.mxu0 0.0
        %1200 = vmatpush1.msra.mxu0 0.0
        %1201 = vmatprep.subr.mxu0 0.0
        %1202 = vmatpush1.msra.mxu0 0.0
        %1203 = vmatprep.subr.mxu0 0.0
        %1204 = vmatpush1.msra.mxu0 0.0
        %1205 = vmatprep.subr.mxu0 0.0
        %1206 = vmatpush1.msra.mxu0 0.0
        %1207 = vmatprep.subr.mxu0 0.0
        %1208 = vmatpush1.msra.mxu0 0.0
        %1209 = vmatprep.subr.mxu0 0.0
        %1210 = vmatpush1.msra.mxu0 0.0
        %1211 = vmatprep.subr.mxu0 0.0
        %1212 = vmatpush1.msra.mxu0 0.0
        %1213 = vmatprep.subr.mxu0 0.0
        %1214 = vmatpush1.msra.mxu0 0.0
        %1215 = vmatprep.subr.mxu0 0.0
        %1216 = vmatpush1.msra.mxu0 0.0
        %1217 = vmatprep.subr.mxu0 0.0
        %1218 = vmatpush1.msra.mxu0 0.0
        %1219 = vmatprep.subr.mxu0 0.0
        %1220 = vmatpush1.msra.mxu0 0.0
        %1221 = vmatprep.subr.mxu0 0.0
        %1222 = vmatpush1.msra.mxu0 0.0
        %1223 = vmatprep.subr.mxu0 0.0
        %1224 = vmatpush1.msra.mxu0 0.0
        %1225 = vmatprep.subr.mxu0 0.0
        %1226 = vmatpush1.msra.mxu0 0.0
        %1227 = vmatprep.subr.mxu0 0.0
        %1228 = vmatpush1.msra.mxu0 0.0
        %1229 = vmatprep.subr.mxu0 0.0
        %1230 = vmatpush1.msra.mxu0 0.0
        %1231 = vmatprep.subr.mxu0 0.0
        %1232 = vmatpush1.msra.mxu0 0.0
        %1233 = vmatprep.subr.mxu0 0.0
        %1234 = vmatpush1.msra.mxu0 0.0
        %1235 = vmatprep.subr.mxu0 0.0
        %1236 = vmatpush1.msra.mxu0 0.0
        %1237 = vmatprep.subr.mxu0 0.0
        %1238 = vmatpush1.msra.mxu0 0.0
        %1239 = vmatprep.subr.mxu0 0.0
        %1240 = vmatpush1.msra.mxu0 0.0
        %1241 = vmatprep.subr.mxu0 0.0
        %1242 = vmatpush1.msra.mxu0 0.0
        %1243 = vmatprep.subr.mxu0 0.0
        %1244 = vmatpush1.msra.mxu0 0.0
        %1245 = vmatprep.subr.mxu0 0.0
        %1246 = vmatpush1.msra.mxu0 0.0
        %1247 = vmatprep.subr.mxu0 0.0
        %1248 = vmatpush1.msra.mxu0 0.0
        %1249 = vmatprep.subr.mxu0 0.0
        %1250 = vmatpush1.msra.mxu0 0.0
        %1251 = vmatprep.mubr.f32.mxu0 0.0
        %1252 = vmatmul.mubr.f32.gmra.mrb[0].mxu0 %v1185
        %v1253 = vpop.f32.mrb[0].mxu0
        %v1254 = vadd.f32 0.0, %v1253
        %v1255 = vpop.f32.mrb[0].mxu0
        %1256 = vdwg.mxu0
        %1257 = vrot.lane.b32.xlu0 %v954, 64
        %v1258 = vpop.permute.xlu0 %1257
        %1259 = vrot.lane.b32.xlu0 %v959, 64
        %v1260 = vpop.permute.xlu0 %1259
        %1261 = vrot.lane.b32.xlu0 %v964, 64
        %v1262 = vpop.permute.xlu0 %1261
        %v1267 = vsel %vm1146, %v1174, 0
        %1269 = vmatprep.subr.mxu0 0.0
        %1270 = vmatpush1.msra.mxu0 %v1258
        %1271 = vmatprep.subr.mxu0 0.0
        %1272 = vmatpush1.msra.mxu0 %v1260
        %1273 = vmatprep.subr.mxu0 0.0
        %1274 = vmatpush1.msra.mxu0 %v1262
        %1275 = vmatprep.subr.mxu0 0.0
        %1276 = vmatpush1.msra.mxu0 0.0
        %1277 = vmatprep.subr.mxu0 0.0
        %1278 = vmatpush1.msra.mxu0 0.0
        %1279 = vmatprep.subr.mxu0 0.0
        %1280 = vmatpush1.msra.mxu0 0.0
        %1281 = vmatprep.subr.mxu0 0.0
        %1282 = vmatpush1.msra.mxu0 0.0
        %1283 = vmatprep.subr.mxu0 0.0
        %1284 = vmatpush1.msra.mxu0 0.0
        %1285 = vmatprep.subr.mxu0 0.0
        %1286 = vmatpush1.msra.mxu0 0.0
        %1287 = vmatprep.subr.mxu0 0.0
        %1288 = vmatpush1.msra.mxu0 0.0
        %1289 = vmatprep.subr.mxu0 0.0
        %1290 = vmatpush1.msra.mxu0 0.0
        %1291 = vmatprep.subr.mxu0 0.0
        %1292 = vmatpush1.msra.mxu0 0.0
        %1293 = vmatprep.subr.mxu0 0.0
        %1294 = vmatpush1.msra.mxu0 0.0
        %1295 = vmatprep.subr.mxu0 0.0
        %1296 = vmatpush1.msra.mxu0 0.0
        %1297 = vmatprep.subr.mxu0 0.0
        %1298 = vmatpush1.msra.mxu0 0.0
        %1299 = vmatprep.subr.mxu0 0.0
        %1300 = vmatpush1.msra.mxu0 0.0
        %1301 = vmatprep.subr.mxu0 0.0
        %1302 = vmatpush1.msra.mxu0 0.0
        %1303 = vmatprep.subr.mxu0 0.0
        %1304 = vmatpush1.msra.mxu0 0.0
        %1305 = vmatprep.subr.mxu0 0.0
        %1306 = vmatpush1.msra.mxu0 0.0
        %1307 = vmatprep.subr.mxu0 0.0
        %1308 = vmatpush1.msra.mxu0 0.0
        %1309 = vmatprep.subr.mxu0 0.0
        %1310 = vmatpush1.msra.mxu0 0.0
        %1311 = vmatprep.subr.mxu0 0.0
        %1312 = vmatpush1.msra.mxu0 0.0
        %1313 = vmatprep.subr.mxu0 0.0
        %1314 = vmatpush1.msra.mxu0 0.0
        %1315 = vmatprep.subr.mxu0 0.0
        %1316 = vmatpush1.msra.mxu0 0.0
        %1317 = vmatprep.subr.mxu0 0.0
        %1318 = vmatpush1.msra.mxu0 0.0
        %1319 = vmatprep.subr.mxu0 0.0
        %1320 = vmatpush1.msra.mxu0 0.0
        %1321 = vmatprep.subr.mxu0 0.0
        %1322 = vmatpush1.msra.mxu0 0.0
        %1323 = vmatprep.subr.mxu0 0.0
        %1324 = vmatpush1.msra.mxu0 0.0
        %1325 = vmatprep.subr.mxu0 0.0
        %1326 = vmatpush1.msra.mxu0 0.0
        %1327 = vmatprep.subr.mxu0 0.0
        %1328 = vmatpush1.msra.mxu0 0.0
        %1329 = vmatprep.subr.mxu0 0.0
        %1330 = vmatpush1.msra.mxu0 0.0
        %1331 = vmatprep.subr.mxu0 0.0
        %1332 = vmatpush1.msra.mxu0 0.0
        %1333 = vmatprep.mubr.f32.mxu0 0.0
        %1334 = vmatmul.mubr.f32.gmra.mrb[0].mxu0 %v1267
        %v1335 = vpop.f32.mrb[0].mxu0
        %v1336 = vadd.f32 0.0, %v1335
        %v1337 = vpop.f32.mrb[0].mxu0
        %1338 = vdwg.mxu0
        %1339 = vrot.lane.b32.xlu0 %v967, 120
        %v1340 = vpop.permute.xlu0 %1339
        %1341 = vrot.lane.b32.xlu0 %v939, 88
        %v1342 = vpop.permute.xlu0 %1341
        %1343 = vrot.lane.b32.xlu0 %v944, 88
        %v1344 = vpop.permute.xlu0 %1343
        %1345 = vrot.lane.b32.xlu0 %v949, 88
        %v1346 = vpop.permute.xlu0 %1345
        %v1347 = vsel %vm978, %v1340, 0
        %v1349 = vsel %vm978, %v1342, 0
        %v1351 = vsel %vm978, %v1344, 0
        %v1353 = vsel %vm978, %v1346, 0
        %1355 = vmatprep.subr.mxu0 0.0
        %1356 = vmatpush1.xpose.msra.mxu0 %v1349
        %1357 = vmatprep.subr.mxu0 0.0
        %1358 = vmatpush1.xpose.msra.mxu0 %v1351
        %1359 = vmatprep.subr.mxu0 0.0
        %1360 = vmatpush1.xpose.msra.mxu0 %v1353
        %1361 = vmatprep.subr.mxu0 0.0
        %1362 = vmatpush1.xpose.msra.mxu0 0.0
        %1363 = vmatprep.subr.mxu0 0.0
        %1364 = vmatpush1.xpose.msra.mxu0 0.0
        %1365 = vmatprep.subr.mxu0 0.0
        %1366 = vmatpush1.xpose.msra.mxu0 0.0
        %1367 = vmatprep.subr.mxu0 0.0
        %1368 = vmatpush1.xpose.msra.mxu0 0.0
        %1369 = vmatprep.subr.mxu0 0.0
        %1370 = vmatpush1.xpose.msra.mxu0 0.0
        %1371 = vmatprep.subr.mxu0 0.0
        %1372 = vmatpush1.xpose.msra.mxu0 0.0
        %1373 = vmatprep.subr.mxu0 0.0
        %1374 = vmatpush1.xpose.msra.mxu0 0.0
        %1375 = vmatprep.subr.mxu0 0.0
        %1376 = vmatpush1.xpose.msra.mxu0 0.0
        %1377 = vmatprep.subr.mxu0 0.0
        %1378 = vmatpush1.xpose.msra.mxu0 0.0
        %1379 = vmatprep.subr.mxu0 0.0
        %1380 = vmatpush1.xpose.msra.mxu0 0.0
        %1381 = vmatprep.subr.mxu0 0.0
        %1382 = vmatpush1.xpose.msra.mxu0 0.0
        %1383 = vmatprep.subr.mxu0 0.0
        %1384 = vmatpush1.xpose.msra.mxu0 0.0
        %1385 = vmatprep.subr.mxu0 0.0
        %1386 = vmatpush1.xpose.msra.mxu0 0.0
        %1387 = vmatprep.subr.mxu0 0.0
        %1388 = vmatpush1.xpose.msra.mxu0 0.0
        %1389 = vmatprep.subr.mxu0 0.0
        %1390 = vmatpush1.xpose.msra.mxu0 0.0
        %1391 = vmatprep.subr.mxu0 0.0
        %1392 = vmatpush1.xpose.msra.mxu0 0.0
        %1393 = vmatprep.subr.mxu0 0.0
        %1394 = vmatpush1.xpose.msra.mxu0 0.0
        %1395 = vmatprep.subr.mxu0 0.0
        %1396 = vmatpush1.xpose.msra.mxu0 0.0
        %1397 = vmatprep.subr.mxu0 0.0
        %1398 = vmatpush1.xpose.msra.mxu0 0.0
        %1399 = vmatprep.subr.mxu0 0.0
        %1400 = vmatpush1.xpose.msra.mxu0 0.0
        %1401 = vmatprep.subr.mxu0 0.0
        %1402 = vmatpush1.xpose.msra.mxu0 0.0
        %1403 = vmatprep.subr.mxu0 0.0
        %1404 = vmatpush1.xpose.msra.mxu0 0.0
        %1405 = vmatprep.subr.mxu0 0.0
        %1406 = vmatpush1.xpose.msra.mxu0 0.0
        %1407 = vmatprep.subr.mxu0 0.0
        %1408 = vmatpush1.xpose.msra.mxu0 0.0
        %1409 = vmatprep.subr.mxu0 0.0
        %1410 = vmatpush1.xpose.msra.mxu0 0.0
        %1411 = vmatprep.subr.mxu0 0.0
        %1412 = vmatpush1.xpose.msra.mxu0 0.0
        %1413 = vmatprep.subr.mxu0 0.0
        %1414 = vmatpush1.xpose.msra.mxu0 0.0
        %1415 = vmatprep.subr.mxu0 0.0
        %1416 = vmatpush1.xpose.msra.mxu0 0.0
        %1417 = vmatprep.subr.mxu0 0.0
        %1418 = vmatpush1.xpose.msra.mxu0 0.0
        %1419 = vmatprep.mubr.f32.mxu0 0.0
        %1420 = vmatmul.mubr.f32.gmra.mrb[0].mxu0 %v1347
        %v1421 = vpop.f32.mrb[0].mxu0
        %v1422 = vadd.f32 0.0, %v1421
        %v1423 = vpop.f32.mrb[0].mxu0
        %1424 = vdwg.mxu0
        %1425 = vrot.lane.b32.xlu0 %v968, 120
        %v1426 = vpop.permute.xlu0 %1425
        %1427 = vrot.lane.b32.xlu0 %v954, 88
        %v1428 = vpop.permute.xlu0 %1427
        %1429 = vrot.lane.b32.xlu0 %v959, 88
        %v1430 = vpop.permute.xlu0 %1429
        %1431 = vrot.lane.b32.xlu0 %v964, 88
        %v1432 = vpop.permute.xlu0 %1431
        %v1433 = vsel %vm978, %v1426, 0
        %v1435 = vsel %vm978, %v1428, 0
        %v1437 = vsel %vm978, %v1430, 0
        %v1439 = vsel %vm978, %v1432, 0
        %1441 = vmatprep.subr.mxu0 0.0
        %1442 = vmatpush1.xpose.msra.mxu0 %v1435
        %1443 = vmatprep.subr.mxu0 0.0
        %1444 = vmatpush1.xpose.msra.mxu0 %v1437
        %1445 = vmatprep.subr.mxu0 0.0
        %1446 = vmatpush1.xpose.msra.mxu0 %v1439
        %1447 = vmatprep.subr.mxu0 0.0
        %1448 = vmatpush1.xpose.msra.mxu0 0.0
        %1449 = vmatprep.subr.mxu0 0.0
        %1450 = vmatpush1.xpose.msra.mxu0 0.0
        %1451 = vmatprep.subr.mxu0 0.0
        %1452 = vmatpush1.xpose.msra.mxu0 0.0
        %1453 = vmatprep.subr.mxu0 0.0
        %1454 = vmatpush1.xpose.msra.mxu0 0.0
        %1455 = vmatprep.subr.mxu0 0.0
        %1456 = vmatpush1.xpose.msra.mxu0 0.0
        %1457 = vmatprep.subr.mxu0 0.0
        %1458 = vmatpush1.xpose.msra.mxu0 0.0
        %1459 = vmatprep.subr.mxu0 0.0
        %1460 = vmatpush1.xpose.msra.mxu0 0.0
        %1461 = vmatprep.subr.mxu0 0.0
        %1462 = vmatpush1.xpose.msra.mxu0 0.0
        %1463 = vmatprep.subr.mxu0 0.0
        %1464 = vmatpush1.xpose.msra.mxu0 0.0
        %1465 = vmatprep.subr.mxu0 0.0
        %1466 = vmatpush1.xpose.msra.mxu0 0.0
        %1467 = vmatprep.subr.mxu0 0.0
        %1468 = vmatpush1.xpose.msra.mxu0 0.0
        %1469 = vmatprep.subr.mxu0 0.0
        %1470 = vmatpush1.xpose.msra.mxu0 0.0
        %1471 = vmatprep.subr.mxu0 0.0
        %1472 = vmatpush1.xpose.msra.mxu0 0.0
        %1473 = vmatprep.subr.mxu0 0.0
        %1474 = vmatpush1.xpose.msra.mxu0 0.0
        %1475 = vmatprep.subr.mxu0 0.0
        %1476 = vmatpush1.xpose.msra.mxu0 0.0
        %1477 = vmatprep.subr.mxu0 0.0
        %1478 = vmatpush1.xpose.msra.mxu0 0.0
        %1479 = vmatprep.subr.mxu0 0.0
        %1480 = vmatpush1.xpose.msra.mxu0 0.0
        %1481 = vmatprep.subr.mxu0 0.0
        %1482 = vmatpush1.xpose.msra.mxu0 0.0
        %1483 = vmatprep.subr.mxu0 0.0
        %1484 = vmatpush1.xpose.msra.mxu0 0.0
        %1485 = vmatprep.subr.mxu0 0.0
        %1486 = vmatpush1.xpose.msra.mxu0 0.0
        %1487 = vmatprep.subr.mxu0 0.0
        %1488 = vmatpush1.xpose.msra.mxu0 0.0
        %1489 = vmatprep.subr.mxu0 0.0
        %1490 = vmatpush1.xpose.msra.mxu0 0.0
        %1491 = vmatprep.subr.mxu0 0.0
        %1492 = vmatpush1.xpose.msra.mxu0 0.0
        %1493 = vmatprep.subr.mxu0 0.0
        %1494 = vmatpush1.xpose.msra.mxu0 0.0
        %1495 = vmatprep.subr.mxu0 0.0
        %1496 = vmatpush1.xpose.msra.mxu0 0.0
        %1497 = vmatprep.subr.mxu0 0.0
        %1498 = vmatpush1.xpose.msra.mxu0 0.0
        %1499 = vmatprep.subr.mxu0 0.0
        %1500 = vmatpush1.xpose.msra.mxu0 0.0
        %1501 = vmatprep.subr.mxu0 0.0
        %1502 = vmatpush1.xpose.msra.mxu0 0.0
        %1503 = vmatprep.subr.mxu0 0.0
        %1504 = vmatpush1.xpose.msra.mxu0 0.0
        %1505 = vmatprep.mubr.f32.mxu0 0.0
        %1506 = vmatmul.mubr.f32.gmra.mrb[0].mxu0 %v1433
        %v1507 = vpop.f32.mrb[0].mxu0
        %v1508 = vadd.f32 0.0, %v1507
        %v1509 = vpop.f32.mrb[0].mxu0
        %1510 = vdwg.mxu0
        %v1511 = vsel %vm1146, %v1422, -inf
        %1512 = vmax.xlane.f32.xlu0 %v1511
        %v1513 = vpop.xlane.xlu0 %1512
        %v1514 = vsel %vm1146, %v1508, -inf
        %1515 = vmax.xlane.f32.xlu0 %v1514
        %v1516 = vpop.xlane.xlu0 %1515
        %v1517 = vsub.f32 %v1422, %v1513
        %v1518 = vsub.f32 %v1508, %v1516
        %v1519 = vmul.f32 %v1517, 1.442695
        %v1520 = vpow.pop %v1519
        %v1521 = vmul.f32 %v1518, 1.442695
        %v1522 = vpow.pop %v1521
        %v1523 = vsel %vm1146, %v1520, 0.0
        %1524 = vadd.xlane.f32.xlu0 %v1523
        %v1525 = vpop.xlane.xlu0 %1524
        %v1526 = vsel %vm1146, %v1522, 0.0
        %1527 = vadd.xlane.f32.xlu0 %v1526
        %v1528 = vpop.xlane.xlu0 %1527
        %v1529 = vrcp.pop %v1525
        %v1530 = vrcp.pop %v1528
        %v1531 = vmul.f32 %v1525, %v1529
        %v1532 = vmul.f32 %v1528, %v1530
        %v1533 = vsub.f32 2.0, %v1531
        %v1534 = vsub.f32 2.0, %v1532
        %v1535 = vmul.f32 %v1529, %v1533
        %v1536 = vmul.f32 %v1530, %v1534
        %v1537 = vmul.f32 %v1520, %v1535
        %v1538 = vmul.f32 %v1522, %v1536
        %1539 = vrot.lane.b32.xlu0 %v939, 56
        %v1540 = vpop.permute.xlu0 %1539
        %1541 = vrot.lane.b32.xlu0 %v944, 56
        %v1542 = vpop.permute.xlu0 %1541
        %1543 = vrot.lane.b32.xlu0 %v949, 56
        %v1544 = vpop.permute.xlu0 %1543
        %v1549 = vsel %vm1146, %v1537, 0
        %1551 = vmatprep.subr.mxu0 0.0
        %1552 = vmatpush1.msra.mxu0 %v1540
        %1553 = vmatprep.subr.mxu0 0.0
        %1554 = vmatpush1.msra.mxu0 %v1542
        %1555 = vmatprep.subr.mxu0 0.0
        %1556 = vmatpush1.msra.mxu0 %v1544
        %1557 = vmatprep.subr.mxu0 0.0
        %1558 = vmatpush1.msra.mxu0 0.0
        %1559 = vmatprep.subr.mxu0 0.0
        %1560 = vmatpush1.msra.mxu0 0.0
        %1561 = vmatprep.subr.mxu0 0.0
        %1562 = vmatpush1.msra.mxu0 0.0
        %1563 = vmatprep.subr.mxu0 0.0
        %1564 = vmatpush1.msra.mxu0 0.0
        %1565 = vmatprep.subr.mxu0 0.0
        %1566 = vmatpush1.msra.mxu0 0.0
        %1567 = vmatprep.subr.mxu0 0.0
        %1568 = vmatpush1.msra.mxu0 0.0
        %1569 = vmatprep.subr.mxu0 0.0
        %1570 = vmatpush1.msra.mxu0 0.0
        %1571 = vmatprep.subr.mxu0 0.0
        %1572 = vmatpush1.msra.mxu0 0.0
        %1573 = vmatprep.subr.mxu0 0.0
        %1574 = vmatpush1.msra.mxu0 0.0
        %1575 = vmatprep.subr.mxu0 0.0
        %1576 = vmatpush1.msra.mxu0 0.0
        %1577 = vmatprep.subr.mxu0 0.0
        %1578 = vmatpush1.msra.mxu0 0.0
        %1579 = vmatprep.subr.mxu0 0.0
        %1580 = vmatpush1.msra.mxu0 0.0
        %1581 = vmatprep.subr.mxu0 0.0
        %1582 = vmatpush1.msra.mxu0 0.0
        %1583 = vmatprep.subr.mxu0 0.0
        %1584 = vmatpush1.msra.mxu0 0.0
        %1585 = vmatprep.subr.mxu0 0.0
        %1586 = vmatpush1.msra.mxu0 0.0
        %1587 = vmatprep.subr.mxu0 0.0
        %1588 = vmatpush1.msra.mxu0 0.0
        %1589 = vmatprep.subr.mxu0 0.0
        %1590 = vmatpush1.msra.mxu0 0.0
        %1591 = vmatprep.subr.mxu0 0.0
        %1592 = vmatpush1.msra.mxu0 0.0
        %1593 = vmatprep.subr.mxu0 0.0
        %1594 = vmatpush1.msra.mxu0 0.0
        %1595 = vmatprep.subr.mxu0 0.0
        %1596 = vmatpush1.msra.mxu0 0.0
        %1597 = vmatprep.subr.mxu0 0.0
        %1598 = vmatpush1.msra.mxu0 0.0
        %1599 = vmatprep.subr.mxu0 0.0
        %1600 = vmatpush1.msra.mxu0 0.0
        %1601 = vmatprep.subr.mxu0 0.0
        %1602 = vmatpush1.msra.mxu0 0.0
        %1603 = vmatprep.subr.mxu0 0.0
        %1604 = vmatpush1.msra.mxu0 0.0
        %1605 = vmatprep.subr.mxu0 0.0
        %1606 = vmatpush1.msra.mxu0 0.0
        %1607 = vmatprep.subr.mxu0 0.0
        %1608 = vmatpush1.msra.mxu0 0.0
        %1609 = vmatprep.subr.mxu0 0.0
        %1610 = vmatpush1.msra.mxu0 0.0
        %1611 = vmatprep.subr.mxu0 0.0
        %1612 = vmatpush1.msra.mxu0 0.0
        %1613 = vmatprep.subr.mxu0 0.0
        %1614 = vmatpush1.msra.mxu0 0.0
        %1615 = vmatprep.mubr.f32.mxu0 0.0
        %1616 = vmatmul.mubr.f32.gmra.mrb[0].mxu0 %v1549
        %v1617 = vpop.f32.mrb[0].mxu0
        %v1618 = vadd.f32 0.0, %v1617
        %v1619 = vpop.f32.mrb[0].mxu0
        %1620 = vdwg.mxu0
        %1621 = vrot.lane.b32.xlu0 %v954, 56
        %v1622 = vpop.permute.xlu0 %1621
        %1623 = vrot.lane.b32.xlu0 %v959, 56
        %v1624 = vpop.permute.xlu0 %1623
        %1625 = vrot.lane.b32.xlu0 %v964, 56
        %v1626 = vpop.permute.xlu0 %1625
        %v1631 = vsel %vm1146, %v1538, 0
        %1633 = vmatprep.subr.mxu0 0.0
        %1634 = vmatpush1.msra.mxu0 %v1622
        %1635 = vmatprep.subr.mxu0 0.0
        %1636 = vmatpush1.msra.mxu0 %v1624
        %1637 = vmatprep.subr.mxu0 0.0
        %1638 = vmatpush1.msra.mxu0 %v1626
        %1639 = vmatprep.subr.mxu0 0.0
        %1640 = vmatpush1.msra.mxu0 0.0
        %1641 = vmatprep.subr.mxu0 0.0
        %1642 = vmatpush1.msra.mxu0 0.0
        %1643 = vmatprep.subr.mxu0 0.0
        %1644 = vmatpush1.msra.mxu0 0.0
        %1645 = vmatprep.subr.mxu0 0.0
        %1646 = vmatpush1.msra.mxu0 0.0
        %1647 = vmatprep.subr.mxu0 0.0
        %1648 = vmatpush1.msra.mxu0 0.0
        %1649 = vmatprep.subr.mxu0 0.0
        %1650 = vmatpush1.msra.mxu0 0.0
        %1651 = vmatprep.subr.mxu0 0.0
        %1652 = vmatpush1.msra.mxu0 0.0
        %1653 = vmatprep.subr.mxu0 0.0
        %1654 = vmatpush1.msra.mxu0 0.0
        %1655 = vmatprep.subr.mxu0 0.0
        %1656 = vmatpush1.msra.mxu0 0.0
        %1657 = vmatprep.subr.mxu0 0.0
        %1658 = vmatpush1.msra.mxu0 0.0
        %1659 = vmatprep.subr.mxu0 0.0
        %1660 = vmatpush1.msra.mxu0 0.0
        %1661 = vmatprep.subr.mxu0 0.0
        %1662 = vmatpush1.msra.mxu0 0.0
        %1663 = vmatprep.subr.mxu0 0.0
        %1664 = vmatpush1.msra.mxu0 0.0
        %1665 = vmatprep.subr.mxu0 0.0
        %1666 = vmatpush1.msra.mxu0 0.0
        %1667 = vmatprep.subr.mxu0 0.0
        %1668 = vmatpush1.msra.mxu0 0.0
        %1669 = vmatprep.subr.mxu0 0.0
        %1670 = vmatpush1.msra.mxu0 0.0
        %1671 = vmatprep.subr.mxu0 0.0
        %1672 = vmatpush1.msra.mxu0 0.0
        %1673 = vmatprep.subr.mxu0 0.0
        %1674 = vmatpush1.msra.mxu0 0.0
        %1675 = vmatprep.subr.mxu0 0.0
        %1676 = vmatpush1.msra.mxu0 0.0
        %1677 = vmatprep.subr.mxu0 0.0
        %1678 = vmatpush1.msra.mxu0 0.0
        %1679 = vmatprep.subr.mxu0 0.0
        %1680 = vmatpush1.msra.mxu0 0.0
        %1681 = vmatprep.subr.mxu0 0.0
        %1682 = vmatpush1.msra.mxu0 0.0
        %1683 = vmatprep.subr.mxu0 0.0
        %1684 = vmatpush1.msra.mxu0 0.0
        %1685 = vmatprep.subr.mxu0 0.0
        %1686 = vmatpush1.msra.mxu0 0.0
        %1687 = vmatprep.subr.mxu0 0.0
        %1688 = vmatpush1.msra.mxu0 0.0
        %1689 = vmatprep.subr.mxu0 0.0
        %1690 = vmatpush1.msra.mxu0 0.0
        %1691 = vmatprep.subr.mxu0 0.0
        %1692 = vmatpush1.msra.mxu0 0.0
        %1693 = vmatprep.subr.mxu0 0.0
        %1694 = vmatpush1.msra.mxu0 0.0
        %1695 = vmatprep.subr.mxu0 0.0
        %1696 = vmatpush1.msra.mxu0 0.0
        %1697 = vmatprep.mubr.f32.mxu0 0.0
        %1698 = vmatmul.mubr.f32.gmra.mrb[0].mxu0 %v1631
        %v1699 = vpop.f32.mrb[0].mxu0
        %v1700 = vadd.f32 0.0, %v1699
        %v1701 = vpop.f32.mrb[0].mxu0
        %1702 = vdwg.mxu0
        %1703 = vrot.lane.b32.xlu0 %v967, 112
        %v1704 = vpop.permute.xlu0 %1703
        %1705 = vrot.lane.b32.xlu0 %v939, 80
        %v1706 = vpop.permute.xlu0 %1705
        %1707 = vrot.lane.b32.xlu0 %v944, 80
        %v1708 = vpop.permute.xlu0 %1707
        %1709 = vrot.lane.b32.xlu0 %v949, 80
        %v1710 = vpop.permute.xlu0 %1709
        %v1711 = vsel %vm978, %v1704, 0
        %v1713 = vsel %vm978, %v1706, 0
        %v1715 = vsel %vm978, %v1708, 0
        %v1717 = vsel %vm978, %v1710, 0
        %1719 = vmatprep.subr.mxu0 0.0
        %1720 = vmatpush1.xpose.msra.mxu0 %v1713
        %1721 = vmatprep.subr.mxu0 0.0
        %1722 = vmatpush1.xpose.msra.mxu0 %v1715
        %1723 = vmatprep.subr.mxu0 0.0
        %1724 = vmatpush1.xpose.msra.mxu0 %v1717
        %1725 = vmatprep.subr.mxu0 0.0
        %1726 = vmatpush1.xpose.msra.mxu0 0.0
        %1727 = vmatprep.subr.mxu0 0.0
        %1728 = vmatpush1.xpose.msra.mxu0 0.0
        %1729 = vmatprep.subr.mxu0 0.0
        %1730 = vmatpush1.xpose.msra.mxu0 0.0
        %1731 = vmatprep.subr.mxu0 0.0
        %1732 = vmatpush1.xpose.msra.mxu0 0.0
        %1733 = vmatprep.subr.mxu0 0.0
        %1734 = vmatpush1.xpose.msra.mxu0 0.0
        %1735 = vmatprep.subr.mxu0 0.0
        %1736 = vmatpush1.xpose.msra.mxu0 0.0
        %1737 = vmatprep.subr.mxu0 0.0
        %1738 = vmatpush1.xpose.msra.mxu0 0.0
        %1739 = vmatprep.subr.mxu0 0.0
        %1740 = vmatpush1.xpose.msra.mxu0 0.0
        %1741 = vmatprep.subr.mxu0 0.0
        %1742 = vmatpush1.xpose.msra.mxu0 0.0
        %1743 = vmatprep.subr.mxu0 0.0
        %1744 = vmatpush1.xpose.msra.mxu0 0.0
        %1745 = vmatprep.subr.mxu0 0.0
        %1746 = vmatpush1.xpose.msra.mxu0 0.0
        %1747 = vmatprep.subr.mxu0 0.0
        %1748 = vmatpush1.xpose.msra.mxu0 0.0
        %1749 = vmatprep.subr.mxu0 0.0
        %1750 = vmatpush1.xpose.msra.mxu0 0.0
        %1751 = vmatprep.subr.mxu0 0.0
        %1752 = vmatpush1.xpose.msra.mxu0 0.0
        %1753 = vmatprep.subr.mxu0 0.0
        %1754 = vmatpush1.xpose.msra.mxu0 0.0
        %1755 = vmatprep.subr.mxu0 0.0
        %1756 = vmatpush1.xpose.msra.mxu0 0.0
        %1757 = vmatprep.subr.mxu0 0.0
        %1758 = vmatpush1.xpose.msra.mxu0 0.0
        %1759 = vmatprep.subr.mxu0 0.0
        %1760 = vmatpush1.xpose.msra.mxu0 0.0
        %1761 = vmatprep.subr.mxu0 0.0
        %1762 = vmatpush1.xpose.msra.mxu0 0.0
        %1763 = vmatprep.subr.mxu0 0.0
        %1764 = vmatpush1.xpose.msra.mxu0 0.0
        %1765 = vmatprep.subr.mxu0 0.0
        %1766 = vmatpush1.xpose.msra.mxu0 0.0
        %1767 = vmatprep.subr.mxu0 0.0
        %1768 = vmatpush1.xpose.msra.mxu0 0.0
        %1769 = vmatprep.subr.mxu0 0.0
        %1770 = vmatpush1.xpose.msra.mxu0 0.0
        %1771 = vmatprep.subr.mxu0 0.0
        %1772 = vmatpush1.xpose.msra.mxu0 0.0
        %1773 = vmatprep.subr.mxu0 0.0
        %1774 = vmatpush1.xpose.msra.mxu0 0.0
        %1775 = vmatprep.subr.mxu0 0.0
        %1776 = vmatpush1.xpose.msra.mxu0 0.0
        %1777 = vmatprep.subr.mxu0 0.0
        %1778 = vmatpush1.xpose.msra.mxu0 0.0
        %1779 = vmatprep.subr.mxu0 0.0
        %1780 = vmatpush1.xpose.msra.mxu0 0.0
        %1781 = vmatprep.subr.mxu0 0.0
        %1782 = vmatpush1.xpose.msra.mxu0 0.0
        %1783 = vmatprep.mubr.f32.mxu0 0.0
        %1784 = vmatmul.mubr.f32.gmra.mrb[0].mxu0 %v1711
        %v1785 = vpop.f32.mrb[0].mxu0
        %v1786 = vadd.f32 0.0, %v1785
        %v1787 = vpop.f32.mrb[0].mxu0
        %1788 = vdwg.mxu0
        %1789 = vrot.lane.b32.xlu0 %v968, 112
        %v1790 = vpop.permute.xlu0 %1789
        %1791 = vrot.lane.b32.xlu0 %v954, 80
        %v1792 = vpop.permute.xlu0 %1791
        %1793 = vrot.lane.b32.xlu0 %v959, 80
        %v1794 = vpop.permute.xlu0 %1793
        %1795 = vrot.lane.b32.xlu0 %v964, 80
        %v1796 = vpop.permute.xlu0 %1795
        %v1797 = vsel %vm978, %v1790, 0
        %v1799 = vsel %vm978, %v1792, 0
        %v1801 = vsel %vm978, %v1794, 0
        %v1803 = vsel %vm978, %v1796, 0
        %1805 = vmatprep.subr.mxu0 0.0
        %1806 = vmatpush1.xpose.msra.mxu0 %v1799
        %1807 = vmatprep.subr.mxu0 0.0
        %1808 = vmatpush1.xpose.msra.mxu0 %v1801
        %1809 = vmatprep.subr.mxu0 0.0
        %1810 = vmatpush1.xpose.msra.mxu0 %v1803
        %1811 = vmatprep.subr.mxu0 0.0
        %1812 = vmatpush1.xpose.msra.mxu0 0.0
        %1813 = vmatprep.subr.mxu0 0.0
        %1814 = vmatpush1.xpose.msra.mxu0 0.0
        %1815 = vmatprep.subr.mxu0 0.0
        %1816 = vmatpush1.xpose.msra.mxu0 0.0
        %1817 = vmatprep.subr.mxu0 0.0
        %1818 = vmatpush1.xpose.msra.mxu0 0.0
        %1819 = vmatprep.subr.mxu0 0.0
        %1820 = vmatpush1.xpose.msra.mxu0 0.0
        %1821 = vmatprep.subr.mxu0 0.0
        %1822 = vmatpush1.xpose.msra.mxu0 0.0
        %1823 = vmatprep.subr.mxu0 0.0
        %1824 = vmatpush1.xpose.msra.mxu0 0.0
        %1825 = vmatprep.subr.mxu0 0.0
        %1826 = vmatpush1.xpose.msra.mxu0 0.0
        %1827 = vmatprep.subr.mxu0 0.0
        %1828 = vmatpush1.xpose.msra.mxu0 0.0
        %1829 = vmatprep.subr.mxu0 0.0
        %1830 = vmatpush1.xpose.msra.mxu0 0.0
        %1831 = vmatprep.subr.mxu0 0.0
        %1832 = vmatpush1.xpose.msra.mxu0 0.0
        %1833 = vmatprep.subr.mxu0 0.0
        %1834 = vmatpush1.xpose.msra.mxu0 0.0
        %1835 = vmatprep.subr.mxu0 0.0
        %1836 = vmatpush1.xpose.msra.mxu0 0.0
        %1837 = vmatprep.subr.mxu0 0.0
        %1838 = vmatpush1.xpose.msra.mxu0 0.0
        %1839 = vmatprep.subr.mxu0 0.0
        %1840 = vmatpush1.xpose.msra.mxu0 0.0
        %1841 = vmatprep.subr.mxu0 0.0
        %1842 = vmatpush1.xpose.msra.mxu0 0.0
        %1843 = vmatprep.subr.mxu0 0.0
        %1844 = vmatpush1.xpose.msra.mxu0 0.0
        %1845 = vmatprep.subr.mxu0 0.0
        %1846 = vmatpush1.xpose.msra.mxu0 0.0
        %1847 = vmatprep.subr.mxu0 0.0
        %1848 = vmatpush1.xpose.msra.mxu0 0.0
        %1849 = vmatprep.subr.mxu0 0.0
        %1850 = vmatpush1.xpose.msra.mxu0 0.0
        %1851 = vmatprep.subr.mxu0 0.0
        %1852 = vmatpush1.xpose.msra.mxu0 0.0
        %1853 = vmatprep.subr.mxu0 0.0
        %1854 = vmatpush1.xpose.msra.mxu0 0.0
        %1855 = vmatprep.subr.mxu0 0.0
        %1856 = vmatpush1.xpose.msra.mxu0 0.0
        %1857 = vmatprep.subr.mxu0 0.0
        %1858 = vmatpush1.xpose.msra.mxu0 0.0
        %1859 = vmatprep.subr.mxu0 0.0
        %1860 = vmatpush1.xpose.msra.mxu0 0.0
        %1861 = vmatprep.subr.mxu0 0.0
        %1862 = vmatpush1.xpose.msra.mxu0 0.0
        %1863 = vmatprep.subr.mxu0 0.0
        %1864 = vmatpush1.xpose.msra.mxu0 0.0
        %1865 = vmatprep.subr.mxu0 0.0
        %1866 = vmatpush1.xpose.msra.mxu0 0.0
        %1867 = vmatprep.subr.mxu0 0.0
        %1868 = vmatpush1.xpose.msra.mxu0 0.0
        %1869 = vmatprep.mubr.f32.mxu0 0.0
        %1870 = vmatmul.mubr.f32.gmra.mrb[0].mxu0 %v1797
        %v1871 = vpop.f32.mrb[0].mxu0
        %v1872 = vadd.f32 0.0, %v1871
        %v1873 = vpop.f32.mrb[0].mxu0
        %1874 = vdwg.mxu0
        %v1875 = vsel %vm1146, %v1786, -inf
        %1876 = vmax.xlane.f32.xlu0 %v1875
        %v1877 = vpop.xlane.xlu0 %1876
        %v1878 = vsel %vm1146, %v1872, -inf
        %1879 = vmax.xlane.f32.xlu0 %v1878
        %v1880 = vpop.xlane.xlu0 %1879
        %v1881 = vsub.f32 %v1786, %v1877
        %v1882 = vsub.f32 %v1872, %v1880
        %v1883 = vmul.f32 %v1881, 1.442695
        %v1884 = vpow.pop %v1883
        %v1885 = vmul.f32 %v1882, 1.442695
        %v1886 = vpow.pop %v1885
        %v1887 = vsel %vm1146, %v1884, 0.0
        %1888 = vadd.xlane.f32.xlu0 %v1887
        %v1889 = vpop.xlane.xlu0 %1888
        %v1890 = vsel %vm1146, %v1886, 0.0
        %1891 = vadd.xlane.f32.xlu0 %v1890
        %v1892 = vpop.xlane.xlu0 %1891
        %v1893 = vrcp.pop %v1889
        %v1894 = vrcp.pop %v1892
        %v1895 = vmul.f32 %v1889, %v1893
        %v1896 = vmul.f32 %v1892, %v1894
        %v1897 = vsub.f32 2.0, %v1895
        %v1898 = vsub.f32 2.0, %v1896
        %v1899 = vmul.f32 %v1893, %v1897
        %v1900 = vmul.f32 %v1894, %v1898
        %v1901 = vmul.f32 %v1884, %v1899
        %v1902 = vmul.f32 %v1886, %v1900
        %1903 = vrot.lane.b32.xlu0 %v939, 48
        %v1904 = vpop.permute.xlu0 %1903
        %1905 = vrot.lane.b32.xlu0 %v944, 48
        %v1906 = vpop.permute.xlu0 %1905
        %1907 = vrot.lane.b32.xlu0 %v949, 48
        %v1908 = vpop.permute.xlu0 %1907
        %v1913 = vsel %vm1146, %v1901, 0
        %1915 = vmatprep.subr.mxu0 0.0
        %1916 = vmatpush1.msra.mxu0 %v1904
        %1917 = vmatprep.subr.mxu0 0.0
        %1918 = vmatpush1.msra.mxu0 %v1906
        %1919 = vmatprep.subr.mxu0 0.0
        %1920 = vmatpush1.msra.mxu0 %v1908
        %1921 = vmatprep.subr.mxu0 0.0
        %1922 = vmatpush1.msra.mxu0 0.0
        %1923 = vmatprep.subr.mxu0 0.0
        %1924 = vmatpush1.msra.mxu0 0.0
        %1925 = vmatprep.subr.mxu0 0.0
        %1926 = vmatpush1.msra.mxu0 0.0
        %1927 = vmatprep.subr.mxu0 0.0
        %1928 = vmatpush1.msra.mxu0 0.0
        %1929 = vmatprep.subr.mxu0 0.0
        %1930 = vmatpush1.msra.mxu0 0.0
        %1931 = vmatprep.subr.mxu0 0.0
        %1932 = vmatpush1.msra.mxu0 0.0
        %1933 = vmatprep.subr.mxu0 0.0
        %1934 = vmatpush1.msra.mxu0 0.0
        %1935 = vmatprep.subr.mxu0 0.0
        %1936 = vmatpush1.msra.mxu0 0.0
        %1937 = vmatprep.subr.mxu0 0.0
        %1938 = vmatpush1.msra.mxu0 0.0
        %1939 = vmatprep.subr.mxu0 0.0
        %1940 = vmatpush1.msra.mxu0 0.0
        %1941 = vmatprep.subr.mxu0 0.0
        %1942 = vmatpush1.msra.mxu0 0.0
        %1943 = vmatprep.subr.mxu0 0.0
        %1944 = vmatpush1.msra.mxu0 0.0
        %1945 = vmatprep.subr.mxu0 0.0
        %1946 = vmatpush1.msra.mxu0 0.0
        %1947 = vmatprep.subr.mxu0 0.0
        %1948 = vmatpush1.msra.mxu0 0.0
        %1949 = vmatprep.subr.mxu0 0.0
        %1950 = vmatpush1.msra.mxu0 0.0
        %1951 = vmatprep.subr.mxu0 0.0
        %1952 = vmatpush1.msra.mxu0 0.0
        %1953 = vmatprep.subr.mxu0 0.0
        %1954 = vmatpush1.msra.mxu0 0.0
        %1955 = vmatprep.subr.mxu0 0.0
        %1956 = vmatpush1.msra.mxu0 0.0
        %1957 = vmatprep.subr.mxu0 0.0
        %1958 = vmatpush1.msra.mxu0 0.0
        %1959 = vmatprep.subr.mxu0 0.0
        %1960 = vmatpush1.msra.mxu0 0.0
        %1961 = vmatprep.subr.mxu0 0.0
        %1962 = vmatpush1.msra.mxu0 0.0
        %1963 = vmatprep.subr.mxu0 0.0
        %1964 = vmatpush1.msra.mxu0 0.0
        %1965 = vmatprep.subr.mxu0 0.0
        %1966 = vmatpush1.msra.mxu0 0.0
        %1967 = vmatprep.subr.mxu0 0.0
        %1968 = vmatpush1.msra.mxu0 0.0
        %1969 = vmatprep.subr.mxu0 0.0
        %1970 = vmatpush1.msra.mxu0 0.0
        %1971 = vmatprep.subr.mxu0 0.0
        %1972 = vmatpush1.msra.mxu0 0.0
        %1973 = vmatprep.subr.mxu0 0.0
        %1974 = vmatpush1.msra.mxu0 0.0
        %1975 = vmatprep.subr.mxu0 0.0
        %1976 = vmatpush1.msra.mxu0 0.0
        %1977 = vmatprep.subr.mxu0 0.0
        %1978 = vmatpush1.msra.mxu0 0.0
        %1979 = vmatprep.mubr.f32.mxu0 0.0
        %1980 = vmatmul.mubr.f32.gmra.mrb[0].mxu0 %v1913
        %v1981 = vpop.f32.mrb[0].mxu0
        %v1982 = vadd.f32 0.0, %v1981
        %v1983 = vpop.f32.mrb[0].mxu0
        %1984 = vdwg.mxu0
        %1985 = vrot.lane.b32.xlu0 %v954, 48
        %v1986 = vpop.permute.xlu0 %1985
        %1987 = vrot.lane.b32.xlu0 %v959, 48
        %v1988 = vpop.permute.xlu0 %1987
        %1989 = vrot.lane.b32.xlu0 %v964, 48
        %v1990 = vpop.permute.xlu0 %1989
        %v1995 = vsel %vm1146, %v1902, 0
        %1997 = vmatprep.subr.mxu0 0.0
        %1998 = vmatpush1.msra.mxu0 %v1986
        %1999 = vmatprep.subr.mxu0 0.0
        %2000 = vmatpush1.msra.mxu0 %v1988
        %2001 = vmatprep.subr.mxu0 0.0
        %2002 = vmatpush1.msra.mxu0 %v1990
        %2003 = vmatprep.subr.mxu0 0.0
        %2004 = vmatpush1.msra.mxu0 0.0
        %2005 = vmatprep.subr.mxu0 0.0
        %2006 = vmatpush1.msra.mxu0 0.0
        %2007 = vmatprep.subr.mxu0 0.0
        %2008 = vmatpush1.msra.mxu0 0.0
        %2009 = vmatprep.subr.mxu0 0.0
        %2010 = vmatpush1.msra.mxu0 0.0
        %2011 = vmatprep.subr.mxu0 0.0
        %2012 = vmatpush1.msra.mxu0 0.0
        %2013 = vmatprep.subr.mxu0 0.0
        %2014 = vmatpush1.msra.mxu0 0.0
        %2015 = vmatprep.subr.mxu0 0.0
        %2016 = vmatpush1.msra.mxu0 0.0
        %2017 = vmatprep.subr.mxu0 0.0
        %2018 = vmatpush1.msra.mxu0 0.0
        %2019 = vmatprep.subr.mxu0 0.0
        %2020 = vmatpush1.msra.mxu0 0.0
        %2021 = vmatprep.subr.mxu0 0.0
        %2022 = vmatpush1.msra.mxu0 0.0
        %2023 = vmatprep.subr.mxu0 0.0
        %2024 = vmatpush1.msra.mxu0 0.0
        %2025 = vmatprep.subr.mxu0 0.0
        %2026 = vmatpush1.msra.mxu0 0.0
        %2027 = vmatprep.subr.mxu0 0.0
        %2028 = vmatpush1.msra.mxu0 0.0
        %2029 = vmatprep.subr.mxu0 0.0
        %2030 = vmatpush1.msra.mxu0 0.0
        %2031 = vmatprep.subr.mxu0 0.0
        %2032 = vmatpush1.msra.mxu0 0.0
        %2033 = vmatprep.subr.mxu0 0.0
        %2034 = vmatpush1.msra.mxu0 0.0
        %2035 = vmatprep.subr.mxu0 0.0
        %2036 = vmatpush1.msra.mxu0 0.0
        %2037 = vmatprep.subr.mxu0 0.0
        %2038 = vmatpush1.msra.mxu0 0.0
        %2039 = vmatprep.subr.mxu0 0.0
        %2040 = vmatpush1.msra.mxu0 0.0
        %2041 = vmatprep.subr.mxu0 0.0
        %2042 = vmatpush1.msra.mxu0 0.0
        %2043 = vmatprep.subr.mxu0 0.0
        %2044 = vmatpush1.msra.mxu0 0.0
        %2045 = vmatprep.subr.mxu0 0.0
        %2046 = vmatpush1.msra.mxu0 0.0
        %2047 = vmatprep.subr.mxu0 0.0
        %2048 = vmatpush1.msra.mxu0 0.0
        %2049 = vmatprep.subr.mxu0 0.0
        %2050 = vmatpush1.msra.mxu0 0.0
        %2051 = vmatprep.subr.mxu0 0.0
        %2052 = vmatpush1.msra.mxu0 0.0
        %2053 = vmatprep.subr.mxu0 0.0
        %2054 = vmatpush1.msra.mxu0 0.0
        %2055 = vmatprep.subr.mxu0 0.0
        %2056 = vmatpush1.msra.mxu0 0.0
        %2057 = vmatprep.subr.mxu0 0.0
        %2058 = vmatpush1.msra.mxu0 0.0
        %2059 = vmatprep.subr.mxu0 0.0
        %2060 = vmatpush1.msra.mxu0 0.0
        %2061 = vmatprep.mubr.f32.mxu0 0.0
        %2062 = vmatmul.mubr.f32.gmra.mrb[0].mxu0 %v1995
        %v2063 = vpop.f32.mrb[0].mxu0
        %v2064 = vadd.f32 0.0, %v2063
        %v2065 = vpop.f32.mrb[0].mxu0
        %2066 = vdwg.mxu0
        %2067 = vrot.lane.b32.xlu0 %v967, 104
        %v2068 = vpop.permute.xlu0 %2067
        %2069 = vrot.lane.b32.xlu0 %v939, 72
        %v2070 = vpop.permute.xlu0 %2069
        %2071 = vrot.lane.b32.xlu0 %v944, 72
        %v2072 = vpop.permute.xlu0 %2071
        %2073 = vrot.lane.b32.xlu0 %v949, 72
        %v2074 = vpop.permute.xlu0 %2073
        %v2075 = vsel %vm978, %v2068, 0
        %v2077 = vsel %vm978, %v2070, 0
        %v2079 = vsel %vm978, %v2072, 0
        %v2081 = vsel %vm978, %v2074, 0
        %2083 = vmatprep.subr.mxu0 0.0
        %2084 = vmatpush1.xpose.msra.mxu0 %v2077
        %2085 = vmatprep.subr.mxu0 0.0
        %2086 = vmatpush1.xpose.msra.mxu0 %v2079
        %2087 = vmatprep.subr.mxu0 0.0
        %2088 = vmatpush1.xpose.msra.mxu0 %v2081
        %2089 = vmatprep.subr.mxu0 0.0
        %2090 = vmatpush1.xpose.msra.mxu0 0.0
        %2091 = vmatprep.subr.mxu0 0.0
        %2092 = vmatpush1.xpose.msra.mxu0 0.0
        %2093 = vmatprep.subr.mxu0 0.0
        %2094 = vmatpush1.xpose.msra.mxu0 0.0
        %2095 = vmatprep.subr.mxu0 0.0
        %2096 = vmatpush1.xpose.msra.mxu0 0.0
        %2097 = vmatprep.subr.mxu0 0.0
        %2098 = vmatpush1.xpose.msra.mxu0 0.0
        %2099 = vmatprep.subr.mxu0 0.0
        %2100 = vmatpush1.xpose.msra.mxu0 0.0
        %2101 = vmatprep.subr.mxu0 0.0
        %2102 = vmatpush1.xpose.msra.mxu0 0.0
        %2103 = vmatprep.subr.mxu0 0.0
        %2104 = vmatpush1.xpose.msra.mxu0 0.0
        %2105 = vmatprep.subr.mxu0 0.0
        %2106 = vmatpush1.xpose.msra.mxu0 0.0
        %2107 = vmatprep.subr.mxu0 0.0
        %2108 = vmatpush1.xpose.msra.mxu0 0.0
        %2109 = vmatprep.subr.mxu0 0.0
        %2110 = vmatpush1.xpose.msra.mxu0 0.0
        %2111 = vmatprep.subr.mxu0 0.0
        %2112 = vmatpush1.xpose.msra.mxu0 0.0
        %2113 = vmatprep.subr.mxu0 0.0
        %2114 = vmatpush1.xpose.msra.mxu0 0.0
        %2115 = vmatprep.subr.mxu0 0.0
        %2116 = vmatpush1.xpose.msra.mxu0 0.0
        %2117 = vmatprep.subr.mxu0 0.0
        %2118 = vmatpush1.xpose.msra.mxu0 0.0
        %2119 = vmatprep.subr.mxu0 0.0
        %2120 = vmatpush1.xpose.msra.mxu0 0.0
        %2121 = vmatprep.subr.mxu0 0.0
        %2122 = vmatpush1.xpose.msra.mxu0 0.0
        %2123 = vmatprep.subr.mxu0 0.0
        %2124 = vmatpush1.xpose.msra.mxu0 0.0
        %2125 = vmatprep.subr.mxu0 0.0
        %2126 = vmatpush1.xpose.msra.mxu0 0.0
        %2127 = vmatprep.subr.mxu0 0.0
        %2128 = vmatpush1.xpose.msra.mxu0 0.0
        %2129 = vmatprep.subr.mxu0 0.0
        %2130 = vmatpush1.xpose.msra.mxu0 0.0
        %2131 = vmatprep.subr.mxu0 0.0
        %2132 = vmatpush1.xpose.msra.mxu0 0.0
        %2133 = vmatprep.subr.mxu0 0.0
        %2134 = vmatpush1.xpose.msra.mxu0 0.0
        %2135 = vmatprep.subr.mxu0 0.0
        %2136 = vmatpush1.xpose.msra.mxu0 0.0
        %2137 = vmatprep.subr.mxu0 0.0
        %2138 = vmatpush1.xpose.msra.mxu0 0.0
        %2139 = vmatprep.subr.mxu0 0.0
        %2140 = vmatpush1.xpose.msra.mxu0 0.0
        %2141 = vmatprep.subr.mxu0 0.0
        %2142 = vmatpush1.xpose.msra.mxu0 0.0
        %2143 = vmatprep.subr.mxu0 0.0
        %2144 = vmatpush1.xpose.msra.mxu0 0.0
        %2145 = vmatprep.subr.mxu0 0.0
        %2146 = vmatpush1.xpose.msra.mxu0 0.0
        %2147 = vmatprep.mubr.f32.mxu0 0.0
        %2148 = vmatmul.mubr.f32.gmra.mrb[0].mxu0 %v2075
        %v2149 = vpop.f32.mrb[0].mxu0
        %v2150 = vadd.f32 0.0, %v2149
        %v2151 = vpop.f32.mrb[0].mxu0
        %2152 = vdwg.mxu0
        %2153 = vrot.lane.b32.xlu0 %v968, 104
        %v2154 = vpop.permute.xlu0 %2153
        %2155 = vrot.lane.b32.xlu0 %v954, 72
        %v2156 = vpop.permute.xlu0 %2155
        %2157 = vrot.lane.b32.xlu0 %v959, 72
        %v2158 = vpop.permute.xlu0 %2157
        %2159 = vrot.lane.b32.xlu0 %v964, 72
        %v2160 = vpop.permute.xlu0 %2159
        %v2161 = vsel %vm978, %v2154, 0
        %v2163 = vsel %vm978, %v2156, 0
        %v2165 = vsel %vm978, %v2158, 0
        %v2167 = vsel %vm978, %v2160, 0
        %2169 = vmatprep.subr.mxu0 0.0
        %2170 = vmatpush1.xpose.msra.mxu0 %v2163
        %2171 = vmatprep.subr.mxu0 0.0
        %2172 = vmatpush1.xpose.msra.mxu0 %v2165
        %2173 = vmatprep.subr.mxu0 0.0
        %2174 = vmatpush1.xpose.msra.mxu0 %v2167
        %2175 = vmatprep.subr.mxu0 0.0
        %2176 = vmatpush1.xpose.msra.mxu0 0.0
        %2177 = vmatprep.subr.mxu0 0.0
        %2178 = vmatpush1.xpose.msra.mxu0 0.0
        %2179 = vmatprep.subr.mxu0 0.0
        %2180 = vmatpush1.xpose.msra.mxu0 0.0
        %2181 = vmatprep.subr.mxu0 0.0
        %2182 = vmatpush1.xpose.msra.mxu0 0.0
        %2183 = vmatprep.subr.mxu0 0.0
        %2184 = vmatpush1.xpose.msra.mxu0 0.0
        %2185 = vmatprep.subr.mxu0 0.0
        %2186 = vmatpush1.xpose.msra.mxu0 0.0
        %2187 = vmatprep.subr.mxu0 0.0
        %2188 = vmatpush1.xpose.msra.mxu0 0.0
        %2189 = vmatprep.subr.mxu0 0.0
        %2190 = vmatpush1.xpose.msra.mxu0 0.0
        %2191 = vmatprep.subr.mxu0 0.0
        %2192 = vmatpush1.xpose.msra.mxu0 0.0
        %2193 = vmatprep.subr.mxu0 0.0
        %2194 = vmatpush1.xpose.msra.mxu0 0.0
        %2195 = vmatprep.subr.mxu0 0.0
        %2196 = vmatpush1.xpose.msra.mxu0 0.0
        %2197 = vmatprep.subr.mxu0 0.0
        %2198 = vmatpush1.xpose.msra.mxu0 0.0
        %2199 = vmatprep.subr.mxu0 0.0
        %2200 = vmatpush1.xpose.msra.mxu0 0.0
        %2201 = vmatprep.subr.mxu0 0.0
        %2202 = vmatpush1.xpose.msra.mxu0 0.0
        %2203 = vmatprep.subr.mxu0 0.0
        %2204 = vmatpush1.xpose.msra.mxu0 0.0
        %2205 = vmatprep.subr.mxu0 0.0
        %2206 = vmatpush1.xpose.msra.mxu0 0.0
        %2207 = vmatprep.subr.mxu0 0.0
        %2208 = vmatpush1.xpose.msra.mxu0 0.0
        %2209 = vmatprep.subr.mxu0 0.0
        %2210 = vmatpush1.xpose.msra.mxu0 0.0
        %2211 = vmatprep.subr.mxu0 0.0
        %2212 = vmatpush1.xpose.msra.mxu0 0.0
        %2213 = vmatprep.subr.mxu0 0.0
        %2214 = vmatpush1.xpose.msra.mxu0 0.0
        %2215 = vmatprep.subr.mxu0 0.0
        %2216 = vmatpush1.xpose.msra.mxu0 0.0
        %2217 = vmatprep.subr.mxu0 0.0
        %2218 = vmatpush1.xpose.msra.mxu0 0.0
        %2219 = vmatprep.subr.mxu0 0.0
        %2220 = vmatpush1.xpose.msra.mxu0 0.0
        %2221 = vmatprep.subr.mxu0 0.0
        %2222 = vmatpush1.xpose.msra.mxu0 0.0
        %2223 = vmatprep.subr.mxu0 0.0
        %2224 = vmatpush1.xpose.msra.mxu0 0.0
        %2225 = vmatprep.subr.mxu0 0.0
        %2226 = vmatpush1.xpose.msra.mxu0 0.0
        %2227 = vmatprep.subr.mxu0 0.0
        %2228 = vmatpush1.xpose.msra.mxu0 0.0
        %2229 = vmatprep.subr.mxu0 0.0
        %2230 = vmatpush1.xpose.msra.mxu0 0.0
        %2231 = vmatprep.subr.mxu0 0.0
        %2232 = vmatpush1.xpose.msra.mxu0 0.0
        %2233 = vmatprep.mubr.f32.mxu0 0.0
        %2234 = vmatmul.mubr.f32.gmra.mrb[0].mxu0 %v2161
        %v2235 = vpop.f32.mrb[0].mxu0
        %v2236 = vadd.f32 0.0, %v2235
        %v2237 = vpop.f32.mrb[0].mxu0
        %2238 = vdwg.mxu0
        %v2239 = vsel %vm1146, %v2150, -inf
        %2240 = vmax.xlane.f32.xlu0 %v2239
        %v2241 = vpop.xlane.xlu0 %2240
        %v2242 = vsel %vm1146, %v2236, -inf
        %2243 = vmax.xlane.f32.xlu0 %v2242
        %v2244 = vpop.xlane.xlu0 %2243
        %v2245 = vsub.f32 %v2150, %v2241
        %v2246 = vsub.f32 %v2236, %v2244
        %v2247 = vmul.f32 %v2245, 1.442695
        %v2248 = vpow.pop %v2247
        %v2249 = vmul.f32 %v2246, 1.442695
        %v2250 = vpow.pop %v2249
        %v2251 = vsel %vm1146, %v2248, 0.0
        %2252 = vadd.xlane.f32.xlu0 %v2251
        %v2253 = vpop.xlane.xlu0 %2252
        %v2254 = vsel %vm1146, %v2250, 0.0
        %2255 = vadd.xlane.f32.xlu0 %v2254
        %v2256 = vpop.xlane.xlu0 %2255
        %v2257 = vrcp.pop %v2253
        %v2258 = vrcp.pop %v2256
        %v2259 = vmul.f32 %v2253, %v2257
        %v2260 = vmul.f32 %v2256, %v2258
        %v2261 = vsub.f32 2.0, %v2259
        %v2262 = vsub.f32 2.0, %v2260
        %v2263 = vmul.f32 %v2257, %v2261
        %v2264 = vmul.f32 %v2258, %v2262
        %v2265 = vmul.f32 %v2248, %v2263
        %v2266 = vmul.f32 %v2250, %v2264
        %2267 = vrot.lane.b32.xlu0 %v939, 40
        %v2268 = vpop.permute.xlu0 %2267
        %2269 = vrot.lane.b32.xlu0 %v944, 40
        %v2270 = vpop.permute.xlu0 %2269
        %2271 = vrot.lane.b32.xlu0 %v949, 40
        %v2272 = vpop.permute.xlu0 %2271
        %v2277 = vsel %vm1146, %v2265, 0
        %2279 = vmatprep.subr.mxu0 0.0
        %2280 = vmatpush1.msra.mxu0 %v2268
        %2281 = vmatprep.subr.mxu0 0.0
        %2282 = vmatpush1.msra.mxu0 %v2270
        %2283 = vmatprep.subr.mxu0 0.0
        %2284 = vmatpush1.msra.mxu0 %v2272
        %2285 = vmatprep.subr.mxu0 0.0
        %2286 = vmatpush1.msra.mxu0 0.0
        %2287 = vmatprep.subr.mxu0 0.0
        %2288 = vmatpush1.msra.mxu0 0.0
        %2289 = vmatprep.subr.mxu0 0.0
        %2290 = vmatpush1.msra.mxu0 0.0
        %2291 = vmatprep.subr.mxu0 0.0
        %2292 = vmatpush1.msra.mxu0 0.0
        %2293 = vmatprep.subr.mxu0 0.0
        %2294 = vmatpush1.msra.mxu0 0.0
        %2295 = vmatprep.subr.mxu0 0.0
        %2296 = vmatpush1.msra.mxu0 0.0
        %2297 = vmatprep.subr.mxu0 0.0
        %2298 = vmatpush1.msra.mxu0 0.0
        %2299 = vmatprep.subr.mxu0 0.0
        %2300 = vmatpush1.msra.mxu0 0.0
        %2301 = vmatprep.subr.mxu0 0.0
        %2302 = vmatpush1.msra.mxu0 0.0
        %2303 = vmatprep.subr.mxu0 0.0
        %2304 = vmatpush1.msra.mxu0 0.0
        %2305 = vmatprep.subr.mxu0 0.0
        %2306 = vmatpush1.msra.mxu0 0.0
        %2307 = vmatprep.subr.mxu0 0.0
        %2308 = vmatpush1.msra.mxu0 0.0
        %2309 = vmatprep.subr.mxu0 0.0
        %2310 = vmatpush1.msra.mxu0 0.0
        %2311 = vmatprep.subr.mxu0 0.0
        %2312 = vmatpush1.msra.mxu0 0.0
        %2313 = vmatprep.subr.mxu0 0.0
        %2314 = vmatpush1.msra.mxu0 0.0
        %2315 = vmatprep.subr.mxu0 0.0
        %2316 = vmatpush1.msra.mxu0 0.0
        %2317 = vmatprep.subr.mxu0 0.0
        %2318 = vmatpush1.msra.mxu0 0.0
        %2319 = vmatprep.subr.mxu0 0.0
        %2320 = vmatpush1.msra.mxu0 0.0
        %2321 = vmatprep.subr.mxu0 0.0
        %2322 = vmatpush1.msra.mxu0 0.0
        %2323 = vmatprep.subr.mxu0 0.0
        %2324 = vmatpush1.msra.mxu0 0.0
        %2325 = vmatprep.subr.mxu0 0.0
        %2326 = vmatpush1.msra.mxu0 0.0
        %2327 = vmatprep.subr.mxu0 0.0
        %2328 = vmatpush1.msra.mxu0 0.0
        %2329 = vmatprep.subr.mxu0 0.0
        %2330 = vmatpush1.msra.mxu0 0.0
        %2331 = vmatprep.subr.mxu0 0.0
        %2332 = vmatpush1.msra.mxu0 0.0
        %2333 = vmatprep.subr.mxu0 0.0
        %2334 = vmatpush1.msra.mxu0 0.0
        %2335 = vmatprep.subr.mxu0 0.0
        %2336 = vmatpush1.msra.mxu0 0.0
        %2337 = vmatprep.subr.mxu0 0.0
        %2338 = vmatpush1.msra.mxu0 0.0
        %2339 = vmatprep.subr.mxu0 0.0
        %2340 = vmatpush1.msra.mxu0 0.0
        %2341 = vmatprep.subr.mxu0 0.0
        %2342 = vmatpush1.msra.mxu0 0.0
        %2343 = vmatprep.mubr.f32.mxu0 0.0
        %2344 = vmatmul.mubr.f32.gmra.mrb[0].mxu0 %v2277
        %v2345 = vpop.f32.mrb[0].mxu0
        %v2346 = vadd.f32 0.0, %v2345
        %v2347 = vpop.f32.mrb[0].mxu0
        %2348 = vdwg.mxu0
        %2349 = vrot.lane.b32.xlu0 %v954, 40
        %v2350 = vpop.permute.xlu0 %2349
        %2351 = vrot.lane.b32.xlu0 %v959, 40
        %v2352 = vpop.permute.xlu0 %2351
        %2353 = vrot.lane.b32.xlu0 %v964, 40
        %v2354 = vpop.permute.xlu0 %2353
        %v2359 = vsel %vm1146, %v2266, 0
        %2361 = vmatprep.subr.mxu0 0.0
        %2362 = vmatpush1.msra.mxu0 %v2350
        %2363 = vmatprep.subr.mxu0 0.0
        %2364 = vmatpush1.msra.mxu0 %v2352
        %2365 = vmatprep.subr.mxu0 0.0
        %2366 = vmatpush1.msra.mxu0 %v2354
        %2367 = vmatprep.subr.mxu0 0.0
        %2368 = vmatpush1.msra.mxu0 0.0
        %2369 = vmatprep.subr.mxu0 0.0
        %2370 = vmatpush1.msra.mxu0 0.0
        %2371 = vmatprep.subr.mxu0 0.0
        %2372 = vmatpush1.msra.mxu0 0.0
        %2373 = vmatprep.subr.mxu0 0.0
        %2374 = vmatpush1.msra.mxu0 0.0
        %2375 = vmatprep.subr.mxu0 0.0
        %2376 = vmatpush1.msra.mxu0 0.0
        %2377 = vmatprep.subr.mxu0 0.0
        %2378 = vmatpush1.msra.mxu0 0.0
        %2379 = vmatprep.subr.mxu0 0.0
        %2380 = vmatpush1.msra.mxu0 0.0
        %2381 = vmatprep.subr.mxu0 0.0
        %2382 = vmatpush1.msra.mxu0 0.0
        %2383 = vmatprep.subr.mxu0 0.0
        %2384 = vmatpush1.msra.mxu0 0.0
        %2385 = vmatprep.subr.mxu0 0.0
        %2386 = vmatpush1.msra.mxu0 0.0
        %2387 = vmatprep.subr.mxu0 0.0
        %2388 = vmatpush1.msra.mxu0 0.0
        %2389 = vmatprep.subr.mxu0 0.0
        %2390 = vmatpush1.msra.mxu0 0.0
        %2391 = vmatprep.subr.mxu0 0.0
        %2392 = vmatpush1.msra.mxu0 0.0
        %2393 = vmatprep.subr.mxu0 0.0
        %2394 = vmatpush1.msra.mxu0 0.0
        %2395 = vmatprep.subr.mxu0 0.0
        %2396 = vmatpush1.msra.mxu0 0.0
        %2397 = vmatprep.subr.mxu0 0.0
        %2398 = vmatpush1.msra.mxu0 0.0
        %2399 = vmatprep.subr.mxu0 0.0
        %2400 = vmatpush1.msra.mxu0 0.0
        %2401 = vmatprep.subr.mxu0 0.0
        %2402 = vmatpush1.msra.mxu0 0.0
        %2403 = vmatprep.subr.mxu0 0.0
        %2404 = vmatpush1.msra.mxu0 0.0
        %2405 = vmatprep.subr.mxu0 0.0
        %2406 = vmatpush1.msra.mxu0 0.0
        %2407 = vmatprep.subr.mxu0 0.0
        %2408 = vmatpush1.msra.mxu0 0.0
        %2409 = vmatprep.subr.mxu0 0.0
        %2410 = vmatpush1.msra.mxu0 0.0
        %2411 = vmatprep.subr.mxu0 0.0
        %2412 = vmatpush1.msra.mxu0 0.0
        %2413 = vmatprep.subr.mxu0 0.0
        %2414 = vmatpush1.msra.mxu0 0.0
        %2415 = vmatprep.subr.mxu0 0.0
        %2416 = vmatpush1.msra.mxu0 0.0
        %2417 = vmatprep.subr.mxu0 0.0
        %2418 = vmatpush1.msra.mxu0 0.0
        %2419 = vmatprep.subr.mxu0 0.0
        %2420 = vmatpush1.msra.mxu0 0.0
        %2421 = vmatprep.subr.mxu0 0.0
        %2422 = vmatpush1.msra.mxu0 0.0
        %2423 = vmatprep.subr.mxu0 0.0
        %2424 = vmatpush1.msra.mxu0 0.0
        %2425 = vmatprep.mubr.f32.mxu0 0.0
        %2426 = vmatmul.mubr.f32.gmra.mrb[0].mxu0 %v2359
        %v2427 = vpop.f32.mrb[0].mxu0
        %v2428 = vadd.f32 0.0, %v2427
        %v2429 = vpop.f32.mrb[0].mxu0
        %2430 = vdwg.mxu0
        %2433 = vrot.lane.b32.xlu0 %v1618, 8
        %v2434 = vpop.permute.xlu0 %2433
        %2435 = vrot.lane.b32.xlu0 %v1700, 8
        %v2436 = vpop.permute.xlu0 %2435
        %2441 = vrot.lane.b32.xlu0 %v1982, 16
        %v2442 = vpop.permute.xlu0 %2441
        %2443 = vrot.lane.b32.xlu0 %v2064, 16
        %v2444 = vpop.permute.xlu0 %2443
        %2449 = vrot.lane.b32.xlu0 %v2346, 24
        %v2450 = vpop.permute.xlu0 %2449
        %2451 = vrot.lane.b32.xlu0 %v2428, 24
        %v2452 = vpop.permute.xlu0 %2451
        %v2455 = vsel %vm978, %v1254, %v2434
        %v2456 = vsel %vm978, %v1336, %v2436
        %vm2457 = vcmask 130048
        %v2458 = vsel %vm2457, %v2455, %v2442
        %v2459 = vsel %vm2457, %v2456, %v2444
        %v2460 = vsel %vm1146, %v2458, %v2450
        %v2461 = vsel %vm1146, %v2459, %v2452
        %v2462 = vld [vmem:[%s652] sm:$0xff]
        %v2463 = vld [vmem:[%s652 + $0x8] sm:$0xff]
        %v2464 = vld [vmem:[%s652 + $0x10] sm:$0xff]
        %v2465 = vld [vmem:[%s652 + $0x18] sm:$0xff]
        %v2467 = vsel %vm806, %v2460, 0
        %v2470 = vsel %vm806, %v2461, 0
        %2472 = vmatprep.subr.mxu0 0.0
        %2473 = vmatpush1.msra.mxu0 %v2462
        %2474 = vmatprep.subr.mxu0 0.0
        %2475 = vmatpush1.msra.mxu0 %v2463
        %2476 = vmatprep.subr.mxu0 0.0
        %2477 = vmatpush1.msra.mxu0 %v2464
        %2478 = vmatprep.subr.mxu0 0.0
        %2479 = vmatpush1.msra.mxu0 %v2465
        %2480 = vmatprep.subr.mxu0 0.0
        %2481 = vmatpush1.msra.mxu0 0.0
        %2482 = vmatprep.subr.mxu0 0.0
        %2483 = vmatpush1.msra.mxu0 0.0
        %2484 = vmatprep.subr.mxu0 0.0
        %2485 = vmatpush1.msra.mxu0 0.0
        %2486 = vmatprep.subr.mxu0 0.0
        %2487 = vmatpush1.msra.mxu0 0.0
        %2488 = vmatprep.subr.mxu0 0.0
        %2489 = vmatpush1.msra.mxu0 0.0
        %2490 = vmatprep.subr.mxu0 0.0
        %2491 = vmatpush1.msra.mxu0 0.0
        %2492 = vmatprep.subr.mxu0 0.0
        %2493 = vmatpush1.msra.mxu0 0.0
        %2494 = vmatprep.subr.mxu0 0.0
        %2495 = vmatpush1.msra.mxu0 0.0
        %2496 = vmatprep.subr.mxu0 0.0
        %2497 = vmatpush1.msra.mxu0 0.0
        %2498 = vmatprep.subr.mxu0 0.0
        %2499 = vmatpush1.msra.mxu0 0.0
        %2500 = vmatprep.subr.mxu0 0.0
        %2501 = vmatpush1.msra.mxu0 0.0
        %2502 = vmatprep.subr.mxu0 0.0
        %2503 = vmatpush1.msra.mxu0 0.0
        %2504 = vmatprep.subr.mxu0 0.0
        %2505 = vmatpush1.msra.mxu0 0.0
        %2506 = vmatprep.subr.mxu0 0.0
        %2507 = vmatpush1.msra.mxu0 0.0
        %2508 = vmatprep.subr.mxu0 0.0
        %2509 = vmatpush1.msra.mxu0 0.0
        %2510 = vmatprep.subr.mxu0 0.0
        %2511 = vmatpush1.msra.mxu0 0.0
        %2512 = vmatprep.subr.mxu0 0.0
        %2513 = vmatpush1.msra.mxu0 0.0
        %2514 = vmatprep.subr.mxu0 0.0
        %2515 = vmatpush1.msra.mxu0 0.0
        %2516 = vmatprep.subr.mxu0 0.0
        %2517 = vmatpush1.msra.mxu0 0.0
        %2518 = vmatprep.subr.mxu0 0.0
        %2519 = vmatpush1.msra.mxu0 0.0
        %2520 = vmatprep.subr.mxu0 0.0
        %2521 = vmatpush1.msra.mxu0 0.0
        %2522 = vmatprep.subr.mxu0 0.0
        %2523 = vmatpush1.msra.mxu0 0.0
        %2524 = vmatprep.subr.mxu0 0.0
        %2525 = vmatpush1.msra.mxu0 0.0
        %2526 = vmatprep.subr.mxu0 0.0
        %2527 = vmatpush1.msra.mxu0 0.0
        %2528 = vmatprep.subr.mxu0 0.0
        %2529 = vmatpush1.msra.mxu0 0.0
        %2530 = vmatprep.subr.mxu0 0.0
        %2531 = vmatpush1.msra.mxu0 0.0
        %2532 = vmatprep.subr.mxu0 0.0
        %2533 = vmatpush1.msra.mxu0 0.0
        %2534 = vmatprep.subr.mxu0 0.0
        %2535 = vmatpush1.msra.mxu0 0.0
        %2536 = vmatprep.mubr.f32.mxu0 0.0
        %2537 = vmatmul.mubr.f32.gmra.mrb[0].mxu0 %v2467
        %v2538 = vpop.f32.mrb[0].mxu0
        %v2539 = vadd.f32 0.0, %v2538
        %v2540 = vpop.f32.mrb[0].mxu0
        %2541 = vmatprep.mubr.f32.mxu0 0.0
        %2542 = vmatmul.mubr.f32.gmra.mrb[0].mxu0 %v2470
        %v2543 = vpop.f32.mrb[0].mxu0
        %v2544 = vadd.f32 0.0, %v2543
        %v2545 = vpop.f32.mrb[0].mxu0
        %2546 = vdwg.mxu0
        %v2547 = vadd.f32 %v802, %v2539
        %v2548 = vadd.f32 %v803, %v2544
        %v2549 = vld [vmem:[%s655] sm:$0x1]
        %v2550 = vld [vmem:[%s658] sm:$0x1]
        %v2551 = vsel %vm806, %v2547, 0.0
        %2552 = vadd.xlane.f32.xlu0 %v2551
        %v2553 = vpop.xlane.xlu0 %2552
        %v2554 = vsel %vm806, %v2548, 0.0
        %2555 = vadd.xlane.f32.xlu0 %v2554
        %v2556 = vpop.xlane.xlu0 %2555
        %v2557 = vmul.f32 %v2553, %v813
        %v2558 = vmul.f32 %v2556, %v813
        %v2559 = vsub.f32 %v2547, %v2557
        %v2560 = vsub.f32 %v2548, %v2558
        %v2561 = vmul.f32 %v2559, %v2559
        %v2562 = vmul.f32 %v2560, %v2560
        %v2563 = vsel %vm806, %v2561, 0.0
        %2564 = vadd.xlane.f32.xlu0 %v2563
        %v2565 = vpop.xlane.xlu0 %2564
        %v2566 = vsel %vm806, %v2562, 0.0
        %2567 = vadd.xlane.f32.xlu0 %v2566
        %v2568 = vpop.xlane.xlu0 %2567
        %v2569 = vmul.f32 %v2565, %v813
        %v2570 = vmul.f32 %v2568, %v813
        %v2571 = vadd.f32 %v2569, 1e-05
        %v2572 = vadd.f32 %v2570, 1e-05
        %v2573 = vrsqrt.pop %v2571
        %v2574 = vrsqrt.pop %v2572
        %v2575 = vmul.f32 %v2559, %v2573
        %v2576 = vmul.f32 %v2560, %v2574
        %v2578 = vlaneseq
        %v2579 = vshrl.u32 %v2578, 7
        %v2580 = vsub.s32 0, %v2579
        %v2581 = vrot.slane %v2549, %v2580
        %v2583 = vmul.f32 %v2575, %v2581
        %v2584 = vmul.f32 %v2576, %v2581
        %v2586 = vlaneseq
        %v2587 = vshrl.u32 %v2586, 7
        %v2588 = vsub.s32 0, %v2587
        %v2589 = vrot.slane %v2550, %v2588
        %v2591 = vadd.f32 %v2583, %v2589
        %v2592 = vadd.f32 %v2584, %v2589
        %v2593 = vld [vmem:[%s663] sm:$0xff]
        %v2594 = vld [vmem:[%s663 + $0x8] sm:$0xff]
        %v2595 = vld [vmem:[%s663 + $0x10] sm:$0xff]
        %v2596 = vld [vmem:[%s663 + $0x18] sm:$0xff]
        %v2598 = vsel %vm806, %v2591, 0
        %v2601 = vsel %vm806, %v2592, 0
        %2603 = vmatprep.subr.mxu0 0.0
        %2604 = vmatpush1.msra.mxu0 %v2593
        %2605 = vmatprep.subr.mxu0 0.0
        %2606 = vmatpush1.msra.mxu0 %v2594
        %2607 = vmatprep.subr.mxu0 0.0
        %2608 = vmatpush1.msra.mxu0 %v2595
        %2609 = vmatprep.subr.mxu0 0.0
        %2610 = vmatpush1.msra.mxu0 %v2596
        %2611 = vmatprep.subr.mxu0 0.0
        %2612 = vmatpush1.msra.mxu0 0.0
        %2613 = vmatprep.subr.mxu0 0.0
        %2614 = vmatpush1.msra.mxu0 0.0
        %2615 = vmatprep.subr.mxu0 0.0
        %2616 = vmatpush1.msra.mxu0 0.0
        %2617 = vmatprep.subr.mxu0 0.0
        %2618 = vmatpush1.msra.mxu0 0.0
        %2619 = vmatprep.subr.mxu0 0.0
        %2620 = vmatpush1.msra.mxu0 0.0
        %2621 = vmatprep.subr.mxu0 0.0
        %2622 = vmatpush1.msra.mxu0 0.0
        %2623 = vmatprep.subr.mxu0 0.0
        %2624 = vmatpush1.msra.mxu0 0.0
        %2625 = vmatprep.subr.mxu0 0.0
        %2626 = vmatpush1.msra.mxu0 0.0
        %2627 = vmatprep.subr.mxu0 0.0
        %2628 = vmatpush1.msra.mxu0 0.0
        %2629 = vmatprep.subr.mxu0 0.0
        %2630 = vmatpush1.msra.mxu0 0.0
        %2631 = vmatprep.subr.mxu0 0.0
        %2632 = vmatpush1.msra.mxu0 0.0
        %2633 = vmatprep.subr.mxu0 0.0
        %2634 = vmatpush1.msra.mxu0 0.0
        %2635 = vmatprep.subr.mxu0 0.0
        %2636 = vmatpush1.msra.mxu0 0.0
        %2637 = vmatprep.subr.mxu0 0.0
        %2638 = vmatpush1.msra.mxu0 0.0
        %2639 = vmatprep.subr.mxu0 0.0
        %2640 = vmatpush1.msra.mxu0 0.0
        %2641 = vmatprep.subr.mxu0 0.0
        %2642 = vmatpush1.msra.mxu0 0.0
        %2643 = vmatprep.subr.mxu0 0.0
        %2644 = vmatpush1.msra.mxu0 0.0
        %2645 = vmatprep.subr.mxu0 0.0
        %2646 = vmatpush1.msra.mxu0 0.0
        %2647 = vmatprep.subr.mxu0 0.0
        %2648 = vmatpush1.msra.mxu0 0.0
        %2649 = vmatprep.subr.mxu0 0.0
        %2650 = vmatpush1.msra.mxu0 0.0
        %2651 = vmatprep.subr.mxu0 0.0
        %2652 = vmatpush1.msra.mxu0 0.0
        %2653 = vmatprep.subr.mxu0 0.0
        %2654 = vmatpush1.msra.mxu0 0.0
        %2655 = vmatprep.subr.mxu0 0.0
        %2656 = vmatpush1.msra.mxu0 0.0
        %2657 = vmatprep.subr.mxu0 0.0
        %2658 = vmatpush1.msra.mxu0 0.0
        %2659 = vmatprep.subr.mxu0 0.0
        %2660 = vmatpush1.msra.mxu0 0.0
        %2661 = vmatprep.subr.mxu0 0.0
        %2662 = vmatpush1.msra.mxu0 0.0
        %2663 = vmatprep.subr.mxu0 0.0
        %2664 = vmatpush1.msra.mxu0 0.0
        %2665 = vmatprep.subr.mxu0 0.0
        %2666 = vmatpush1.msra.mxu0 0.0
        %2667 = vmatprep.mubr.f32.mxu0 0.0
        %2668 = vmatmul.mubr.f32.gmra.mrb[0].mxu0 %v2598
        %v2669 = vpop.f32.mrb[0].mxu0
        %v2670 = vadd.f32 0.0, %v2669
        %v2671 = vpop.f32.mrb[0].mxu0
        %2672 = vmatprep.mubr.f32.mxu0 0.0
        %2673 = vmatmul.mubr.f32.gmra.mrb[0].mxu0 %v2601
        %v2674 = vpop.f32.mrb[0].mxu0
        %v2675 = vadd.f32 0.0, %v2674
        %v2676 = vpop.f32.mrb[0].mxu0
        %2677 = vdwg.mxu0
        %v2678 = vmul.f32 %v2670, 0.5
        %v2679 = vmul.f32 %v2675, 0.5
        %v2680 = vmul.f32 %v2670, 0.70710677
        %v2681 = vmul.f32 %v2675, 0.70710677
        %vm2682 = vcmp.ge.f32.partialorder %v2680, 0.0
        %vm2683 = vcmp.ge.f32.partialorder %v2681, 0.0
        %v2684 = vsel %vm2682, 1.0, -1.0
        %v2685 = vsel %vm2683, 1.0, -1.0
        %v2686 = vand.u32 2147483647, %v2680
        %v2687 = vand.u32 2147483647, %v2681
        %v2688 = vmul.f32 %v2686, 0.3275911
        %v2689 = vmul.f32 %v2687, 0.3275911
        %v2690 = vadd.f32 %v2688, 1.0
        %v2691 = vadd.f32 %v2689, 1.0
        %v2692 = vrcp.pop %v2690
        %v2693 = vrcp.pop %v2691
        %v2694 = vmul.f32 %v2690, %v2692
        %v2695 = vmul.f32 %v2691, %v2693
        %v2696 = vsub.f32 2.0, %v2694
        %v2697 = vsub.f32 2.0, %v2695
        %v2698 = vmul.f32 %v2692, %v2696
        %v2699 = vmul.f32 %v2693, %v2697
        %v2700 = vmul.f32 %v2698, 1.0614054
        %v2701 = vmul.f32 %v2699, 1.0614054
        %v2702 = vadd.f32 %v2700, -1.4531521
        %v2703 = vadd.f32 %v2701, -1.4531521
        %v2704 = vmul.f32 %v2698, %v2702
        %v2705 = vmul.f32 %v2699, %v2703
        %v2706 = vadd.f32 %v2704, 1.4214138
        %v2707 = vadd.f32 %v2705, 1.4214138
        %v2708 = vmul.f32 %v2698, %v2706
        %v2709 = vmul.f32 %v2699, %v2707
        %v2710 = vadd.f32 %v2708, -0.28449672
        %v2711 = vadd.f32 %v2709, -0.28449672
        %v2712 = vmul.f32 %v2698, %v2710
        %v2713 = vmul.f32 %v2699, %v2711
        %v2714 = vadd.f32 %v2712, 0.2548296
        %v2715 = vadd.f32 %v2713, 0.2548296
        %v2716 = vmul.f32 %v2698, %v2714
        %v2717 = vmul.f32 %v2699, %v2715
        %v2718 = vsub.f32 0.0, %v2686
        %v2719 = vsub.f32 0.0, %v2687
        %v2720 = vmul.f32 %v2718, %v2686
        %v2721 = vmul.f32 %v2719, %v2687
        %v2722 = vmul.f32 %v2720, 1.442695
        %v2723 = vpow.pop %v2722
        %v2724 = vmul.f32 %v2721, 1.442695
        %v2725 = vpow.pop %v2724
        %v2726 = vmul.f32 %v2716, %v2723
        %v2727 = vmul.f32 %v2717, %v2725
        %v2728 = vsub.f32 1.0, %v2726
        %v2729 = vsub.f32 1.0, %v2727
        %v2730 = vmul.f32 %v2684, %v2728
        %v2731 = vmul.f32 %v2685, %v2729
        %v2732 = vadd.f32 %v2730, 1.0
        %v2733 = vadd.f32 %v2731, 1.0
        %v2734 = vmul.f32 %v2678, %v2732
        %v2735 = vmul.f32 %v2679, %v2733
        %v2736 = vld [vmem:[%s668] sm:$0xff]
        %v2737 = vld [vmem:[%s668 + $0x8] sm:$0xff]
        %v2738 = vld [vmem:[%s668 + $0x10] sm:$0xff]
        %v2739 = vld [vmem:[%s668 + $0x18] sm:$0xff]
        %v2740 = vld [vmem:[%s668 + $0x20] sm:$0xff]
        %v2741 = vld [vmem:[%s668 + $0x28] sm:$0xff]
        %v2742 = vld [vmem:[%s668 + $0x30] sm:$0xff]
        %v2743 = vld [vmem:[%s668 + $0x38] sm:$0xff]
        %v2744 = vld [vmem:[%s668 + $0x40] sm:$0xff]
        %v2745 = vld [vmem:[%s668 + $0x48] sm:$0xff]
        %v2746 = vld [vmem:[%s668 + $0x50] sm:$0xff]
        %v2747 = vld [vmem:[%s668 + $0x58] sm:$0xff]
        %v2748 = vld [vmem:[%s668 + $0x60] sm:$0xff]
        %v2749 = vld [vmem:[%s668 + $0x68] sm:$0xff]
        %v2750 = vld [vmem:[%s668 + $0x70] sm:$0xff]
        %v2751 = vld [vmem:[%s668 + $0x78] sm:$0xff]
        %2752 = vmatprep.subr.mxu0 0.0
        %2753 = vmatpush1.msra.mxu0 %v2736
        %2754 = vmatprep.subr.mxu0 0.0
        %2755 = vmatpush1.msra.mxu0 %v2737
        %2756 = vmatprep.subr.mxu0 0.0
        %2757 = vmatpush1.msra.mxu0 %v2738
        %2758 = vmatprep.subr.mxu0 0.0
        %2759 = vmatpush1.msra.mxu0 %v2739
        %2760 = vmatprep.subr.mxu0 0.0
        %2761 = vmatpush1.msra.mxu0 %v2740
        %2762 = vmatprep.subr.mxu0 0.0
        %2763 = vmatpush1.msra.mxu0 %v2741
        %2764 = vmatprep.subr.mxu0 0.0
        %2765 = vmatpush1.msra.mxu0 %v2742
        %2766 = vmatprep.subr.mxu0 0.0
        %2767 = vmatpush1.msra.mxu0 %v2743
        %2768 = vmatprep.subr.mxu0 0.0
        %2769 = vmatpush1.msra.mxu0 %v2744
        %2770 = vmatprep.subr.mxu0 0.0
        %2771 = vmatpush1.msra.mxu0 %v2745
        %2772 = vmatprep.subr.mxu0 0.0
        %2773 = vmatpush1.msra.mxu0 %v2746
        %2774 = vmatprep.subr.mxu0 0.0
        %2775 = vmatpush1.msra.mxu0 %v2747
        %2776 = vmatprep.subr.mxu0 0.0
        %2777 = vmatpush1.msra.mxu0 %v2748
        %2778 = vmatprep.subr.mxu0 0.0
        %2779 = vmatpush1.msra.mxu0 %v2749
        %2780 = vmatprep.subr.mxu0 0.0
        %2781 = vmatpush1.msra.mxu0 %v2750
        %2782 = vmatprep.subr.mxu0 0.0
        %2783 = vmatpush1.msra.mxu0 %v2751
        %2784 = vmatprep.subr.mxu0 0.0
        %2785 = vmatpush1.msra.mxu0 0.0
        %2786 = vmatprep.subr.mxu0 0.0
        %2787 = vmatpush1.msra.mxu0 0.0
        %2788 = vmatprep.subr.mxu0 0.0
        %2789 = vmatpush1.msra.mxu0 0.0
        %2790 = vmatprep.subr.mxu0 0.0
        %2791 = vmatpush1.msra.mxu0 0.0
        %2792 = vmatprep.subr.mxu0 0.0
        %2793 = vmatpush1.msra.mxu0 0.0
        %2794 = vmatprep.subr.mxu0 0.0
        %2795 = vmatpush1.msra.mxu0 0.0
        %2796 = vmatprep.subr.mxu0 0.0
        %2797 = vmatpush1.msra.mxu0 0.0
        %2798 = vmatprep.subr.mxu0 0.0
        %2799 = vmatpush1.msra.mxu0 0.0
        %2800 = vmatprep.subr.mxu0 0.0
        %2801 = vmatpush1.msra.mxu0 0.0
        %2802 = vmatprep.subr.mxu0 0.0
        %2803 = vmatpush1.msra.mxu0 0.0
        %2804 = vmatprep.subr.mxu0 0.0
        %2805 = vmatpush1.msra.mxu0 0.0
        %2806 = vmatprep.subr.mxu0 0.0
        %2807 = vmatpush1.msra.mxu0 0.0
        %2808 = vmatprep.subr.mxu0 0.0
        %2809 = vmatpush1.msra.mxu0 0.0
        %2810 = vmatprep.subr.mxu0 0.0
        %2811 = vmatpush1.msra.mxu0 0.0
        %2812 = vmatprep.subr.mxu0 0.0
        %2813 = vmatpush1.msra.mxu0 0.0
        %2814 = vmatprep.subr.mxu0 0.0
        %2815 = vmatpush1.msra.mxu0 0.0
        %2816 = vmatprep.mubr.f32.mxu0 0.0
        %2817 = vmatmul.mubr.f32.gmra.mrb[0].mxu0 %v2734
        %v2818 = vpop.f32.mrb[0].mxu0
        %v2819 = vadd.f32 0.0, %v2818
        %v2820 = vpop.f32.mrb[0].mxu0
        %2821 = vmatprep.mubr.f32.mxu0 0.0
        %2822 = vmatmul.mubr.f32.gmra.mrb[0].mxu0 %v2735
        %v2823 = vpop.f32.mrb[0].mxu0
        %v2824 = vadd.f32 0.0, %v2823
        %v2825 = vpop.f32.mrb[0].mxu0
        %2826 = vdwg.mxu0
        %v2827 = vadd.f32 %v2547, %v2819
        %v2828 = vadd.f32 %v2548, %v2824
        %2829 = vst.msk [vmem:[#allocation3] sm:$0xff] %vm806, %v2827
        %2830 = vst.msk [vmem:[#allocation3 + $0x8] sm:$0xff] %vm806, %v2828
        %p2831 = scmp.eq.s32.totalorder %s34, 1
        // Predicated region
        $region85: #{perceiver_resampler_forward.1} parent=79 // pred_check
          %p2832 = pneg %p2831
        $region86: #{perceiver_resampler_forward.1} parent=79 // pred_check_branch
          %2834 = sbr.rel (%p2832) target = $region88
        $region87: #{perceiver_resampler_forward.1} parent=79 // pred_region
          %v2835 = vld [vmem:[%s13] sm:$0x1]
          %v2836 = vld [vmem:[%s14] sm:$0x1]
          %v2837 = vsel %vm806, %v2827, 0.0
          %2838 = vadd.xlane.f32.xlu0 %v2837
          %v2839 = vpop.xlane.xlu0 %2838
          %v2840 = vsel %vm806, %v2828, 0.0
          %2841 = vadd.xlane.f32.xlu0 %v2840
          %v2842 = vpop.xlane.xlu0 %2841
          %v2843 = vmul.f32 %v2839, %v813
          %v2844 = vmul.f32 %v2842, %v813
          %v2845 = vsub.f32 %v2827, %v2843
          %v2846 = vsub.f32 %v2828, %v2844
          %v2847 = vmul.f32 %v2845, %v2845
          %v2848 = vmul.f32 %v2846, %v2846
          %v2849 = vsel %vm806, %v2847, 0.0
          %2850 = vadd.xlane.f32.xlu0 %v2849
          %v2851 = vpop.xlane.xlu0 %2850
          %v2852 = vsel %vm806, %v2848, 0.0
          %2853 = vadd.xlane.f32.xlu0 %v2852
          %v2854 = vpop.xlane.xlu0 %2853
          %v2855 = vmul.f32 %v2851, %v813
          %v2856 = vmul.f32 %v2854, %v813
          %v2857 = vadd.f32 %v2855, 1e-05
          %v2858 = vadd.f32 %v2856, 1e-05
          %v2859 = vrsqrt.pop %v2857
          %v2860 = vrsqrt.pop %v2858
          %v2861 = vmul.f32 %v2845, %v2859
          %v2862 = vmul.f32 %v2846, %v2860
          %v2864 = vlaneseq
          %v2865 = vshrl.u32 %v2864, 7
          %v2866 = vsub.s32 0, %v2865
          %v2867 = vrot.slane %v2835, %v2866
          %v2869 = vmul.f32 %v2861, %v2867
          %v2870 = vmul.f32 %v2862, %v2867
          %v2872 = vlaneseq
          %v2873 = vshrl.u32 %v2872, 7
          %v2874 = vsub.s32 0, %v2873
          %v2875 = vrot.slane %v2836, %v2874
          %v2877 = vadd.f32 %v2869, %v2875
          %v2878 = vadd.f32 %v2870, %v2875
          %2879 = vst.msk [vmem:[%s625] sm:$0xff] %vm806, %v2877
          %2880 = vst.msk [vmem:[%s625 + $0x8] sm:$0xff] %vm806, %v2878
        $region88: #{perceiver_resampler_forward.1} parent=79 // pred_fallthru
          _
        %s2881 = sand.u32 %s419, 1
        %s2882 = scalar_lea.sflag [#allocation5], %s2881
        %s2883 = sand.u32 %s419, 1
        %s2884 = smul.addr %s2883, 16
        %s2885 = scalar_lea.vmem [#allocation4], %s2884
        // Predicated region
        $region89: #{perceiver_resampler_forward.1} parent=79 // pred_check
          %p2886 = pneg %p429
        $region90: #{perceiver_resampler_forward.1} parent=79 // pred_check_branch
          %2888 = sbr.rel (%p2886) target = $region92
        $region91: #{perceiver_resampler_forward.1} parent=79 // pred_region
          %s2890 = ssub.s32 256, 256
          %2891 = vsyncadd %s2882, %s2890
          %s2892 = smul.addr %s33, 2
          %s2893 = smul.addr %s2892, 128
          %s2894 = scalar_lea.hbm %s15, %s2893
          %s2895 = sshll.u32 %s2885, 4
          %s2896 = int_to_ptr.vmem [resolvable:$true] %s2895
          %2901 = dma.vmem_to_hbm [thread:$0]  %s2896, 256, %s2894, %s2882, 128, 128, 8
        $region92: #{perceiver_resampler_forward.1} parent=79 // pred_fallthru
          _
      $region80: #{perceiver_resampler_forward.1} parent=5 // pred_fallthru
        _
      %p2902 = scmp.le.s32.totalorder 2, %s24
      // Predicated region
      $region93: #{perceiver_resampler_forward.1} parent=5 // pred_check
        %p2903 = pneg %p2902
      $region94: #{perceiver_resampler_forward.1} parent=5 // pred_check_branch
        %2905 = sbr.rel (%p2903) target = $region96
      $region95: #{perceiver_resampler_forward.1} parent=5 // pred_region
        %s2906 = ssub.s32 %s24, 2
        // Predicated region
        $region97: #{perceiver_resampler_forward.1} parent=95 // pred_check
          %p2907 = pneg %p435
        $region98: #{perceiver_resampler_forward.1} parent=95 // pred_check_branch
          %2909 = sbr.rel (%p2907) target = $region100
        $region99: #{perceiver_resampler_forward.1} parent=95 // pred_region
          %s2910 = sand.u32 %s420, 1
          %s2911 = scalar_lea.sflag [#allocation5], %s2910
          %s2912 = sand.u32 %s420, 1
          %s2913 = smul.addr %s2912, 16
          %s2914 = scalar_lea.vmem [#allocation4], %s2913
          %2915 = dma.done %s2911, 256
        $region100: #{perceiver_resampler_forward.1} parent=95 // pred_fallthru
          _
      $region96: #{perceiver_resampler_forward.1} parent=5 // pred_fallthru
        _
    $region6: #{perceiver_resampler_forward.1} parent=1 // loop_footer
      %s28 = sadd.s32 1, %s24
    $region7: #{perceiver_resampler_forward.1} parent=1 // loop_footer_branch
      %23 = sbr.rel target = $region3
    $region8: #{perceiver_resampler_forward.1} parent=1 // loop_exit
      _
    %2916 = vsyncpa [#allocation5], 1
    %s2917 = scalar_lea.sflag [#allocation5], 1
    %2918 = vsyncpa %s2917, 1

</llo_original>
